<compile_context>
chip_gen: v5e
topology: v5e:2x2
jax: 0.10.0
libtpu: 0.0.40
codegen_flags: <defaults>
</compile_context>

<pallas_src>
import jax
import jax.numpy as jnp
from jax.experimental import pallas as pl
from jax.experimental.pallas import tpu as pltpu


# ----------------------------------------------------------------------------
# Fused LeNet kernel: conv1+relu+pool -> conv2+relu+pool -> fc1 -> fc2 -> fc3
# ----------------------------------------------------------------------------
def _lenet_kernel(x_ref, W1_ref, b1_ref, C2_ref, b2_ref,
                  Wf1_ref, bf1_ref, W2_ref, bf2_ref, W3_ref, bf3_ref,
                  o_ref):
    f32, bf16 = jnp.float32, jnp.bfloat16
    R = x_ref.shape[1]            # TB * 16 (16-row pitch per image, 14 valid)
    tb = R // 16

    # --- conv1 + bias + ReLU: ONE dot, height taps already folded into K ---
    x2 = x_ref[...].reshape(2 * R, 160)                          # parity-stacked im2col
    a1 = jnp.dot(x2, W1_ref[...], preferred_element_type=f32)    # (2R, 256)
    a1 = jnp.maximum(a1 + b1_ref[...], 0.0)

    # --- AvgPool2d height: even/odd halves are aligned sublane blocks ---
    hp1 = ((a1[:R] + a1[R:]) * 0.5).astype(bf16)                 # (R, 256)
    hp1 = jnp.concatenate([hp1, jnp.zeros((16, 256), bf16)], axis=0)

    # --- conv2 (pool1 width folded into C2) + bias + ReLU: 5 batched dots ---
    acc2 = jnp.dot(hp1[0:R], C2_ref[0], preferred_element_type=f32)
    for kh in range(1, 5):
        acc2 = acc2 + jnp.dot(hp1[kh:kh + R], C2_ref[kh],
                              preferred_element_type=f32)
    y2 = jnp.maximum(acc2 + b2_ref[...], 0.0)                    # (R, 160) f32
    y2 = y2.reshape(tb, 16, 160)                                 # free: 16-row pitch

    # --- fc1 (pool2 + channel-major flatten folded into Wf1): 10 batched dots ---
    acc3 = jnp.dot(y2[:, 0, :].astype(bf16), Wf1_ref[0],
                   preferred_element_type=f32)
    for j in range(1, 10):
        acc3 = acc3 + jnp.dot(y2[:, j, :].astype(bf16), Wf1_ref[j],
                              preferred_element_type=f32)
    h1 = jnp.maximum(acc3 + bf1_ref[...], 0.0).astype(bf16)      # (tb, 128)

    # --- fc2 + ReLU, fc3 (lane-padded to 128): one lane-dense store per step ---
    h2 = jnp.maximum(jnp.dot(h1, W2_ref[...], preferred_element_type=f32)
                     + bf2_ref[...], 0.0).astype(bf16)           # (tb, 128)
    o_ref[...] = (jnp.dot(h2, W3_ref[...], preferred_element_type=f32)
                  + bf3_ref[...])                                # (tb, 128) f32


# ----------------------------------------------------------------------------
# One-time layout preparation (outside the forward pass)
# ----------------------------------------------------------------------------
def prepare_params(params):
    """Banded conv matrices (height taps folded into K for conv1), pooling
    matrices folded into the following layer's weights, lane-padded FC weights.
    Matmul operands are cast to bf16 once at the end; biases stay f32."""
    f32, bf16 = jnp.float32, jnp.bfloat16

    w1 = params["w_conv1"].astype(f32)    # (6, 1, 5, 5)
    b1 = params["b_conv1"].astype(f32)    # (6,)
    w2 = params["w_conv2"].astype(f32)    # (16, 6, 5, 5)
    b2 = params["b_conv2"].astype(f32)    # (16,)
    wf1 = params["w_fc1"].astype(f32)     # (120, 400)
    bf1 = params["b_fc1"].astype(f32)
    wf2 = params["w_fc2"].astype(f32)     # (84, 120)
    bf2 = params["b_fc2"].astype(f32)
    wf3 = params["w_fc3"].astype(f32)     # (10, 84)
    bf3 = params["b_fc3"].astype(f32)

    def banded(w, in_w, out_w):
        # w: (OC, IC, 5, 5) -> (5, IC*in_w, OC*out_w) with
        #   out[kh, ic*in_w + (j + kw), oc*out_w + j] = w[oc, ic, kh, kw]
        oc_n, ic_n, k, _ = w.shape
        r = jnp.arange(in_w)[:, None]
        j = jnp.arange(out_w)[None, :]
        kw = r - j
        valid = (kw >= 0) & (kw < k)
        kw_c = jnp.clip(kw, 0, k - 1)
        g = w[:, :, :, kw_c]                      # (OC, IC, 5, in_w, out_w)
        g = jnp.where(valid[None, None, None], g, 0.0)
        g = g.transpose(2, 1, 3, 0, 4)            # (5, IC, in_w, OC, out_w)
        return g.reshape(k, ic_n * in_w, oc_n * out_w)

    # conv1: fold the 5 height taps into K (rows = kh*32 + w_in), pad N 168->256
    B1 = banded(w1, 32, 28).reshape(160, 168)
    W1 = jnp.zeros((160, 256), f32).at[:, :168].set(B1)
    b1r = jnp.zeros((1, 256), f32).at[0, :168].set(jnp.repeat(b1, 28))

    # conv2: fold pool1's width-averaging matrix into the banded weights
    phw = 0.5 * (jnp.arange(28)[:, None] // 2
                 == jnp.arange(14)[None, :]).astype(f32)       # (28, 14)
    Pw1 = jnp.kron(jnp.eye(6, dtype=f32), phw)                 # (168, 84)
    C2o = banded(w2, 14, 10)                                   # (5, 84, 160)
    C2f = jnp.einsum('ab,kbc->kac', Pw1, C2o)                  # (5, 168, 160)
    C2 = jnp.zeros((5, 256, 160), f32).at[:, :168, :].set(C2f)
    b2r = jnp.repeat(b2, 10).reshape(1, 160)

    # fc1: fold pool2 (0.25 factors) + torch channel-major flatten into weights
    #   Wf1[j, oc*10 + ow, n] = 0.25 * wf1[n, oc*25 + (j//2)*5 + ow//2]
    w4 = wf1.reshape(120, 16, 5, 5)                            # (n, oc, p, u)
    ow = jnp.arange(10)
    rows = []
    for j in range(10):
        sel = w4[:, :, j // 2, :]                              # (120, 16, 5)
        m = 0.25 * sel[:, :, ow // 2]                          # (120, 16, 10)
        rows.append(m.transpose(1, 2, 0).reshape(160, 120))
    Wf1 = jnp.pad(jnp.stack(rows, axis=0), ((0, 0), (0, 0), (0, 8)))  # (10,160,128)
    bf1r = jnp.zeros((1, 128), f32).at[0, :120].set(bf1)

    W2 = jnp.zeros((128, 128), f32).at[:120, :84].set(wf2.T)
    bf2r = jnp.zeros((1, 128), f32).at[0, :84].set(bf2)
    W3 = jnp.zeros((128, 128), f32).at[:84, :10].set(wf3.T)
    bf3r = jnp.zeros((1, 128), f32).at[0, :10].set(bf3)

    return {
        "W1": W1.astype(bf16), "b1": b1r,
        "C2": C2.astype(bf16), "b2": b2r,
        "Wf1": Wf1.astype(bf16), "bf1": bf1r,
        "W2": W2.astype(bf16), "bf2": bf2r,
        "W3": W3.astype(bf16), "bf3": bf3r,
    }


# ----------------------------------------------------------------------------
# Host-side input prep + one fused pallas_call
# ----------------------------------------------------------------------------
def _conv1_im2col(x, pad_n):
    """im2col for conv1 (pad=2), split by output-row parity and laid out with a
    16-row pitch per image: out[p, t*16 + j, kh*32 + w] = x_pad[t, 2j+p+kh, w]
    (rows j = 14, 15 are zero padding)."""
    n = x.shape[0]
    xp = jnp.pad(x[:, 0], ((0, pad_n - n), (2, 2), (2, 2)))          # (pad_n,32,32)
    cols = jnp.stack([xp[:, kh:kh + 28, :] for kh in range(5)], axis=2)
    cols = cols.reshape(pad_n, 28, 160)                               # (t, h, kh*32+w)

    def pitch16(a):                                                   # (pad_n,14,160)
        return jnp.pad(a, ((0, 0), (0, 2), (0, 0))).reshape(pad_n * 16, 160)

    return jnp.stack([pitch16(cols[:, 0::2]), pitch16(cols[:, 1::2])],
                     axis=0).astype(jnp.bfloat16)                     # (2, pad_n*16, 160)


def _tile_config(n):
    p8 = ((n + 7) // 8) * 8
    if p8 > 128:
        tb = 128
    elif p8 >= 32 and (p8 // 2) % 8 == 0:
        tb = p8 // 2          # keep grid >= 2 so both v7x TensorCores get work
    else:
        tb = p8
    pad_n = ((n + tb - 1) // tb) * tb
    return pad_n, tb


@jax.jit
def lenet_forward(prepped, x):
    n = x.shape[0]
    pad_n, tb = _tile_config(n)
    x_cols = _conv1_im2col(x.astype(jnp.float32), pad_n)

    def w_spec(shape):
        return pl.BlockSpec(shape, lambda i: (0,) * len(shape))

    out = pl.pallas_call(
        _lenet_kernel,
        grid=(pad_n // tb,),
        in_specs=[
            pl.BlockSpec((2, tb * 16, 160), lambda i: (0, i, 0)),
            w_spec((160, 256)), w_spec((1, 256)),
            w_spec((5, 256, 160)), w_spec((1, 160)),
            w_spec((10, 160, 128)), w_spec((1, 128)),
            w_spec((128, 128)), w_spec((1, 128)),
            w_spec((128, 128)), w_spec((1, 128)),
        ],
        out_specs=pl.BlockSpec((tb, 128), lambda i: (i, 0)),
        out_shape=jax.ShapeDtypeStruct((pad_n, 128), jnp.float32),
        compiler_params=pltpu.CompilerParams(
            dimension_semantics=("parallel",)),
    )(x_cols,
      prepped["W1"], prepped["b1"],
      prepped["C2"], prepped["b2"],
      prepped["Wf1"], prepped["bf1"],
      prepped["W2"], prepped["bf2"],
      prepped["W3"], prepped["bf3"])
    return out[:n, :10]


# ----------------------------------------------------------------------------
# Params (torch layout) + pure-JAX f32 reference (self-check)
# ----------------------------------------------------------------------------
def init_params(key):
    ks = jax.random.split(key, 10)

    def trunc(k, shape, scale=0.1):
        # truncated_normal(threshold=0.2): N(0, 0.1) clipped at 2 sigma
        return scale * jax.random.truncated_normal(k, -2.0, 2.0, shape, jnp.float32)

    def bias(k, shape, fan_in):
        bound = 1.0 / jnp.sqrt(fan_in)
        return jax.random.uniform(k, shape, jnp.float32, -bound, bound)

    return {
        "w_conv1": trunc(ks[0], (6, 1, 5, 5)),
        "b_conv1": bias(ks[1], (6,), 1 * 5 * 5),
        "w_conv2": trunc(ks[2], (16, 6, 5, 5)),
        "b_conv2": bias(ks[3], (16,), 6 * 5 * 5),
        "w_fc1": trunc(ks[4], (120, 400)),
        "b_fc1": bias(ks[5], (120,), 400),
        "w_fc2": trunc(ks[6], (84, 120)),
        "b_fc2": bias(ks[7], (84,), 120),
        "w_fc3": trunc(ks[8], (10, 84)),
        "b_fc3": bias(ks[9], (10,), 84),
    }


def lenet_reference(params, x):
    """Plain-JAX f32 LeNet with torch semantics (im2col conv, avg pool)."""
    hp = jax.lax.Precision.HIGHEST

    def conv(x, w, b, pad):
        n, c, h, wd = x.shape
        oc, ic, k, _ = w.shape
        xp = jnp.pad(x, ((0, 0), (0, 0), (pad, pad), (pad, pad)))
        oh, ow = h + 2 * pad - k + 1, wd + 2 * pad - k + 1
        cols = [xp[:, :, kh:kh + oh, kw:kw + ow]
                for kh in range(k) for kw in range(k)]
        p = jnp.stack(cols, axis=2).transpose(0, 3, 4, 1, 2)
        p = p.reshape(n * oh * ow, c * k * k)
        o = jnp.dot(p, w.reshape(oc, -1).T, precision=hp) + b
        return o.reshape(n, oh, ow, oc).transpose(0, 3, 1, 2)

    def pool(h):
        n, c, hh, ww = h.shape
        return h.reshape(n, c, hh // 2, 2, ww // 2, 2).mean(axis=(3, 5))

    h = pool(jnp.maximum(conv(x, params["w_conv1"], params["b_conv1"], 2), 0.0))
    h = pool(jnp.maximum(conv(h, params["w_conv2"], params["b_conv2"], 0), 0.0))
    h = h.reshape(h.shape[0], -1)
    h = jnp.maximum(jnp.dot(h, params["w_fc1"].T, precision=hp) + params["b_fc1"], 0.0)
    h = jnp.maximum(jnp.dot(h, params["w_fc2"].T, precision=hp) + params["b_fc2"], 0.0)
    return jnp.dot(h, params["w_fc3"].T, precision=hp) + params["b_fc3"]


if __name__ == "__main__":
    key = jax.random.PRNGKey(0)
    pkey, xkey = jax.random.split(key)
    params = init_params(pkey)
    prepped = prepare_params(params)

    x = jax.random.normal(xkey, (2, 1, 28, 28), jnp.float32)

    out = jax.block_until_ready(lenet_forward(prepped, x))

    assert out.shape == (2, 10), out.shape
    assert out.dtype == jnp.float32
    assert bool(jnp.all(jnp.isfinite(out)))

    ref = lenet_reference(params, x)
    err = float(jnp.max(jnp.abs(out - ref)))
    assert bool(jnp.allclose(out, ref, atol=7e-2, rtol=7e-2)), f"max_abs_err={err}"

    print("KERNEL_OK")
</pallas_src>

<mosaic_0001>
module attributes {stable_mosaic.version = 11 : i64} {
  func.func @_lenet_kernel(%arg0: i32, %arg1: memref<2x128x160xbf16, #tpu.memory_space<vmem>>, %arg2: memref<160x256xbf16, #tpu.memory_space<vmem>>, %arg3: memref<1x256xf32, #tpu.memory_space<vmem>>, %arg4: memref<5x256x160xbf16, #tpu.memory_space<vmem>>, %arg5: memref<1x160xf32, #tpu.memory_space<vmem>>, %arg6: memref<10x160x128xbf16, #tpu.memory_space<vmem>>, %arg7: memref<1x128xf32, #tpu.memory_space<vmem>>, %arg8: memref<128x128xbf16, #tpu.memory_space<vmem>>, %arg9: memref<1x128xf32, #tpu.memory_space<vmem>>, %arg10: memref<128x128xbf16, #tpu.memory_space<vmem>>, %arg11: memref<1x128xf32, #tpu.memory_space<vmem>>, %arg12: memref<8x128xf32, #tpu.memory_space<vmem>>) attributes {dimension_semantics = [#tpu.dimension_semantics<parallel>], iteration_bounds = array<i64: 1>, scalar_prefetch = 0 : i64, scratch_operands = 0 : i64, tpu.core_type = #tpu.core_type<tc>, window_params = [{transform_indices = @transform_0, window_bounds = array<i64: 2, 128, 160>}, {pipeline_mode = #tpu.pipeline_mode<synchronous>, transform_indices = @transform_1, window_bounds = array<i64: 160, 256>}, {pipeline_mode = #tpu.pipeline_mode<synchronous>, transform_indices = @transform_2, window_bounds = array<i64: 1, 256>}, {pipeline_mode = #tpu.pipeline_mode<synchronous>, transform_indices = @transform_3, window_bounds = array<i64: 5, 256, 160>}, {pipeline_mode = #tpu.pipeline_mode<synchronous>, transform_indices = @transform_4, window_bounds = array<i64: 1, 160>}, {pipeline_mode = #tpu.pipeline_mode<synchronous>, transform_indices = @transform_5, window_bounds = array<i64: 10, 160, 128>}, {pipeline_mode = #tpu.pipeline_mode<synchronous>, transform_indices = @transform_6, window_bounds = array<i64: 1, 128>}, {pipeline_mode = #tpu.pipeline_mode<synchronous>, transform_indices = @transform_7, window_bounds = array<i64: 128, 128>}, {pipeline_mode = #tpu.pipeline_mode<synchronous>, transform_indices = @transform_8, window_bounds = array<i64: 1, 128>}, {pipeline_mode = #tpu.pipeline_mode<synchronous>, transform_indices = @transform_9, window_bounds = array<i64: 128, 128>}, {pipeline_mode = #tpu.pipeline_mode<synchronous>, transform_indices = @transform_10, window_bounds = array<i64: 1, 128>}, {transform_indices = @transform_11, window_bounds = array<i64: 8, 128>}]} {
    %c0 = arith.constant 0 : index
    %c0_0 = arith.constant 0 : index
    %c0_1 = arith.constant 0 : index
    %0 = vector.load %arg1[%c0, %c0_0, %c0_1] : memref<2x128x160xbf16, #tpu.memory_space<vmem>>, vector<2x128x160xbf16>
    %1 = vector.shape_cast %0 : vector<2x128x160xbf16> to vector<256x160xbf16>
    %c0_2 = arith.constant 0 : index
    %c0_3 = arith.constant 0 : index
    %2 = vector.load %arg2[%c0_2, %c0_3] : memref<160x256xbf16, #tpu.memory_space<vmem>>, vector<160x256xbf16>
    %cst = arith.constant dense<0.000000e+00> : vector<256x256xf32>
    %3 = tpu.matmul %1, %2, %cst {dimension_numbers = #tpu.dot_dimension_numbers<[1], [0], [0], [1], [0, 0, 1, 1], [], []>} : vector<256x160xbf16>, vector<160x256xbf16>, vector<256x256xf32> -> vector<256x256xf32>
    %c0_4 = arith.constant 0 : index
    %c0_5 = arith.constant 0 : index
    %4 = vector.load %arg3[%c0_4, %c0_5] : memref<1x256xf32, #tpu.memory_space<vmem>>, vector<1x256xf32>
    %5 = vector.broadcast %4 : vector<1x256xf32> to vector<256x256xf32>
    %6 = arith.addf %3, %5 : vector<256x256xf32>
    %cst_6 = arith.constant 0.000000e+00 : f32
    %7 = vector.broadcast %cst_6 : f32 to vector<256x256xf32>
    %8 = arith.maximumf %6, %7 : vector<256x256xf32>
    %9 = vector.extract_strided_slice %8 {offsets = [0, 0], sizes = [128, 256], strides = [1, 1]} : vector<256x256xf32> to vector<128x256xf32>
    %10 = vector.extract_strided_slice %8 {offsets = [128, 0], sizes = [128, 256], strides = [1, 1]} : vector<256x256xf32> to vector<128x256xf32>
    %11 = arith.addf %9, %10 : vector<128x256xf32>
    %cst_7 = arith.constant 5.000000e-01 : f32
    %12 = vector.broadcast %cst_7 : f32 to vector<128x256xf32>
    %13 = arith.mulf %11, %12 : vector<128x256xf32>
    %14 = arith.truncf %13 : vector<128x256xf32> to vector<128x256xbf16>
    %cst_8 = arith.constant 0.000000e+00 : bf16
    %15 = vector.broadcast %cst_8 : bf16 to vector<16x256xbf16>
    %16 = tpu.concatenate %14, %15 in 0 : vector<128x256xbf16>, vector<16x256xbf16> -> vector<144x256xbf16>
    %17 = vector.extract_strided_slice %16 {offsets = [0, 0], sizes = [128, 256], strides = [1, 1]} : vector<144x256xbf16> to vector<128x256xbf16>
    %c0_9 = arith.constant 0 : index
    %c0_10 = arith.constant 0 : index
    %c0_11 = arith.constant 0 : index
    %18 = vector.load %arg4[%c0_9, %c0_10, %c0_11] : memref<5x256x160xbf16, #tpu.memory_space<vmem>>, vector<1x256x160xbf16>
    %19 = vector.shape_cast %18 : vector<1x256x160xbf16> to vector<256x160xbf16>
    %cst_12 = arith.constant dense<0.000000e+00> : vector<128x160xf32>
    %20 = tpu.matmul %17, %19, %cst_12 {dimension_numbers = #tpu.dot_dimension_numbers<[1], [0], [0], [1], [0, 0, 1, 1], [], []>} : vector<128x256xbf16>, vector<256x160xbf16>, vector<128x160xf32> -> vector<128x160xf32>
    %21 = vector.extract_strided_slice %16 {offsets = [1, 0], sizes = [128, 256], strides = [1, 1]} : vector<144x256xbf16> to vector<128x256xbf16>
    %c1 = arith.constant 1 : index
    %c0_13 = arith.constant 0 : index
    %c0_14 = arith.constant 0 : index
    %22 = vector.load %arg4[%c1, %c0_13, %c0_14] : memref<5x256x160xbf16, #tpu.memory_space<vmem>>, vector<1x256x160xbf16>
    %23 = vector.shape_cast %22 : vector<1x256x160xbf16> to vector<256x160xbf16>
    %cst_15 = arith.constant dense<0.000000e+00> : vector<128x160xf32>
    %24 = tpu.matmul %21, %23, %cst_15 {dimension_numbers = #tpu.dot_dimension_numbers<[1], [0], [0], [1], [0, 0, 1, 1], [], []>} : vector<128x256xbf16>, vector<256x160xbf16>, vector<128x160xf32> -> vector<128x160xf32>
    %25 = arith.addf %20, %24 : vector<128x160xf32>
    %26 = vector.extract_strided_slice %16 {offsets = [2, 0], sizes = [128, 256], strides = [1, 1]} : vector<144x256xbf16> to vector<128x256xbf16>
    %c2 = arith.constant 2 : index
    %c0_16 = arith.constant 0 : index
    %c0_17 = arith.constant 0 : index
    %27 = vector.load %arg4[%c2, %c0_16, %c0_17] : memref<5x256x160xbf16, #tpu.memory_space<vmem>>, vector<1x256x160xbf16>
    %28 = vector.shape_cast %27 : vector<1x256x160xbf16> to vector<256x160xbf16>
    %cst_18 = arith.constant dense<0.000000e+00> : vector<128x160xf32>
    %29 = tpu.matmul %26, %28, %cst_18 {dimension_numbers = #tpu.dot_dimension_numbers<[1], [0], [0], [1], [0, 0, 1, 1], [], []>} : vector<128x256xbf16>, vector<256x160xbf16>, vector<128x160xf32> -> vector<128x160xf32>
    %30 = arith.addf %25, %29 : vector<128x160xf32>
    %31 = vector.extract_strided_slice %16 {offsets = [3, 0], sizes = [128, 256], strides = [1, 1]} : vector<144x256xbf16> to vector<128x256xbf16>
    %c3 = arith.constant 3 : index
    %c0_19 = arith.constant 0 : index
    %c0_20 = arith.constant 0 : index
    %32 = vector.load %arg4[%c3, %c0_19, %c0_20] : memref<5x256x160xbf16, #tpu.memory_space<vmem>>, vector<1x256x160xbf16>
    %33 = vector.shape_cast %32 : vector<1x256x160xbf16> to vector<256x160xbf16>
    %cst_21 = arith.constant dense<0.000000e+00> : vector<128x160xf32>
    %34 = tpu.matmul %31, %33, %cst_21 {dimension_numbers = #tpu.dot_dimension_numbers<[1], [0], [0], [1], [0, 0, 1, 1], [], []>} : vector<128x256xbf16>, vector<256x160xbf16>, vector<128x160xf32> -> vector<128x160xf32>
    %35 = arith.addf %30, %34 : vector<128x160xf32>
    %36 = vector.extract_strided_slice %16 {offsets = [4, 0], sizes = [128, 256], strides = [1, 1]} : vector<144x256xbf16> to vector<128x256xbf16>
    %c4 = arith.constant 4 : index
    %c0_22 = arith.constant 0 : index
    %c0_23 = arith.constant 0 : index
    %37 = vector.load %arg4[%c4, %c0_22, %c0_23] : memref<5x256x160xbf16, #tpu.memory_space<vmem>>, vector<1x256x160xbf16>
    %38 = vector.shape_cast %37 : vector<1x256x160xbf16> to vector<256x160xbf16>
    %cst_24 = arith.constant dense<0.000000e+00> : vector<128x160xf32>
    %39 = tpu.matmul %36, %38, %cst_24 {dimension_numbers = #tpu.dot_dimension_numbers<[1], [0], [0], [1], [0, 0, 1, 1], [], []>} : vector<128x256xbf16>, vector<256x160xbf16>, vector<128x160xf32> -> vector<128x160xf32>
    %40 = arith.addf %35, %39 : vector<128x160xf32>
    %c0_25 = arith.constant 0 : index
    %c0_26 = arith.constant 0 : index
    %41 = vector.load %arg5[%c0_25, %c0_26] : memref<1x160xf32, #tpu.memory_space<vmem>>, vector<1x160xf32>
    %42 = vector.broadcast %41 : vector<1x160xf32> to vector<128x160xf32>
    %43 = arith.addf %40, %42 : vector<128x160xf32>
    %cst_27 = arith.constant 0.000000e+00 : f32
    %44 = vector.broadcast %cst_27 : f32 to vector<128x160xf32>
    %45 = arith.maximumf %43, %44 : vector<128x160xf32>
    %46 = vector.shape_cast %45 : vector<128x160xf32> to vector<8x16x160xf32>
    %47 = vector.extract_strided_slice %46 {offsets = [0, 0, 0], sizes = [8, 1, 160], strides = [1, 1, 1]} : vector<8x16x160xf32> to vector<8x1x160xf32>
    %48 = vector.shape_cast %47 : vector<8x1x160xf32> to vector<8x160xf32>
    %49 = arith.truncf %48 : vector<8x160xf32> to vector<8x160xbf16>
    %c0_28 = arith.constant 0 : index
    %c0_29 = arith.constant 0 : index
    %c0_30 = arith.constant 0 : index
    %50 = vector.load %arg6[%c0_28, %c0_29, %c0_30] : memref<10x160x128xbf16, #tpu.memory_space<vmem>>, vector<1x160x128xbf16>
    %51 = vector.shape_cast %50 : vector<1x160x128xbf16> to vector<160x128xbf16>
    %cst_31 = arith.constant dense<0.000000e+00> : vector<8x128xf32>
    %52 = tpu.matmul %49, %51, %cst_31 {dimension_numbers = #tpu.dot_dimension_numbers<[1], [0], [0], [1], [0, 0, 1, 1], [], []>} : vector<8x160xbf16>, vector<160x128xbf16>, vector<8x128xf32> -> vector<8x128xf32>
    %53 = vector.extract_strided_slice %46 {offsets = [0, 1, 0], sizes = [8, 1, 160], strides = [1, 1, 1]} : vector<8x16x160xf32> to vector<8x1x160xf32>
    %54 = vector.shape_cast %53 : vector<8x1x160xf32> to vector<8x160xf32>
    %55 = arith.truncf %54 : vector<8x160xf32> to vector<8x160xbf16>
    %c1_32 = arith.constant 1 : index
    %c0_33 = arith.constant 0 : index
    %c0_34 = arith.constant 0 : index
    %56 = vector.load %arg6[%c1_32, %c0_33, %c0_34] : memref<10x160x128xbf16, #tpu.memory_space<vmem>>, vector<1x160x128xbf16>
    %57 = vector.shape_cast %56 : vector<1x160x128xbf16> to vector<160x128xbf16>
    %cst_35 = arith.constant dense<0.000000e+00> : vector<8x128xf32>
    %58 = tpu.matmul %55, %57, %cst_35 {dimension_numbers = #tpu.dot_dimension_numbers<[1], [0], [0], [1], [0, 0, 1, 1], [], []>} : vector<8x160xbf16>, vector<160x128xbf16>, vector<8x128xf32> -> vector<8x128xf32>
    %59 = arith.addf %52, %58 : vector<8x128xf32>
    %60 = vector.extract_strided_slice %46 {offsets = [0, 2, 0], sizes = [8, 1, 160], strides = [1, 1, 1]} : vector<8x16x160xf32> to vector<8x1x160xf32>
    %61 = vector.shape_cast %60 : vector<8x1x160xf32> to vector<8x160xf32>
    %62 = arith.truncf %61 : vector<8x160xf32> to vector<8x160xbf16>
    %c2_36 = arith.constant 2 : index
    %c0_37 = arith.constant 0 : index
    %c0_38 = arith.constant 0 : index
    %63 = vector.load %arg6[%c2_36, %c0_37, %c0_38] : memref<10x160x128xbf16, #tpu.memory_space<vmem>>, vector<1x160x128xbf16>
    %64 = vector.shape_cast %63 : vector<1x160x128xbf16> to vector<160x128xbf16>
    %cst_39 = arith.constant dense<0.000000e+00> : vector<8x128xf32>
    %65 = tpu.matmul %62, %64, %cst_39 {dimension_numbers = #tpu.dot_dimension_numbers<[1], [0], [0], [1], [0, 0, 1, 1], [], []>} : vector<8x160xbf16>, vector<160x128xbf16>, vector<8x128xf32> -> vector<8x128xf32>
    %66 = arith.addf %59, %65 : vector<8x128xf32>
    %67 = vector.extract_strided_slice %46 {offsets = [0, 3, 0], sizes = [8, 1, 160], strides = [1, 1, 1]} : vector<8x16x160xf32> to vector<8x1x160xf32>
    %68 = vector.shape_cast %67 : vector<8x1x160xf32> to vector<8x160xf32>
    %69 = arith.truncf %68 : vector<8x160xf32> to vector<8x160xbf16>
    %c3_40 = arith.constant 3 : index
    %c0_41 = arith.constant 0 : index
    %c0_42 = arith.constant 0 : index
    %70 = vector.load %arg6[%c3_40, %c0_41, %c0_42] : memref<10x160x128xbf16, #tpu.memory_space<vmem>>, vector<1x160x128xbf16>
    %71 = vector.shape_cast %70 : vector<1x160x128xbf16> to vector<160x128xbf16>
    %cst_43 = arith.constant dense<0.000000e+00> : vector<8x128xf32>
    %72 = tpu.matmul %69, %71, %cst_43 {dimension_numbers = #tpu.dot_dimension_numbers<[1], [0], [0], [1], [0, 0, 1, 1], [], []>} : vector<8x160xbf16>, vector<160x128xbf16>, vector<8x128xf32> -> vector<8x128xf32>
    %73 = arith.addf %66, %72 : vector<8x128xf32>
    %74 = vector.extract_strided_slice %46 {offsets = [0, 4, 0], sizes = [8, 1, 160], strides = [1, 1, 1]} : vector<8x16x160xf32> to vector<8x1x160xf32>
    %75 = vector.shape_cast %74 : vector<8x1x160xf32> to vector<8x160xf32>
    %76 = arith.truncf %75 : vector<8x160xf32> to vector<8x160xbf16>
    %c4_44 = arith.constant 4 : index
    %c0_45 = arith.constant 0 : index
    %c0_46 = arith.constant 0 : index
    %77 = vector.load %arg6[%c4_44, %c0_45, %c0_46] : memref<10x160x128xbf16, #tpu.memory_space<vmem>>, vector<1x160x128xbf16>
    %78 = vector.shape_cast %77 : vector<1x160x128xbf16> to vector<160x128xbf16>
    %cst_47 = arith.constant dense<0.000000e+00> : vector<8x128xf32>
    %79 = tpu.matmul %76, %78, %cst_47 {dimension_numbers = #tpu.dot_dimension_numbers<[1], [0], [0], [1], [0, 0, 1, 1], [], []>} : vector<8x160xbf16>, vector<160x128xbf16>, vector<8x128xf32> -> vector<8x128xf32>
    %80 = arith.addf %73, %79 : vector<8x128xf32>
    %81 = vector.extract_strided_slice %46 {offsets = [0, 5, 0], sizes = [8, 1, 160], strides = [1, 1, 1]} : vector<8x16x160xf32> to vector<8x1x160xf32>
    %82 = vector.shape_cast %81 : vector<8x1x160xf32> to vector<8x160xf32>
    %83 = arith.truncf %82 : vector<8x160xf32> to vector<8x160xbf16>
    %c5 = arith.constant 5 : index
    %c0_48 = arith.constant 0 : index
    %c0_49 = arith.constant 0 : index
    %84 = vector.load %arg6[%c5, %c0_48, %c0_49] : memref<10x160x128xbf16, #tpu.memory_space<vmem>>, vector<1x160x128xbf16>
    %85 = vector.shape_cast %84 : vector<1x160x128xbf16> to vector<160x128xbf16>
    %cst_50 = arith.constant dense<0.000000e+00> : vector<8x128xf32>
    %86 = tpu.matmul %83, %85, %cst_50 {dimension_numbers = #tpu.dot_dimension_numbers<[1], [0], [0], [1], [0, 0, 1, 1], [], []>} : vector<8x160xbf16>, vector<160x128xbf16>, vector<8x128xf32> -> vector<8x128xf32>
    %87 = arith.addf %80, %86 : vector<8x128xf32>
    %88 = vector.extract_strided_slice %46 {offsets = [0, 6, 0], sizes = [8, 1, 160], strides = [1, 1, 1]} : vector<8x16x160xf32> to vector<8x1x160xf32>
    %89 = vector.shape_cast %88 : vector<8x1x160xf32> to vector<8x160xf32>
    %90 = arith.truncf %89 : vector<8x160xf32> to vector<8x160xbf16>
    %c6 = arith.constant 6 : index
    %c0_51 = arith.constant 0 : index
    %c0_52 = arith.constant 0 : index
    %91 = vector.load %arg6[%c6, %c0_51, %c0_52] : memref<10x160x128xbf16, #tpu.memory_space<vmem>>, vector<1x160x128xbf16>
    %92 = vector.shape_cast %91 : vector<1x160x128xbf16> to vector<160x128xbf16>
    %cst_53 = arith.constant dense<0.000000e+00> : vector<8x128xf32>
    %93 = tpu.matmul %90, %92, %cst_53 {dimension_numbers = #tpu.dot_dimension_numbers<[1], [0], [0], [1], [0, 0, 1, 1], [], []>} : vector<8x160xbf16>, vector<160x128xbf16>, vector<8x128xf32> -> vector<8x128xf32>
    %94 = arith.addf %87, %93 : vector<8x128xf32>
    %95 = vector.extract_strided_slice %46 {offsets = [0, 7, 0], sizes = [8, 1, 160], strides = [1, 1, 1]} : vector<8x16x160xf32> to vector<8x1x160xf32>
    %96 = vector.shape_cast %95 : vector<8x1x160xf32> to vector<8x160xf32>
    %97 = arith.truncf %96 : vector<8x160xf32> to vector<8x160xbf16>
    %c7 = arith.constant 7 : index
    %c0_54 = arith.constant 0 : index
    %c0_55 = arith.constant 0 : index
    %98 = vector.load %arg6[%c7, %c0_54, %c0_55] : memref<10x160x128xbf16, #tpu.memory_space<vmem>>, vector<1x160x128xbf16>
    %99 = vector.shape_cast %98 : vector<1x160x128xbf16> to vector<160x128xbf16>
    %cst_56 = arith.constant dense<0.000000e+00> : vector<8x128xf32>
    %100 = tpu.matmul %97, %99, %cst_56 {dimension_numbers = #tpu.dot_dimension_numbers<[1], [0], [0], [1], [0, 0, 1, 1], [], []>} : vector<8x160xbf16>, vector<160x128xbf16>, vector<8x128xf32> -> vector<8x128xf32>
    %101 = arith.addf %94, %100 : vector<8x128xf32>
    %102 = vector.extract_strided_slice %46 {offsets = [0, 8, 0], sizes = [8, 1, 160], strides = [1, 1, 1]} : vector<8x16x160xf32> to vector<8x1x160xf32>
    %103 = vector.shape_cast %102 : vector<8x1x160xf32> to vector<8x160xf32>
    %104 = arith.truncf %103 : vector<8x160xf32> to vector<8x160xbf16>
    %c8 = arith.constant 8 : index
    %c0_57 = arith.constant 0 : index
    %c0_58 = arith.constant 0 : index
    %105 = vector.load %arg6[%c8, %c0_57, %c0_58] : memref<10x160x128xbf16, #tpu.memory_space<vmem>>, vector<1x160x128xbf16>
    %106 = vector.shape_cast %105 : vector<1x160x128xbf16> to vector<160x128xbf16>
    %cst_59 = arith.constant dense<0.000000e+00> : vector<8x128xf32>
    %107 = tpu.matmul %104, %106, %cst_59 {dimension_numbers = #tpu.dot_dimension_numbers<[1], [0], [0], [1], [0, 0, 1, 1], [], []>} : vector<8x160xbf16>, vector<160x128xbf16>, vector<8x128xf32> -> vector<8x128xf32>
    %108 = arith.addf %101, %107 : vector<8x128xf32>
    %109 = vector.extract_strided_slice %46 {offsets = [0, 9, 0], sizes = [8, 1, 160], strides = [1, 1, 1]} : vector<8x16x160xf32> to vector<8x1x160xf32>
    %110 = vector.shape_cast %109 : vector<8x1x160xf32> to vector<8x160xf32>
    %111 = arith.truncf %110 : vector<8x160xf32> to vector<8x160xbf16>
    %c9 = arith.constant 9 : index
    %c0_60 = arith.constant 0 : index
    %c0_61 = arith.constant 0 : index
    %112 = vector.load %arg6[%c9, %c0_60, %c0_61] : memref<10x160x128xbf16, #tpu.memory_space<vmem>>, vector<1x160x128xbf16>
    %113 = vector.shape_cast %112 : vector<1x160x128xbf16> to vector<160x128xbf16>
    %cst_62 = arith.constant dense<0.000000e+00> : vector<8x128xf32>
    %114 = tpu.matmul %111, %113, %cst_62 {dimension_numbers = #tpu.dot_dimension_numbers<[1], [0], [0], [1], [0, 0, 1, 1], [], []>} : vector<8x160xbf16>, vector<160x128xbf16>, vector<8x128xf32> -> vector<8x128xf32>
    %115 = arith.addf %108, %114 : vector<8x128xf32>
    %c0_63 = arith.constant 0 : index
    %c0_64 = arith.constant 0 : index
    %116 = vector.load %arg7[%c0_63, %c0_64] : memref<1x128xf32, #tpu.memory_space<vmem>>, vector<1x128xf32>
    %117 = vector.broadcast %116 : vector<1x128xf32> to vector<8x128xf32>
    %118 = arith.addf %115, %117 : vector<8x128xf32>
    %cst_65 = arith.constant 0.000000e+00 : f32
    %119 = vector.broadcast %cst_65 : f32 to vector<8x128xf32>
    %120 = arith.maximumf %118, %119 : vector<8x128xf32>
    %121 = arith.truncf %120 : vector<8x128xf32> to vector<8x128xbf16>
    %c0_66 = arith.constant 0 : index
    %c0_67 = arith.constant 0 : index
    %122 = vector.load %arg8[%c0_66, %c0_67] : memref<128x128xbf16, #tpu.memory_space<vmem>>, vector<128x128xbf16>
    %cst_68 = arith.constant dense<0.000000e+00> : vector<8x128xf32>
    %123 = tpu.matmul %121, %122, %cst_68 {dimension_numbers = #tpu.dot_dimension_numbers<[1], [0], [0], [1], [0, 0, 1, 1], [], []>} : vector<8x128xbf16>, vector<128x128xbf16>, vector<8x128xf32> -> vector<8x128xf32>
    %c0_69 = arith.constant 0 : index
    %c0_70 = arith.constant 0 : index
    %124 = vector.load %arg9[%c0_69, %c0_70] : memref<1x128xf32, #tpu.memory_space<vmem>>, vector<1x128xf32>
    %125 = vector.broadcast %124 : vector<1x128xf32> to vector<8x128xf32>
    %126 = arith.addf %123, %125 : vector<8x128xf32>
    %cst_71 = arith.constant 0.000000e+00 : f32
    %127 = vector.broadcast %cst_71 : f32 to vector<8x128xf32>
    %128 = arith.maximumf %126, %127 : vector<8x128xf32>
    %129 = arith.truncf %128 : vector<8x128xf32> to vector<8x128xbf16>
    %c0_72 = arith.constant 0 : index
    %c0_73 = arith.constant 0 : index
    %130 = vector.load %arg10[%c0_72, %c0_73] : memref<128x128xbf16, #tpu.memory_space<vmem>>, vector<128x128xbf16>
    %cst_74 = arith.constant dense<0.000000e+00> : vector<8x128xf32>
    %131 = tpu.matmul %129, %130, %cst_74 {dimension_numbers = #tpu.dot_dimension_numbers<[1], [0], [0], [1], [0, 0, 1, 1], [], []>} : vector<8x128xbf16>, vector<128x128xbf16>, vector<8x128xf32> -> vector<8x128xf32>
    %c0_75 = arith.constant 0 : index
    %c0_76 = arith.constant 0 : index
    %132 = vector.load %arg11[%c0_75, %c0_76] : memref<1x128xf32, #tpu.memory_space<vmem>>, vector<1x128xf32>
    %133 = vector.broadcast %132 : vector<1x128xf32> to vector<8x128xf32>
    %134 = arith.addf %131, %133 : vector<8x128xf32>
    %c0_77 = arith.constant 0 : index
    %c0_78 = arith.constant 0 : index
    %135 = vector.load %arg12[%c0_77, %c0_78] : memref<8x128xf32, #tpu.memory_space<vmem>>, vector<8x128xf32>
    tpu.vector_store %arg12[%c0_77, %c0_78], %134 {strides = array<i32>} : memref<8x128xf32, #tpu.memory_space<vmem>>, vector<8x128xf32>,
    return
  }
  func.func @transform_0(%arg0: i32) -> (i32, i32, i32) {
    %c0_i32 = arith.constant 0 : i32
    %c0_i32_0 = arith.constant 0 : i32
    %c0_i32_1 = arith.constant 0 : i32
    return %c0_i32, %arg0, %c0_i32_0 : i32, i32, i32
  }
  func.func @transform_1(%arg0: i32) -> (i32, i32) {
    %c0_i32 = arith.constant 0 : i32
    %c0_i32_0 = arith.constant 0 : i32
    %c0_i32_1 = arith.constant 0 : i32
    return %c0_i32, %c0_i32_0 : i32, i32
  }
  func.func @transform_2(%arg0: i32) -> (i32, i32) {
    %c0_i32 = arith.constant 0 : i32
    %c0_i32_0 = arith.constant 0 : i32
    %c0_i32_1 = arith.constant 0 : i32
    return %c0_i32, %c0_i32_0 : i32, i32
  }
  func.func @transform_3(%arg0: i32) -> (i32, i32, i32) {
    %c0_i32 = arith.constant 0 : i32
    %c0_i32_0 = arith.constant 0 : i32
    %c0_i32_1 = arith.constant 0 : i32
    %c0_i32_2 = arith.constant 0 : i32
    return %c0_i32, %c0_i32_0, %c0_i32_1 : i32, i32, i32
  }
  func.func @transform_4(%arg0: i32) -> (i32, i32) {
    %c0_i32 = arith.constant 0 : i32
    %c0_i32_0 = arith.constant 0 : i32
    %c0_i32_1 = arith.constant 0 : i32
    return %c0_i32, %c0_i32_0 : i32, i32
  }
  func.func @transform_5(%arg0: i32) -> (i32, i32, i32) {
    %c0_i32 = arith.constant 0 : i32
    %c0_i32_0 = arith.constant 0 : i32
    %c0_i32_1 = arith.constant 0 : i32
    %c0_i32_2 = arith.constant 0 : i32
    return %c0_i32, %c0_i32_0, %c0_i32_1 : i32, i32, i32
  }
  func.func @transform_6(%arg0: i32) -> (i32, i32) {
    %c0_i32 = arith.constant 0 : i32
    %c0_i32_0 = arith.constant 0 : i32
    %c0_i32_1 = arith.constant 0 : i32
    return %c0_i32, %c0_i32_0 : i32, i32
  }
  func.func @transform_7(%arg0: i32) -> (i32, i32) {
    %c0_i32 = arith.constant 0 : i32
    %c0_i32_0 = arith.constant 0 : i32
    %c0_i32_1 = arith.constant 0 : i32
    return %c0_i32, %c0_i32_0 : i32, i32
  }
  func.func @transform_8(%arg0: i32) -> (i32, i32) {
    %c0_i32 = arith.constant 0 : i32
    %c0_i32_0 = arith.constant 0 : i32
    %c0_i32_1 = arith.constant 0 : i32
    return %c0_i32, %c0_i32_0 : i32, i32
  }
  func.func @transform_9(%arg0: i32) -> (i32, i32) {
    %c0_i32 = arith.constant 0 : i32
    %c0_i32_0 = arith.constant 0 : i32
    %c0_i32_1 = arith.constant 0 : i32
    return %c0_i32, %c0_i32_0 : i32, i32
  }
  func.func @transform_10(%arg0: i32) -> (i32, i32) {
    %c0_i32 = arith.constant 0 : i32
    %c0_i32_0 = arith.constant 0 : i32
    %c0_i32_1 = arith.constant 0 : i32
    return %c0_i32, %c0_i32_0 : i32, i32
  }
  func.func @transform_11(%arg0: i32) -> (i32, i32) {
    %c0_i32 = arith.constant 0 : i32
    %c0_i32_0 = arith.constant 0 : i32
    return %arg0, %c0_i32 : i32, i32
  }
}

</mosaic_0001>

<llo_original>
// kernel: lenet_forward.1
$region0: #{lenet_forward.1}
  #allocation0 [shape = 'u32[]', space=smem, size = 0x4, offset = 0x4, fixed_abs, tag = 'smem constant byte address 0x4 - core index']
  #allocation1 [shape = 'u32[72,128]{1,0:T(1,128)}', space=vmem, size = 0x9000, scoped, tag = 'internal scratch']
  %s0 = inlined_call_operand.vmem [shape: bf16[2,128,160], index: 0, kind: input, shape index: {}]
  %s1 = inlined_call_operand.vmem [shape: bf16[160,256], index: 1, kind: input, shape index: {}]
  %s2 = inlined_call_operand.vmem [shape: f32[1,256], index: 2, kind: input, shape index: {}]
  %s3 = inlined_call_operand.vmem [shape: bf16[5,256,160], index: 3, kind: input, shape index: {}]
  %s4 = inlined_call_operand.vmem [shape: f32[1,160], index: 4, kind: input, shape index: {}]
  %s5 = inlined_call_operand.vmem [shape: bf16[10,160,128], index: 5, kind: input, shape index: {}]
  %s6 = inlined_call_operand.vmem [shape: f32[1,128], index: 6, kind: input, shape index: {}]
  %s7 = inlined_call_operand.vmem [shape: bf16[128,128], index: 7, kind: input, shape index: {}]
  %s8 = inlined_call_operand.vmem [shape: f32[1,128], index: 8, kind: input, shape index: {}]
  %s9 = inlined_call_operand.vmem [shape: bf16[128,128], index: 9, kind: input, shape index: {}]
  %s10 = inlined_call_operand.vmem [shape: f32[1,128], index: 10, kind: input, shape index: {}]
  %s11 = inlined_call_operand.vmem [shape: f32[8,128], index: 11, kind: output, shape index: {}]
  %s12 = sld [smem:[#allocation0]]
  $region54: #{lenet_forward.1} parent=0
    _
  %s14 = ssub.s32 1, %s12
  %s15 = scalar_select 0, %s14, %s12
  // Predicated region
  $region2: #{lenet_forward.1} parent=0 // pred_check
    _
  $region3: #{lenet_forward.1} parent=0 // pred_check_branch
    %17 = sbr.rel (0) target = $region5
  $region4: #{lenet_forward.1} parent=0 // pred_region
    _
  $region5: #{lenet_forward.1} parent=0 // pred_fallthru
    _
  // Predicated region
  $region6: #{lenet_forward.1} parent=0 // pred_check
    _
  $region7: #{lenet_forward.1} parent=0 // pred_check_branch
    %19 = sbr.rel (0) target = $region9
  $region8: #{lenet_forward.1} parent=0 // pred_region
    _
  $region9: #{lenet_forward.1} parent=0 // pred_fallthru
    _
  // Predicated region
  $region10: #{lenet_forward.1} parent=0 // pred_check
    _
  $region11: #{lenet_forward.1} parent=0 // pred_check_branch
    %21 = sbr.rel (0) target = $region13
  $region12: #{lenet_forward.1} parent=0 // pred_region
    _
  $region13: #{lenet_forward.1} parent=0 // pred_fallthru
    _
  // Predicated region
  $region14: #{lenet_forward.1} parent=0 // pred_check
    _
  $region15: #{lenet_forward.1} parent=0 // pred_check_branch
    %23 = sbr.rel (0) target = $region17
  $region16: #{lenet_forward.1} parent=0 // pred_region
    _
  $region17: #{lenet_forward.1} parent=0 // pred_fallthru
    _
  // Predicated region
  $region18: #{lenet_forward.1} parent=0 // pred_check
    _
  $region19: #{lenet_forward.1} parent=0 // pred_check_branch
    %25 = sbr.rel (0) target = $region21
  $region20: #{lenet_forward.1} parent=0 // pred_region
    _
  $region21: #{lenet_forward.1} parent=0 // pred_fallthru
    _
  // Predicated region
  $region22: #{lenet_forward.1} parent=0 // pred_check
    _
  $region23: #{lenet_forward.1} parent=0 // pred_check_branch
    %27 = sbr.rel (0) target = $region25
  $region24: #{lenet_forward.1} parent=0 // pred_region
    _
  $region25: #{lenet_forward.1} parent=0 // pred_fallthru
    _
  // Predicated region
  $region26: #{lenet_forward.1} parent=0 // pred_check
    _
  $region27: #{lenet_forward.1} parent=0 // pred_check_branch
    %29 = sbr.rel (0) target = $region29
  $region28: #{lenet_forward.1} parent=0 // pred_region
    _
  $region29: #{lenet_forward.1} parent=0 // pred_fallthru
    _
  // Predicated region
  $region30: #{lenet_forward.1} parent=0 // pred_check
    _
  $region31: #{lenet_forward.1} parent=0 // pred_check_branch
    %31 = sbr.rel (0) target = $region33
  $region32: #{lenet_forward.1} parent=0 // pred_region
    _
  $region33: #{lenet_forward.1} parent=0 // pred_fallthru
    _
  // Predicated region
  $region34: #{lenet_forward.1} parent=0 // pred_check
    _
  $region35: #{lenet_forward.1} parent=0 // pred_check_branch
    %33 = sbr.rel (0) target = $region37
  $region36: #{lenet_forward.1} parent=0 // pred_region
    _
  $region37: #{lenet_forward.1} parent=0 // pred_fallthru
    _
  // Predicated region
  $region38: #{lenet_forward.1} parent=0 // pred_check
    _
  $region39: #{lenet_forward.1} parent=0 // pred_check_branch
    %35 = sbr.rel (0) target = $region41
  $region40: #{lenet_forward.1} parent=0 // pred_region
    _
  $region41: #{lenet_forward.1} parent=0 // pred_fallthru
    _
  // Predicated region
  $region42: #{lenet_forward.1} parent=0 // pred_check
    _
  $region43: #{lenet_forward.1} parent=0 // pred_check_branch
    %37 = sbr.rel (0) target = $region45
  $region44: #{lenet_forward.1} parent=0 // pred_region
    _
  $region45: #{lenet_forward.1} parent=0 // pred_fallthru
    _
  %v39 = vld [vmem:[%s0] sm:$0xff]
  %v40 = vld [vmem:[%s0 + $0x8] sm:$0xff]
  %v41 = vld [vmem:[%s0 + $0x10] sm:$0xff]
  %v42 = vld [vmem:[%s0 + $0x18] sm:$0xff]
  %v43 = vld [vmem:[%s0 + $0x20] sm:$0xff]
  %v44 = vld [vmem:[%s0 + $0x28] sm:$0xff]
  %v45 = vld [vmem:[%s0 + $0x30] sm:$0xff]
  %v46 = vld [vmem:[%s0 + $0x38] sm:$0xff]
  %v47 = vld [vmem:[%s0 + $0x40] sm:$0xff]
  %v48 = vld [vmem:[%s0 + $0x48] sm:$0xff]
  %v49 = vld [vmem:[%s0 + $0x50] sm:$0xff]
  %v50 = vld [vmem:[%s0 + $0x58] sm:$0xff]
  %v51 = vld [vmem:[%s0 + $0x60] sm:$0xff]
  %v52 = vld [vmem:[%s0 + $0x68] sm:$0xff]
  %v53 = vld [vmem:[%s0 + $0x70] sm:$0xff]
  %v54 = vld [vmem:[%s0 + $0x78] sm:$0xff]
  %v55 = vld [vmem:[%s0 + $0x80] sm:$0xff]
  %v56 = vld [vmem:[%s0 + $0x88] sm:$0xff]
  %v57 = vld [vmem:[%s0 + $0x90] sm:$0xff]
  %v58 = vld [vmem:[%s0 + $0x98] sm:$0xff]
  %v59 = vld [vmem:[%s0 + $0xa0] sm:$0xff]
  %v60 = vld [vmem:[%s0 + $0xa8] sm:$0xff]
  %v61 = vld [vmem:[%s0 + $0xb0] sm:$0xff]
  %v62 = vld [vmem:[%s0 + $0xb8] sm:$0xff]
  %v63 = vld [vmem:[%s0 + $0xc0] sm:$0xff]
  %v64 = vld [vmem:[%s0 + $0xc8] sm:$0xff]
  %v65 = vld [vmem:[%s0 + $0xd0] sm:$0xff]
  %v66 = vld [vmem:[%s0 + $0xd8] sm:$0xff]
  %v67 = vld [vmem:[%s0 + $0xe0] sm:$0xff]
  %v68 = vld [vmem:[%s0 + $0xe8] sm:$0xff]
  %v69 = vld [vmem:[%s0 + $0xf0] sm:$0xff]
  %v70 = vld [vmem:[%s0 + $0xf8] sm:$0xff]
  %v71 = vld [vmem:[%s1] sm:$0xff]
  %v72 = vld [vmem:[%s1 + $0x8] sm:$0xff]
  %v73 = vld [vmem:[%s1 + $0x10] sm:$0xff]
  %v74 = vld [vmem:[%s1 + $0x18] sm:$0xff]
  %v75 = vld [vmem:[%s1 + $0x20] sm:$0xff]
  %v76 = vld [vmem:[%s1 + $0x28] sm:$0xff]
  %v77 = vld [vmem:[%s1 + $0x30] sm:$0xff]
  %v78 = vld [vmem:[%s1 + $0x38] sm:$0xff]
  %v79 = vld [vmem:[%s1 + $0x40] sm:$0xff]
  %v80 = vld [vmem:[%s1 + $0x48] sm:$0xff]
  %v81 = vld [vmem:[%s1 + $0x50] sm:$0xff]
  %v82 = vld [vmem:[%s1 + $0x58] sm:$0xff]
  %v83 = vld [vmem:[%s1 + $0x60] sm:$0xff]
  %v84 = vld [vmem:[%s1 + $0x68] sm:$0xff]
  %v85 = vld [vmem:[%s1 + $0x70] sm:$0xff]
  %v86 = vld [vmem:[%s1 + $0x78] sm:$0xff]
  %v87 = vld [vmem:[%s1 + $0x80] sm:$0xff]
  %v88 = vld [vmem:[%s1 + $0x88] sm:$0xff]
  %v89 = vld [vmem:[%s1 + $0x90] sm:$0xff]
  %v90 = vld [vmem:[%s1 + $0x98] sm:$0xff]
  %v91 = vld [vmem:[%s2] sm:$0x3]
  %v93 = vperm.slane %v91, 0
  %v94 = vperm.slane %v91, 1
  %v129 = vunpack.c.l.b16 %v39
  %v130 = vunpack.c.h.b16 %v39
  %v131 = vunpack.c.l.b16 %v40
  %v132 = vunpack.c.h.b16 %v40
  %v133 = vunpack.c.l.b16 %v41
  %v134 = vunpack.c.h.b16 %v41
  %v135 = vunpack.c.l.b16 %v42
  %v136 = vunpack.c.h.b16 %v42
  %v137 = vunpack.c.l.b16 %v43
  %v138 = vunpack.c.h.b16 %v43
  %v139 = vunpack.c.l.b16 %v44
  %v140 = vunpack.c.h.b16 %v44
  %v141 = vunpack.c.l.b16 %v45
  %v142 = vunpack.c.h.b16 %v45
  %v143 = vunpack.c.l.b16 %v46
  %v144 = vunpack.c.h.b16 %v46
  %v145 = vunpack.c.l.b16 %v47
  %v146 = vunpack.c.h.b16 %v47
  %v147 = vunpack.c.l.b16 %v48
  %v148 = vunpack.c.h.b16 %v48
  %v149 = vunpack.c.l.b16 %v49
  %v150 = vunpack.c.h.b16 %v49
  %v151 = vunpack.c.l.b16 %v50
  %v152 = vunpack.c.h.b16 %v50
  %v153 = vunpack.c.l.b16 %v51
  %v154 = vunpack.c.h.b16 %v51
  %v155 = vunpack.c.l.b16 %v52
  %v156 = vunpack.c.h.b16 %v52
  %v157 = vunpack.c.l.b16 %v53
  %v158 = vunpack.c.h.b16 %v53
  %v159 = vunpack.c.l.b16 %v54
  %v160 = vunpack.c.h.b16 %v54
  %v161 = vunpack.c.l.b16 %v55
  %v162 = vunpack.c.h.b16 %v55
  %v163 = vunpack.c.l.b16 %v56
  %v164 = vunpack.c.h.b16 %v56
  %v165 = vunpack.c.l.b16 %v57
  %v166 = vunpack.c.h.b16 %v57
  %v167 = vunpack.c.l.b16 %v58
  %v168 = vunpack.c.h.b16 %v58
  %v169 = vunpack.c.l.b16 %v59
  %v170 = vunpack.c.h.b16 %v59
  %v171 = vunpack.c.l.b16 %v60
  %v172 = vunpack.c.h.b16 %v60
  %v173 = vunpack.c.l.b16 %v61
  %v174 = vunpack.c.h.b16 %v61
  %v175 = vunpack.c.l.b16 %v62
  %v176 = vunpack.c.h.b16 %v62
  %v177 = vunpack.c.l.b16 %v63
  %v178 = vunpack.c.h.b16 %v63
  %v179 = vunpack.c.l.b16 %v64
  %v180 = vunpack.c.h.b16 %v64
  %v181 = vunpack.c.l.b16 %v65
  %v182 = vunpack.c.h.b16 %v65
  %v183 = vunpack.c.l.b16 %v66
  %v184 = vunpack.c.h.b16 %v66
  %v185 = vunpack.c.l.b16 %v67
  %v186 = vunpack.c.h.b16 %v67
  %v187 = vunpack.c.l.b16 %v68
  %v188 = vunpack.c.h.b16 %v68
  %v189 = vunpack.c.l.b16 %v69
  %v190 = vunpack.c.h.b16 %v69
  %v191 = vunpack.c.l.b16 %v70
  %v192 = vunpack.c.h.b16 %v70
  %v193 = vpack.c.b16 %v131, %v129
  %v194 = vpack.c.b16 %v132, %v130
  %v195 = vpack.c.b16 %v135, %v133
  %v196 = vpack.c.b16 %v136, %v134
  %v197 = vpack.c.b16 %v139, %v137
  %v198 = vpack.c.b16 %v140, %v138
  %v199 = vpack.c.b16 %v143, %v141
  %v200 = vpack.c.b16 %v144, %v142
  %v201 = vpack.c.b16 %v147, %v145
  %v202 = vpack.c.b16 %v148, %v146
  %v203 = vpack.c.b16 %v151, %v149
  %v204 = vpack.c.b16 %v152, %v150
  %v205 = vpack.c.b16 %v155, %v153
  %v206 = vpack.c.b16 %v156, %v154
  %v207 = vpack.c.b16 %v159, %v157
  %v208 = vpack.c.b16 %v160, %v158
  %v209 = vpack.c.b16 %v163, %v161
  %v210 = vpack.c.b16 %v164, %v162
  %v211 = vpack.c.b16 %v167, %v165
  %v212 = vpack.c.b16 %v168, %v166
  %v213 = vpack.c.b16 %v171, %v169
  %v214 = vpack.c.b16 %v172, %v170
  %v215 = vpack.c.b16 %v175, %v173
  %v216 = vpack.c.b16 %v176, %v174
  %v217 = vpack.c.b16 %v179, %v177
  %v218 = vpack.c.b16 %v180, %v178
  %v219 = vpack.c.b16 %v183, %v181
  %v220 = vpack.c.b16 %v184, %v182
  %v221 = vpack.c.b16 %v187, %v185
  %v222 = vpack.c.b16 %v188, %v186
  %v223 = vpack.c.b16 %v191, %v189
  %v224 = vpack.c.b16 %v192, %v190
  %v261 = vunpack.c.l.b16 %v71
  %v262 = vunpack.c.h.b16 %v71
  %v263 = vunpack.c.l.b16 %v72
  %v264 = vunpack.c.h.b16 %v72
  %v265 = vunpack.c.l.b16 %v73
  %v266 = vunpack.c.h.b16 %v73
  %v267 = vunpack.c.l.b16 %v74
  %v268 = vunpack.c.h.b16 %v74
  %v269 = vunpack.c.l.b16 %v75
  %v270 = vunpack.c.h.b16 %v75
  %v271 = vunpack.c.l.b16 %v76
  %v272 = vunpack.c.h.b16 %v76
  %v273 = vunpack.c.l.b16 %v77
  %v274 = vunpack.c.h.b16 %v77
  %v275 = vunpack.c.l.b16 %v78
  %v276 = vunpack.c.h.b16 %v78
  %v277 = vunpack.c.l.b16 %v79
  %v278 = vunpack.c.h.b16 %v79
  %v279 = vunpack.c.l.b16 %v80
  %v280 = vunpack.c.h.b16 %v80
  %v281 = vunpack.c.l.b16 %v81
  %v282 = vunpack.c.h.b16 %v81
  %v283 = vunpack.c.l.b16 %v82
  %v284 = vunpack.c.h.b16 %v82
  %v285 = vunpack.c.l.b16 %v83
  %v286 = vunpack.c.h.b16 %v83
  %v287 = vunpack.c.l.b16 %v84
  %v288 = vunpack.c.h.b16 %v84
  %v289 = vunpack.c.l.b16 %v85
  %v290 = vunpack.c.h.b16 %v85
  %v291 = vunpack.c.l.b16 %v86
  %v292 = vunpack.c.h.b16 %v86
  %v293 = vunpack.c.l.b16 %v87
  %v294 = vunpack.c.h.b16 %v87
  %v295 = vunpack.c.l.b16 %v88
  %v296 = vunpack.c.h.b16 %v88
  %v297 = vunpack.c.l.b16 %v89
  %v298 = vunpack.c.h.b16 %v89
  %v299 = vunpack.c.l.b16 %v90
  %v300 = vunpack.c.h.b16 %v90
  %v301 = vpack.c.b16 %v263, %v261
  %v302 = vpack.c.b16 %v264, %v262
  %v303 = vpack.c.b16 %v267, %v265
  %v304 = vpack.c.b16 %v268, %v266
  %v305 = vpack.c.b16 %v271, %v269
  %v306 = vpack.c.b16 %v272, %v270
  %v307 = vpack.c.b16 %v275, %v273
  %v308 = vpack.c.b16 %v276, %v274
  %v309 = vpack.c.b16 %v279, %v277
  %v310 = vpack.c.b16 %v280, %v278
  %v311 = vpack.c.b16 %v283, %v281
  %v312 = vpack.c.b16 %v284, %v282
  %v313 = vpack.c.b16 %v287, %v285
  %v314 = vpack.c.b16 %v288, %v286
  %v315 = vpack.c.b16 %v291, %v289
  %v316 = vpack.c.b16 %v292, %v290
  %v317 = vpack.c.b16 %v295, %v293
  %v318 = vpack.c.b16 %v296, %v294
  %v319 = vpack.c.b16 %v299, %v297
  %v320 = vpack.c.b16 %v300, %v298
  %vm341 = vcmask 261120
  %v343 = vsel %vm341, %v194, 0
  %v346 = vsel %vm341, %v196, 0
  %v349 = vsel %vm341, %v198, 0
  %v352 = vsel %vm341, %v200, 0
  %v355 = vsel %vm341, %v202, 0
  %v358 = vsel %vm341, %v204, 0
  %v361 = vsel %vm341, %v206, 0
  %v364 = vsel %vm341, %v208, 0
  %v367 = vsel %vm341, %v210, 0
  %v370 = vsel %vm341, %v212, 0
  %v373 = vsel %vm341, %v214, 0
  %v376 = vsel %vm341, %v216, 0
  %v379 = vsel %vm341, %v218, 0
  %v382 = vsel %vm341, %v220, 0
  %v385 = vsel %vm341, %v222, 0
  %v388 = vsel %vm341, %v224, 0
  %390 = vmatpush.bf16.msra.mxu0 %v315
  %391 = vmatpush.bf16.msra.mxu0 %v313
  %392 = vmatpush.bf16.msra.mxu0 %v311
  %393 = vmatpush.bf16.msra.mxu0 %v309
  %394 = vmatpush.bf16.msra.mxu0 %v307
  %395 = vmatpush.bf16.msra.mxu0 %v305
  %396 = vmatpush.bf16.msra.mxu0 %v303
  %397 = vmatpush.bf16.msra.mxu0 %v301
  %398 = vmatmul.bf16.gmra.mxu0 %v193
  %v399 = vpop.f32.mrf.mxu0
  %v400 = vadd.f32 %v93, %v399
  %v401 = vpop.f32.mrf.mxu0
  %v402 = vadd.f32 %v93, %v401
  %403 = vmatmul.bf16.gmra.mxu0 %v195
  %v404 = vpop.f32.mrf.mxu0
  %v405 = vadd.f32 %v93, %v404
  %v406 = vpop.f32.mrf.mxu0
  %v407 = vadd.f32 %v93, %v406
  %408 = vmatmul.bf16.gmra.mxu0 %v197
  %v409 = vpop.f32.mrf.mxu0
  %v410 = vadd.f32 %v93, %v409
  %v411 = vpop.f32.mrf.mxu0
  %v412 = vadd.f32 %v93, %v411
  %413 = vmatmul.bf16.gmra.mxu0 %v199
  %v414 = vpop.f32.mrf.mxu0
  %v415 = vadd.f32 %v93, %v414
  %v416 = vpop.f32.mrf.mxu0
  %v417 = vadd.f32 %v93, %v416
  %418 = vmatmul.bf16.gmra.mxu0 %v201
  %v419 = vpop.f32.mrf.mxu0
  %v420 = vadd.f32 %v93, %v419
  %v421 = vpop.f32.mrf.mxu0
  %v422 = vadd.f32 %v93, %v421
  %423 = vmatmul.bf16.gmra.mxu0 %v203
  %v424 = vpop.f32.mrf.mxu0
  %v425 = vadd.f32 %v93, %v424
  %v426 = vpop.f32.mrf.mxu0
  %v427 = vadd.f32 %v93, %v426
  %428 = vmatmul.bf16.gmra.mxu0 %v205
  %v429 = vpop.f32.mrf.mxu0
  %v430 = vadd.f32 %v93, %v429
  %v431 = vpop.f32.mrf.mxu0
  %v432 = vadd.f32 %v93, %v431
  %433 = vmatmul.bf16.gmra.mxu0 %v207
  %v434 = vpop.f32.mrf.mxu0
  %v435 = vadd.f32 %v93, %v434
  %v436 = vpop.f32.mrf.mxu0
  %v437 = vadd.f32 %v93, %v436
  %438 = vmatmul.bf16.gmra.mxu0 %v209
  %v439 = vpop.f32.mrf.mxu0
  %v440 = vadd.f32 %v93, %v439
  %v441 = vpop.f32.mrf.mxu0
  %v442 = vadd.f32 %v93, %v441
  %443 = vmatmul.bf16.gmra.mxu0 %v211
  %v444 = vpop.f32.mrf.mxu0
  %v445 = vadd.f32 %v93, %v444
  %v446 = vpop.f32.mrf.mxu0
  %v447 = vadd.f32 %v93, %v446
  %448 = vmatmul.bf16.gmra.mxu0 %v213
  %v449 = vpop.f32.mrf.mxu0
  %v450 = vadd.f32 %v93, %v449
  %v451 = vpop.f32.mrf.mxu0
  %v452 = vadd.f32 %v93, %v451
  %453 = vmatmul.bf16.gmra.mxu0 %v215
  %v454 = vpop.f32.mrf.mxu0
  %v455 = vadd.f32 %v93, %v454
  %v456 = vpop.f32.mrf.mxu0
  %v457 = vadd.f32 %v93, %v456
  %458 = vmatmul.bf16.gmra.mxu0 %v217
  %v459 = vpop.f32.mrf.mxu0
  %v460 = vadd.f32 %v93, %v459
  %v461 = vpop.f32.mrf.mxu0
  %v462 = vadd.f32 %v93, %v461
  %463 = vmatmul.bf16.gmra.mxu0 %v219
  %v464 = vpop.f32.mrf.mxu0
  %v465 = vadd.f32 %v93, %v464
  %v466 = vpop.f32.mrf.mxu0
  %v467 = vadd.f32 %v93, %v466
  %468 = vmatmul.bf16.gmra.mxu0 %v221
  %v469 = vpop.f32.mrf.mxu0
  %v470 = vadd.f32 %v93, %v469
  %v471 = vpop.f32.mrf.mxu0
  %v472 = vadd.f32 %v93, %v471
  %473 = vmatmul.bf16.gmra.mxu0 %v223
  %v474 = vpop.f32.mrf.mxu0
  %v475 = vadd.f32 %v93, %v474
  %v476 = vpop.f32.mrf.mxu0
  %v477 = vadd.f32 %v93, %v476
  %478 = vdwg.mxu0
  %479 = vmatpush.bf16.msra.mxu0 0
  %480 = vmatpush.bf16.msra.mxu0 0
  %481 = vmatpush.bf16.msra.mxu0 0
  %482 = vmatpush.bf16.msra.mxu0 0
  %483 = vmatpush.bf16.msra.mxu0 0
  %484 = vmatpush.bf16.msra.mxu0 0
  %485 = vmatpush.bf16.msra.mxu0 %v319
  %486 = vmatpush.bf16.msra.mxu0 %v317
  %487 = vmatmul.bf16.gmra.mxu0 %v343
  %v488 = vpop.f32.mrf.mxu0
  %v489 = vadd.f32 %v400, %v488
  %v490 = vpop.f32.mrf.mxu0
  %v491 = vadd.f32 %v402, %v490
  %492 = vmatmul.bf16.gmra.mxu0 %v346
  %v493 = vpop.f32.mrf.mxu0
  %v494 = vadd.f32 %v405, %v493
  %v495 = vpop.f32.mrf.mxu0
  %v496 = vadd.f32 %v407, %v495
  %497 = vmatmul.bf16.gmra.mxu0 %v349
  %v498 = vpop.f32.mrf.mxu0
  %v499 = vadd.f32 %v410, %v498
  %v500 = vpop.f32.mrf.mxu0
  %v501 = vadd.f32 %v412, %v500
  %502 = vmatmul.bf16.gmra.mxu0 %v352
  %v503 = vpop.f32.mrf.mxu0
  %v504 = vadd.f32 %v415, %v503
  %v505 = vpop.f32.mrf.mxu0
  %v506 = vadd.f32 %v417, %v505
  %507 = vmatmul.bf16.gmra.mxu0 %v355
  %v508 = vpop.f32.mrf.mxu0
  %v509 = vadd.f32 %v420, %v508
  %v510 = vpop.f32.mrf.mxu0
  %v511 = vadd.f32 %v422, %v510
  %512 = vmatmul.bf16.gmra.mxu0 %v358
  %v513 = vpop.f32.mrf.mxu0
  %v514 = vadd.f32 %v425, %v513
  %v515 = vpop.f32.mrf.mxu0
  %v516 = vadd.f32 %v427, %v515
  %517 = vmatmul.bf16.gmra.mxu0 %v361
  %v518 = vpop.f32.mrf.mxu0
  %v519 = vadd.f32 %v430, %v518
  %v520 = vpop.f32.mrf.mxu0
  %v521 = vadd.f32 %v432, %v520
  %522 = vmatmul.bf16.gmra.mxu0 %v364
  %v523 = vpop.f32.mrf.mxu0
  %v524 = vadd.f32 %v435, %v523
  %v525 = vpop.f32.mrf.mxu0
  %v526 = vadd.f32 %v437, %v525
  %527 = vmatmul.bf16.gmra.mxu0 %v367
  %v528 = vpop.f32.mrf.mxu0
  %v529 = vadd.f32 %v440, %v528
  %v530 = vpop.f32.mrf.mxu0
  %v531 = vadd.f32 %v442, %v530
  %532 = vmatmul.bf16.gmra.mxu0 %v370
  %v533 = vpop.f32.mrf.mxu0
  %v534 = vadd.f32 %v445, %v533
  %v535 = vpop.f32.mrf.mxu0
  %v536 = vadd.f32 %v447, %v535
  %537 = vmatmul.bf16.gmra.mxu0 %v373
  %v538 = vpop.f32.mrf.mxu0
  %v539 = vadd.f32 %v450, %v538
  %v540 = vpop.f32.mrf.mxu0
  %v541 = vadd.f32 %v452, %v540
  %542 = vmatmul.bf16.gmra.mxu0 %v376
  %v543 = vpop.f32.mrf.mxu0
  %v544 = vadd.f32 %v455, %v543
  %v545 = vpop.f32.mrf.mxu0
  %v546 = vadd.f32 %v457, %v545
  %547 = vmatmul.bf16.gmra.mxu0 %v379
  %v548 = vpop.f32.mrf.mxu0
  %v549 = vadd.f32 %v460, %v548
  %v550 = vpop.f32.mrf.mxu0
  %v551 = vadd.f32 %v462, %v550
  %552 = vmatmul.bf16.gmra.mxu0 %v382
  %v553 = vpop.f32.mrf.mxu0
  %v554 = vadd.f32 %v465, %v553
  %v555 = vpop.f32.mrf.mxu0
  %v556 = vadd.f32 %v467, %v555
  %557 = vmatmul.bf16.gmra.mxu0 %v385
  %v558 = vpop.f32.mrf.mxu0
  %v559 = vadd.f32 %v470, %v558
  %v560 = vpop.f32.mrf.mxu0
  %v561 = vadd.f32 %v472, %v560
  %562 = vmatmul.bf16.gmra.mxu0 %v388
  %v563 = vpop.f32.mrf.mxu0
  %v564 = vadd.f32 %v475, %v563
  %v565 = vpop.f32.mrf.mxu0
  %v566 = vadd.f32 %v477, %v565
  %567 = vdwg.mxu0
  %568 = vmatpush.bf16.msra.mxu0 %v316
  %569 = vmatpush.bf16.msra.mxu0 %v314
  %570 = vmatpush.bf16.msra.mxu0 %v312
  %571 = vmatpush.bf16.msra.mxu0 %v310
  %572 = vmatpush.bf16.msra.mxu0 %v308
  %573 = vmatpush.bf16.msra.mxu0 %v306
  %574 = vmatpush.bf16.msra.mxu0 %v304
  %575 = vmatpush.bf16.msra.mxu0 %v302
  %576 = vmatmul.bf16.gmra.mxu0 %v193
  %v577 = vpop.f32.mrf.mxu0
  %v578 = vadd.f32 %v94, %v577
  %v579 = vpop.f32.mrf.mxu0
  %v580 = vadd.f32 %v94, %v579
  %581 = vmatmul.bf16.gmra.mxu0 %v195
  %v582 = vpop.f32.mrf.mxu0
  %v583 = vadd.f32 %v94, %v582
  %v584 = vpop.f32.mrf.mxu0
  %v585 = vadd.f32 %v94, %v584
  %586 = vmatmul.bf16.gmra.mxu0 %v197
  %v587 = vpop.f32.mrf.mxu0
  %v588 = vadd.f32 %v94, %v587
  %v589 = vpop.f32.mrf.mxu0
  %v590 = vadd.f32 %v94, %v589
  %591 = vmatmul.bf16.gmra.mxu0 %v199
  %v592 = vpop.f32.mrf.mxu0
  %v593 = vadd.f32 %v94, %v592
  %v594 = vpop.f32.mrf.mxu0
  %v595 = vadd.f32 %v94, %v594
  %596 = vmatmul.bf16.gmra.mxu0 %v201
  %v597 = vpop.f32.mrf.mxu0
  %v598 = vadd.f32 %v94, %v597
  %v599 = vpop.f32.mrf.mxu0
  %v600 = vadd.f32 %v94, %v599
  %601 = vmatmul.bf16.gmra.mxu0 %v203
  %v602 = vpop.f32.mrf.mxu0
  %v603 = vadd.f32 %v94, %v602
  %v604 = vpop.f32.mrf.mxu0
  %v605 = vadd.f32 %v94, %v604
  %606 = vmatmul.bf16.gmra.mxu0 %v205
  %v607 = vpop.f32.mrf.mxu0
  %v608 = vadd.f32 %v94, %v607
  %v609 = vpop.f32.mrf.mxu0
  %v610 = vadd.f32 %v94, %v609
  %611 = vmatmul.bf16.gmra.mxu0 %v207
  %v612 = vpop.f32.mrf.mxu0
  %v613 = vadd.f32 %v94, %v612
  %v614 = vpop.f32.mrf.mxu0
  %v615 = vadd.f32 %v94, %v614
  %616 = vmatmul.bf16.gmra.mxu0 %v209
  %v617 = vpop.f32.mrf.mxu0
  %v618 = vadd.f32 %v94, %v617
  %v619 = vpop.f32.mrf.mxu0
  %v620 = vadd.f32 %v94, %v619
  %621 = vmatmul.bf16.gmra.mxu0 %v211
  %v622 = vpop.f32.mrf.mxu0
  %v623 = vadd.f32 %v94, %v622
  %v624 = vpop.f32.mrf.mxu0
  %v625 = vadd.f32 %v94, %v624
  %626 = vmatmul.bf16.gmra.mxu0 %v213
  %v627 = vpop.f32.mrf.mxu0
  %v628 = vadd.f32 %v94, %v627
  %v629 = vpop.f32.mrf.mxu0
  %v630 = vadd.f32 %v94, %v629
  %631 = vmatmul.bf16.gmra.mxu0 %v215
  %v632 = vpop.f32.mrf.mxu0
  %v633 = vadd.f32 %v94, %v632
  %v634 = vpop.f32.mrf.mxu0
  %v635 = vadd.f32 %v94, %v634
  %636 = vmatmul.bf16.gmra.mxu0 %v217
  %v637 = vpop.f32.mrf.mxu0
  %v638 = vadd.f32 %v94, %v637
  %v639 = vpop.f32.mrf.mxu0
  %v640 = vadd.f32 %v94, %v639
  %641 = vmatmul.bf16.gmra.mxu0 %v219
  %v642 = vpop.f32.mrf.mxu0
  %v643 = vadd.f32 %v94, %v642
  %v644 = vpop.f32.mrf.mxu0
  %v645 = vadd.f32 %v94, %v644
  %646 = vmatmul.bf16.gmra.mxu0 %v221
  %v647 = vpop.f32.mrf.mxu0
  %v648 = vadd.f32 %v94, %v647
  %v649 = vpop.f32.mrf.mxu0
  %v650 = vadd.f32 %v94, %v649
  %651 = vmatmul.bf16.gmra.mxu0 %v223
  %v652 = vpop.f32.mrf.mxu0
  %v653 = vadd.f32 %v94, %v652
  %v654 = vpop.f32.mrf.mxu0
  %v655 = vadd.f32 %v94, %v654
  %656 = vdwg.mxu0
  %657 = vmatpush.bf16.msra.mxu0 0
  %658 = vmatpush.bf16.msra.mxu0 0
  %659 = vmatpush.bf16.msra.mxu0 0
  %660 = vmatpush.bf16.msra.mxu0 0
  %661 = vmatpush.bf16.msra.mxu0 0
  %662 = vmatpush.bf16.msra.mxu0 0
  %663 = vmatpush.bf16.msra.mxu0 %v320
  %664 = vmatpush.bf16.msra.mxu0 %v318
  %665 = vmatmul.bf16.gmra.mxu0 %v343
  %v666 = vpop.f32.mrf.mxu0
  %v667 = vadd.f32 %v578, %v666
  %v668 = vpop.f32.mrf.mxu0
  %v669 = vadd.f32 %v580, %v668
  %670 = vmatmul.bf16.gmra.mxu0 %v346
  %v671 = vpop.f32.mrf.mxu0
  %v672 = vadd.f32 %v583, %v671
  %v673 = vpop.f32.mrf.mxu0
  %v674 = vadd.f32 %v585, %v673
  %675 = vmatmul.bf16.gmra.mxu0 %v349
  %v676 = vpop.f32.mrf.mxu0
  %v677 = vadd.f32 %v588, %v676
  %v678 = vpop.f32.mrf.mxu0
  %v679 = vadd.f32 %v590, %v678
  %680 = vmatmul.bf16.gmra.mxu0 %v352
  %v681 = vpop.f32.mrf.mxu0
  %v682 = vadd.f32 %v593, %v681
  %v683 = vpop.f32.mrf.mxu0
  %v684 = vadd.f32 %v595, %v683
  %685 = vmatmul.bf16.gmra.mxu0 %v355
  %v686 = vpop.f32.mrf.mxu0
  %v687 = vadd.f32 %v598, %v686
  %v688 = vpop.f32.mrf.mxu0
  %v689 = vadd.f32 %v600, %v688
  %690 = vmatmul.bf16.gmra.mxu0 %v358
  %v691 = vpop.f32.mrf.mxu0
  %v692 = vadd.f32 %v603, %v691
  %v693 = vpop.f32.mrf.mxu0
  %v694 = vadd.f32 %v605, %v693
  %695 = vmatmul.bf16.gmra.mxu0 %v361
  %v696 = vpop.f32.mrf.mxu0
  %v697 = vadd.f32 %v608, %v696
  %v698 = vpop.f32.mrf.mxu0
  %v699 = vadd.f32 %v610, %v698
  %700 = vmatmul.bf16.gmra.mxu0 %v364
  %v701 = vpop.f32.mrf.mxu0
  %v702 = vadd.f32 %v613, %v701
  %v703 = vpop.f32.mrf.mxu0
  %v704 = vadd.f32 %v615, %v703
  %705 = vmatmul.bf16.gmra.mxu0 %v367
  %v706 = vpop.f32.mrf.mxu0
  %v707 = vadd.f32 %v618, %v706
  %v708 = vpop.f32.mrf.mxu0
  %v709 = vadd.f32 %v620, %v708
  %710 = vmatmul.bf16.gmra.mxu0 %v370
  %v711 = vpop.f32.mrf.mxu0
  %v712 = vadd.f32 %v623, %v711
  %v713 = vpop.f32.mrf.mxu0
  %v714 = vadd.f32 %v625, %v713
  %715 = vmatmul.bf16.gmra.mxu0 %v373
  %v716 = vpop.f32.mrf.mxu0
  %v717 = vadd.f32 %v628, %v716
  %v718 = vpop.f32.mrf.mxu0
  %v719 = vadd.f32 %v630, %v718
  %720 = vmatmul.bf16.gmra.mxu0 %v376
  %v721 = vpop.f32.mrf.mxu0
  %v722 = vadd.f32 %v633, %v721
  %v723 = vpop.f32.mrf.mxu0
  %v724 = vadd.f32 %v635, %v723
  %725 = vmatmul.bf16.gmra.mxu0 %v379
  %v726 = vpop.f32.mrf.mxu0
  %v727 = vadd.f32 %v638, %v726
  %v728 = vpop.f32.mrf.mxu0
  %v729 = vadd.f32 %v640, %v728
  %730 = vmatmul.bf16.gmra.mxu0 %v382
  %v731 = vpop.f32.mrf.mxu0
  %v732 = vadd.f32 %v643, %v731
  %v733 = vpop.f32.mrf.mxu0
  %v734 = vadd.f32 %v645, %v733
  %735 = vmatmul.bf16.gmra.mxu0 %v385
  %v736 = vpop.f32.mrf.mxu0
  %v737 = vadd.f32 %v648, %v736
  %v738 = vpop.f32.mrf.mxu0
  %v739 = vadd.f32 %v650, %v738
  %740 = vmatmul.bf16.gmra.mxu0 %v388
  %v741 = vpop.f32.mrf.mxu0
  %v742 = vadd.f32 %v653, %v741
  %v743 = vpop.f32.mrf.mxu0
  %v744 = vadd.f32 %v655, %v743
  %745 = vdwg.mxu0
  %v746 = vmax.f32 %v489, 0.0
  %v747 = vmax.f32 %v667, 0.0
  %v748 = vmax.f32 %v491, 0.0
  %v749 = vmax.f32 %v669, 0.0
  %v750 = vmax.f32 %v494, 0.0
  %v751 = vmax.f32 %v672, 0.0
  %v752 = vmax.f32 %v496, 0.0
  %v753 = vmax.f32 %v674, 0.0
  %v754 = vmax.f32 %v499, 0.0
  %v755 = vmax.f32 %v677, 0.0
  %v756 = vmax.f32 %v501, 0.0
  %v757 = vmax.f32 %v679, 0.0
  %v758 = vmax.f32 %v504, 0.0
  %v759 = vmax.f32 %v682, 0.0
  %v760 = vmax.f32 %v506, 0.0
  %v761 = vmax.f32 %v684, 0.0
  %v762 = vmax.f32 %v509, 0.0
  %v763 = vmax.f32 %v687, 0.0
  %v764 = vmax.f32 %v511, 0.0
  %v765 = vmax.f32 %v689, 0.0
  %v766 = vmax.f32 %v514, 0.0
  %v767 = vmax.f32 %v692, 0.0
  %v768 = vmax.f32 %v516, 0.0
  %v769 = vmax.f32 %v694, 0.0
  %v770 = vmax.f32 %v519, 0.0
  %v771 = vmax.f32 %v697, 0.0
  %v772 = vmax.f32 %v521, 0.0
  %v773 = vmax.f32 %v699, 0.0
  %v774 = vmax.f32 %v524, 0.0
  %v775 = vmax.f32 %v702, 0.0
  %v776 = vmax.f32 %v526, 0.0
  %v777 = vmax.f32 %v704, 0.0
  %v778 = vmax.f32 %v529, 0.0
  %v779 = vmax.f32 %v707, 0.0
  %v780 = vmax.f32 %v531, 0.0
  %v781 = vmax.f32 %v709, 0.0
  %v782 = vmax.f32 %v534, 0.0
  %v783 = vmax.f32 %v712, 0.0
  %v784 = vmax.f32 %v536, 0.0
  %v785 = vmax.f32 %v714, 0.0
  %v786 = vmax.f32 %v539, 0.0
  %v787 = vmax.f32 %v717, 0.0
  %v788 = vmax.f32 %v541, 0.0
  %v789 = vmax.f32 %v719, 0.0
  %v790 = vmax.f32 %v544, 0.0
  %v791 = vmax.f32 %v722, 0.0
  %v792 = vmax.f32 %v546, 0.0
  %v793 = vmax.f32 %v724, 0.0
  %v794 = vmax.f32 %v549, 0.0
  %v795 = vmax.f32 %v727, 0.0
  %v796 = vmax.f32 %v551, 0.0
  %v797 = vmax.f32 %v729, 0.0
  %v798 = vmax.f32 %v554, 0.0
  %v799 = vmax.f32 %v732, 0.0
  %v800 = vmax.f32 %v556, 0.0
  %v801 = vmax.f32 %v734, 0.0
  %v802 = vmax.f32 %v559, 0.0
  %v803 = vmax.f32 %v737, 0.0
  %v804 = vmax.f32 %v561, 0.0
  %v805 = vmax.f32 %v739, 0.0
  %v806 = vmax.f32 %v564, 0.0
  %v807 = vmax.f32 %v742, 0.0
  %v808 = vmax.f32 %v566, 0.0
  %v809 = vmax.f32 %v744, 0.0
  %v810 = vadd.f32 %v746, %v778
  %v811 = vadd.f32 %v747, %v779
  %v812 = vadd.f32 %v748, %v780
  %v813 = vadd.f32 %v749, %v781
  %v814 = vadd.f32 %v750, %v782
  %v815 = vadd.f32 %v751, %v783
  %v816 = vadd.f32 %v752, %v784
  %v817 = vadd.f32 %v753, %v785
  %v818 = vadd.f32 %v754, %v786
  %v819 = vadd.f32 %v755, %v787
  %v820 = vadd.f32 %v756, %v788
  %v821 = vadd.f32 %v757, %v789
  %v822 = vadd.f32 %v758, %v790
  %v823 = vadd.f32 %v759, %v791
  %v824 = vadd.f32 %v760, %v792
  %v825 = vadd.f32 %v761, %v793
  %v826 = vadd.f32 %v762, %v794
  %v827 = vadd.f32 %v763, %v795
  %v828 = vadd.f32 %v764, %v796
  %v829 = vadd.f32 %v765, %v797
  %v830 = vadd.f32 %v766, %v798
  %v831 = vadd.f32 %v767, %v799
  %v832 = vadd.f32 %v768, %v800
  %v833 = vadd.f32 %v769, %v801
  %v834 = vadd.f32 %v770, %v802
  %v835 = vadd.f32 %v771, %v803
  %v836 = vadd.f32 %v772, %v804
  %v837 = vadd.f32 %v773, %v805
  %v838 = vadd.f32 %v774, %v806
  %v839 = vadd.f32 %v775, %v807
  %v840 = vadd.f32 %v776, %v808
  %v841 = vadd.f32 %v777, %v809
  %v842 = vmul.f32 %v810, 0.5
  %v843 = vmul.f32 %v811, 0.5
  %v844 = vmul.f32 %v812, 0.5
  %v845 = vmul.f32 %v813, 0.5
  %v846 = vmul.f32 %v814, 0.5
  %v847 = vmul.f32 %v815, 0.5
  %v848 = vmul.f32 %v816, 0.5
  %v849 = vmul.f32 %v817, 0.5
  %v850 = vmul.f32 %v818, 0.5
  %v851 = vmul.f32 %v819, 0.5
  %v852 = vmul.f32 %v820, 0.5
  %v853 = vmul.f32 %v821, 0.5
  %v854 = vmul.f32 %v822, 0.5
  %v855 = vmul.f32 %v823, 0.5
  %v856 = vmul.f32 %v824, 0.5
  %v857 = vmul.f32 %v825, 0.5
  %v858 = vmul.f32 %v826, 0.5
  %v859 = vmul.f32 %v827, 0.5
  %v860 = vmul.f32 %v828, 0.5
  %v861 = vmul.f32 %v829, 0.5
  %v862 = vmul.f32 %v830, 0.5
  %v863 = vmul.f32 %v831, 0.5
  %v864 = vmul.f32 %v832, 0.5
  %v865 = vmul.f32 %v833, 0.5
  %v866 = vmul.f32 %v834, 0.5
  %v867 = vmul.f32 %v835, 0.5
  %v868 = vmul.f32 %v836, 0.5
  %v869 = vmul.f32 %v837, 0.5
  %v870 = vmul.f32 %v838, 0.5
  %v871 = vmul.f32 %v839, 0.5
  %v872 = vmul.f32 %v840, 0.5
  %v873 = vmul.f32 %v841, 0.5
  %v874 = vpack.c.bf16 %v843, %v842
  %v875 = vpack.c.bf16 %v845, %v844
  %v876 = vpack.c.bf16 %v847, %v846
  %v877 = vpack.c.bf16 %v849, %v848
  %v878 = vpack.c.bf16 %v851, %v850
  %v879 = vpack.c.bf16 %v853, %v852
  %v880 = vpack.c.bf16 %v855, %v854
  %v881 = vpack.c.bf16 %v857, %v856
  %v882 = vpack.c.bf16 %v859, %v858
  %v883 = vpack.c.bf16 %v861, %v860
  %v884 = vpack.c.bf16 %v863, %v862
  %v885 = vpack.c.bf16 %v865, %v864
  %v886 = vpack.c.bf16 %v867, %v866
  %v887 = vpack.c.bf16 %v869, %v868
  %v888 = vpack.c.bf16 %v871, %v870
  %v889 = vpack.c.bf16 %v873, %v872
  %v906 = vunpack.c.l.b16 %v874
  %v907 = vunpack.c.h.b16 %v874
  %v908 = vunpack.c.l.b16 %v875
  %v909 = vunpack.c.h.b16 %v875
  %v910 = vunpack.c.l.b16 %v876
  %v911 = vunpack.c.h.b16 %v876
  %v912 = vunpack.c.l.b16 %v877
  %v913 = vunpack.c.h.b16 %v877
  %v914 = vunpack.c.l.b16 %v878
  %v915 = vunpack.c.h.b16 %v878
  %v916 = vunpack.c.l.b16 %v879
  %v917 = vunpack.c.h.b16 %v879
  %v918 = vunpack.c.l.b16 %v880
  %v919 = vunpack.c.h.b16 %v880
  %v920 = vunpack.c.l.b16 %v881
  %v921 = vunpack.c.h.b16 %v881
  %v922 = vunpack.c.l.b16 %v882
  %v923 = vunpack.c.h.b16 %v882
  %v924 = vunpack.c.l.b16 %v883
  %v925 = vunpack.c.h.b16 %v883
  %v926 = vunpack.c.l.b16 %v884
  %v927 = vunpack.c.h.b16 %v884
  %v928 = vunpack.c.l.b16 %v885
  %v929 = vunpack.c.h.b16 %v885
  %v930 = vunpack.c.l.b16 %v886
  %v931 = vunpack.c.h.b16 %v886
  %v932 = vunpack.c.l.b16 %v887
  %v933 = vunpack.c.h.b16 %v887
  %v934 = vunpack.c.l.b16 %v888
  %v935 = vunpack.c.h.b16 %v888
  %v936 = vunpack.c.l.b16 %v889
  %v937 = vunpack.c.h.b16 %v889
  %v938 = vpack.c.b16 %v908, %v906
  %v939 = vpack.c.b16 %v909, %v907
  %v940 = vpack.c.b16 %v912, %v910
  %v941 = vpack.c.b16 %v913, %v911
  %v942 = vpack.c.b16 %v916, %v914
  %v943 = vpack.c.b16 %v917, %v915
  %v944 = vpack.c.b16 %v920, %v918
  %v945 = vpack.c.b16 %v921, %v919
  %v946 = vpack.c.b16 %v924, %v922
  %v947 = vpack.c.b16 %v925, %v923
  %v948 = vpack.c.b16 %v928, %v926
  %v949 = vpack.c.b16 %v929, %v927
  %v950 = vpack.c.b16 %v932, %v930
  %v951 = vpack.c.b16 %v933, %v931
  %v952 = vpack.c.b16 %v936, %v934
  %v953 = vpack.c.b16 %v937, %v935
  %v970 = vld [vmem:[%s3] sm:$0xff]
  %v971 = vld [vmem:[%s3 + $0x8] sm:$0xff]
  %v972 = vld [vmem:[%s3 + $0x10] sm:$0xff]
  %v973 = vld [vmem:[%s3 + $0x18] sm:$0xff]
  %v974 = vld [vmem:[%s3 + $0x20] sm:$0xff]
  %v975 = vld [vmem:[%s3 + $0x28] sm:$0xff]
  %v976 = vld [vmem:[%s3 + $0x30] sm:$0xff]
  %v977 = vld [vmem:[%s3 + $0x38] sm:$0xff]
  %v978 = vld [vmem:[%s3 + $0x40] sm:$0xff]
  %v979 = vld [vmem:[%s3 + $0x48] sm:$0xff]
  %v980 = vld [vmem:[%s3 + $0x50] sm:$0xff]
  %v981 = vld [vmem:[%s3 + $0x58] sm:$0xff]
  %v982 = vld [vmem:[%s3 + $0x60] sm:$0xff]
  %v983 = vld [vmem:[%s3 + $0x68] sm:$0xff]
  %v984 = vld [vmem:[%s3 + $0x70] sm:$0xff]
  %v985 = vld [vmem:[%s3 + $0x78] sm:$0xff]
  %v986 = vld [vmem:[%s3 + $0x80] sm:$0xff]
  %v987 = vld [vmem:[%s3 + $0x88] sm:$0xff]
  %v988 = vld [vmem:[%s3 + $0x90] sm:$0xff]
  %v989 = vld [vmem:[%s3 + $0x98] sm:$0xff]
  %v990 = vld [vmem:[%s3 + $0xa0] sm:$0xff]
  %v991 = vld [vmem:[%s3 + $0xa8] sm:$0xff]
  %v992 = vld [vmem:[%s3 + $0xb0] sm:$0xff]
  %v993 = vld [vmem:[%s3 + $0xb8] sm:$0xff]
  %v994 = vld [vmem:[%s3 + $0xc0] sm:$0xff]
  %v995 = vld [vmem:[%s3 + $0xc8] sm:$0xff]
  %v996 = vld [vmem:[%s3 + $0xd0] sm:$0xff]
  %v997 = vld [vmem:[%s3 + $0xd8] sm:$0xff]
  %v998 = vld [vmem:[%s3 + $0xe0] sm:$0xff]
  %v999 = vld [vmem:[%s3 + $0xe8] sm:$0xff]
  %v1000 = vld [vmem:[%s3 + $0xf0] sm:$0xff]
  %v1001 = vld [vmem:[%s3 + $0xf8] sm:$0xff]
  %s1002 = scalar_lea.vmem %s3, 256
  %v1003 = vld [vmem:[%s1002] sm:$0xff]
  %v1004 = vld [vmem:[%s1002 + $0x8] sm:$0xff]
  %v1005 = vld [vmem:[%s1002 + $0x10] sm:$0xff]
  %v1006 = vld [vmem:[%s1002 + $0x18] sm:$0xff]
  %v1007 = vld [vmem:[%s1002 + $0x20] sm:$0xff]
  %v1008 = vld [vmem:[%s1002 + $0x28] sm:$0xff]
  %v1009 = vld [vmem:[%s1002 + $0x30] sm:$0xff]
  %v1010 = vld [vmem:[%s1002 + $0x38] sm:$0xff]
  %v1011 = vld [vmem:[%s1002 + $0x40] sm:$0xff]
  %v1012 = vld [vmem:[%s1002 + $0x48] sm:$0xff]
  %v1013 = vld [vmem:[%s1002 + $0x50] sm:$0xff]
  %v1014 = vld [vmem:[%s1002 + $0x58] sm:$0xff]
  %v1015 = vld [vmem:[%s1002 + $0x60] sm:$0xff]
  %v1016 = vld [vmem:[%s1002 + $0x68] sm:$0xff]
  %v1017 = vld [vmem:[%s1002 + $0x70] sm:$0xff]
  %v1018 = vld [vmem:[%s1002 + $0x78] sm:$0xff]
  %v1019 = vld [vmem:[%s1002 + $0x80] sm:$0xff]
  %v1020 = vld [vmem:[%s1002 + $0x88] sm:$0xff]
  %v1021 = vld [vmem:[%s1002 + $0x90] sm:$0xff]
  %v1022 = vld [vmem:[%s1002 + $0x98] sm:$0xff]
  %v1023 = vld [vmem:[%s1002 + $0xa0] sm:$0xff]
  %v1024 = vld [vmem:[%s1002 + $0xa8] sm:$0xff]
  %v1025 = vld [vmem:[%s1002 + $0xb0] sm:$0xff]
  %v1026 = vld [vmem:[%s1002 + $0xb8] sm:$0xff]
  %v1027 = vld [vmem:[%s1002 + $0xc0] sm:$0xff]
  %v1028 = vld [vmem:[%s1002 + $0xc8] sm:$0xff]
  %v1029 = vld [vmem:[%s1002 + $0xd0] sm:$0xff]
  %v1030 = vld [vmem:[%s1002 + $0xd8] sm:$0xff]
  %v1031 = vld [vmem:[%s1002 + $0xe0] sm:$0xff]
  %v1032 = vld [vmem:[%s1002 + $0xe8] sm:$0xff]
  %v1033 = vld [vmem:[%s1002 + $0xf0] sm:$0xff]
  %v1034 = vld [vmem:[%s1002 + $0xf8] sm:$0xff]
  %vm1035 = vsmask.f32 7424
  %v1037 = vshrl.u32 %v938, 16
  %v1039 = vshll.u32 %v938, 16
  %v1041 = vrot.slane %v1039, 1
  %v1042 = vor.u32 %v1037, %v1041
  %v1044 = vshll.u32 %v940, 16
  %v1046 = vrot.slane %v1044, 1
  %v1047 = vsel %vm1035, %v1042, %v1046
  %v1049 = vshrl.u32 %v939, 16
  %v1051 = vshll.u32 %v939, 16
  %v1053 = vrot.slane %v1051, 1
  %v1054 = vor.u32 %v1049, %v1053
  %v1056 = vshll.u32 %v941, 16
  %v1058 = vrot.slane %v1056, 1
  %v1059 = vsel %vm1035, %v1054, %v1058
  %v1060 = vshrl.u32 %v940, 16
  %v1062 = vor.u32 %v1060, %v1046
  %v1064 = vshll.u32 %v942, 16
  %v1066 = vrot.slane %v1064, 1
  %v1067 = vsel %vm1035, %v1062, %v1066
  %v1068 = vshrl.u32 %v941, 16
  %v1070 = vor.u32 %v1068, %v1058
  %v1072 = vshll.u32 %v943, 16
  %v1074 = vrot.slane %v1072, 1
  %v1075 = vsel %vm1035, %v1070, %v1074
  %v1076 = vshrl.u32 %v942, 16
  %v1078 = vor.u32 %v1076, %v1066
  %v1080 = vshll.u32 %v944, 16
  %v1082 = vrot.slane %v1080, 1
  %v1083 = vsel %vm1035, %v1078, %v1082
  %v1084 = vshrl.u32 %v943, 16
  %v1086 = vor.u32 %v1084, %v1074
  %v1088 = vshll.u32 %v945, 16
  %v1090 = vrot.slane %v1088, 1
  %v1091 = vsel %vm1035, %v1086, %v1090
  %v1092 = vshrl.u32 %v944, 16
  %v1094 = vor.u32 %v1092, %v1082
  %v1096 = vshll.u32 %v946, 16
  %v1098 = vrot.slane %v1096, 1
  %v1099 = vsel %vm1035, %v1094, %v1098
  %v1100 = vshrl.u32 %v945, 16
  %v1102 = vor.u32 %v1100, %v1090
  %v1104 = vshll.u32 %v947, 16
  %v1106 = vrot.slane %v1104, 1
  %v1107 = vsel %vm1035, %v1102, %v1106
  %v1108 = vshrl.u32 %v946, 16
  %v1110 = vor.u32 %v1108, %v1098
  %v1112 = vshll.u32 %v948, 16
  %v1114 = vrot.slane %v1112, 1
  %v1115 = vsel %vm1035, %v1110, %v1114
  %v1116 = vshrl.u32 %v947, 16
  %v1118 = vor.u32 %v1116, %v1106
  %v1120 = vshll.u32 %v949, 16
  %v1122 = vrot.slane %v1120, 1
  %v1123 = vsel %vm1035, %v1118, %v1122
  %v1124 = vshrl.u32 %v948, 16
  %v1126 = vor.u32 %v1124, %v1114
  %v1128 = vshll.u32 %v950, 16
  %v1130 = vrot.slane %v1128, 1
  %v1131 = vsel %vm1035, %v1126, %v1130
  %v1132 = vshrl.u32 %v949, 16
  %v1134 = vor.u32 %v1132, %v1122
  %v1136 = vshll.u32 %v951, 16
  %v1138 = vrot.slane %v1136, 1
  %v1139 = vsel %vm1035, %v1134, %v1138
  %v1140 = vshrl.u32 %v950, 16
  %v1142 = vor.u32 %v1140, %v1130
  %v1144 = vshll.u32 %v952, 16
  %v1146 = vrot.slane %v1144, 1
  %v1147 = vsel %vm1035, %v1142, %v1146
  %v1148 = vshrl.u32 %v951, 16
  %v1150 = vor.u32 %v1148, %v1138
  %v1152 = vshll.u32 %v953, 16
  %v1154 = vrot.slane %v1152, 1
  %v1155 = vsel %vm1035, %v1150, %v1154
  %v1156 = vshrl.u32 %v952, 16
  %v1158 = vor.u32 %v1156, %v1146
  %v1160 = vshll.u32 0, 16
  %v1162 = vrot.slane %v1160, 1
  %v1163 = vsel %vm1035, %v1158, %v1162
  %v1164 = vshrl.u32 %v953, 16
  %v1166 = vor.u32 %v1164, %v1154
  %v1167 = vsel %vm1035, %v1166, %v1162
  %v1216 = vunpack.c.l.b16 %v1003
  %v1217 = vunpack.c.h.b16 %v1003
  %v1218 = vunpack.c.l.b16 %v1004
  %v1219 = vunpack.c.h.b16 %v1004
  %v1220 = vunpack.c.l.b16 %v1005
  %v1221 = vunpack.c.h.b16 %v1005
  %v1222 = vunpack.c.l.b16 %v1006
  %v1223 = vunpack.c.h.b16 %v1006
  %v1224 = vunpack.c.l.b16 %v1007
  %v1225 = vunpack.c.h.b16 %v1007
  %v1226 = vunpack.c.l.b16 %v1008
  %v1227 = vunpack.c.h.b16 %v1008
  %v1228 = vunpack.c.l.b16 %v1009
  %v1229 = vunpack.c.h.b16 %v1009
  %v1230 = vunpack.c.l.b16 %v1010
  %v1231 = vunpack.c.h.b16 %v1010
  %v1232 = vunpack.c.l.b16 %v1011
  %v1233 = vunpack.c.h.b16 %v1011
  %v1234 = vunpack.c.l.b16 %v1012
  %v1235 = vunpack.c.h.b16 %v1012
  %v1236 = vunpack.c.l.b16 %v1013
  %v1237 = vunpack.c.h.b16 %v1013
  %v1238 = vunpack.c.l.b16 %v1014
  %v1239 = vunpack.c.h.b16 %v1014
  %v1240 = vunpack.c.l.b16 %v1015
  %v1241 = vunpack.c.h.b16 %v1015
  %v1242 = vunpack.c.l.b16 %v1016
  %v1243 = vunpack.c.h.b16 %v1016
  %v1244 = vunpack.c.l.b16 %v1017
  %v1245 = vunpack.c.h.b16 %v1017
  %v1246 = vunpack.c.l.b16 %v1018
  %v1247 = vunpack.c.h.b16 %v1018
  %v1248 = vunpack.c.l.b16 %v1019
  %v1249 = vunpack.c.h.b16 %v1019
  %v1250 = vunpack.c.l.b16 %v1020
  %v1251 = vunpack.c.h.b16 %v1020
  %v1252 = vunpack.c.l.b16 %v1021
  %v1253 = vunpack.c.h.b16 %v1021
  %v1254 = vunpack.c.l.b16 %v1022
  %v1255 = vunpack.c.h.b16 %v1022
  %v1256 = vunpack.c.l.b16 %v1023
  %v1257 = vunpack.c.h.b16 %v1023
  %v1258 = vunpack.c.l.b16 %v1024
  %v1259 = vunpack.c.h.b16 %v1024
  %v1260 = vunpack.c.l.b16 %v1025
  %v1261 = vunpack.c.h.b16 %v1025
  %v1262 = vunpack.c.l.b16 %v1026
  %v1263 = vunpack.c.h.b16 %v1026
  %v1264 = vunpack.c.l.b16 %v1027
  %v1265 = vunpack.c.h.b16 %v1027
  %v1266 = vunpack.c.l.b16 %v1028
  %v1267 = vunpack.c.h.b16 %v1028
  %v1268 = vunpack.c.l.b16 %v1029
  %v1269 = vunpack.c.h.b16 %v1029
  %v1270 = vunpack.c.l.b16 %v1030
  %v1271 = vunpack.c.h.b16 %v1030
  %v1272 = vunpack.c.l.b16 %v1031
  %v1273 = vunpack.c.h.b16 %v1031
  %v1274 = vunpack.c.l.b16 %v1032
  %v1275 = vunpack.c.h.b16 %v1032
  %v1276 = vunpack.c.l.b16 %v1033
  %v1277 = vunpack.c.h.b16 %v1033
  %v1278 = vunpack.c.l.b16 %v1034
  %v1279 = vunpack.c.h.b16 %v1034
  %v1280 = vpack.c.b16 %v1218, %v1216
  %v1281 = vpack.c.b16 %v1219, %v1217
  %v1282 = vpack.c.b16 %v1222, %v1220
  %v1283 = vpack.c.b16 %v1223, %v1221
  %v1284 = vpack.c.b16 %v1226, %v1224
  %v1285 = vpack.c.b16 %v1227, %v1225
  %v1286 = vpack.c.b16 %v1230, %v1228
  %v1287 = vpack.c.b16 %v1231, %v1229
  %v1288 = vpack.c.b16 %v1234, %v1232
  %v1289 = vpack.c.b16 %v1235, %v1233
  %v1290 = vpack.c.b16 %v1238, %v1236
  %v1291 = vpack.c.b16 %v1239, %v1237
  %v1292 = vpack.c.b16 %v1242, %v1240
  %v1293 = vpack.c.b16 %v1243, %v1241
  %v1294 = vpack.c.b16 %v1246, %v1244
  %v1295 = vpack.c.b16 %v1247, %v1245
  %v1296 = vpack.c.b16 %v1250, %v1248
  %v1297 = vpack.c.b16 %v1251, %v1249
  %v1298 = vpack.c.b16 %v1254, %v1252
  %v1299 = vpack.c.b16 %v1255, %v1253
  %v1300 = vpack.c.b16 %v1258, %v1256
  %v1301 = vpack.c.b16 %v1259, %v1257
  %v1302 = vpack.c.b16 %v1262, %v1260
  %v1303 = vpack.c.b16 %v1263, %v1261
  %v1304 = vpack.c.b16 %v1266, %v1264
  %v1305 = vpack.c.b16 %v1267, %v1265
  %v1306 = vpack.c.b16 %v1270, %v1268
  %v1307 = vpack.c.b16 %v1271, %v1269
  %v1308 = vpack.c.b16 %v1274, %v1272
  %v1309 = vpack.c.b16 %v1275, %v1273
  %v1310 = vpack.c.b16 %v1278, %v1276
  %v1311 = vpack.c.b16 %v1279, %v1277
  %1344 = vmatpush.bf16.msra.mxu0 %v1294
  %1345 = vmatpush.bf16.msra.mxu0 %v1292
  %1346 = vmatpush.bf16.msra.mxu0 %v1290
  %1347 = vmatpush.bf16.msra.mxu0 %v1288
  %1348 = vmatpush.bf16.msra.mxu0 %v1286
  %1349 = vmatpush.bf16.msra.mxu0 %v1284
  %1350 = vmatpush.bf16.msra.mxu0 %v1282
  %1351 = vmatpush.bf16.msra.mxu0 %v1280
  %1352 = vmatmul.bf16.gmra.mxu0 %v1047
  %v1353 = vpop.f32.mrf.mxu0
  %v1354 = vadd.f32 0.0, %v1353
  %v1355 = vpop.f32.mrf.mxu0
  %v1356 = vadd.f32 0.0, %v1355
  %1357 = vmatmul.bf16.gmra.mxu0 %v1067
  %v1358 = vpop.f32.mrf.mxu0
  %v1359 = vadd.f32 0.0, %v1358
  %v1360 = vpop.f32.mrf.mxu0
  %v1361 = vadd.f32 0.0, %v1360
  %1362 = vmatmul.bf16.gmra.mxu0 %v1083
  %v1363 = vpop.f32.mrf.mxu0
  %v1364 = vadd.f32 0.0, %v1363
  %v1365 = vpop.f32.mrf.mxu0
  %v1366 = vadd.f32 0.0, %v1365
  %1367 = vmatmul.bf16.gmra.mxu0 %v1099
  %v1368 = vpop.f32.mrf.mxu0
  %v1369 = vadd.f32 0.0, %v1368
  %v1370 = vpop.f32.mrf.mxu0
  %v1371 = vadd.f32 0.0, %v1370
  %1372 = vmatmul.bf16.gmra.mxu0 %v1115
  %v1373 = vpop.f32.mrf.mxu0
  %v1374 = vadd.f32 0.0, %v1373
  %v1375 = vpop.f32.mrf.mxu0
  %v1376 = vadd.f32 0.0, %v1375
  %1377 = vmatmul.bf16.gmra.mxu0 %v1131
  %v1378 = vpop.f32.mrf.mxu0
  %v1379 = vadd.f32 0.0, %v1378
  %v1380 = vpop.f32.mrf.mxu0
  %v1381 = vadd.f32 0.0, %v1380
  %1382 = vmatmul.bf16.gmra.mxu0 %v1147
  %v1383 = vpop.f32.mrf.mxu0
  %v1384 = vadd.f32 0.0, %v1383
  %v1385 = vpop.f32.mrf.mxu0
  %v1386 = vadd.f32 0.0, %v1385
  %1387 = vmatmul.bf16.gmra.mxu0 %v1163
  %v1388 = vpop.f32.mrf.mxu0
  %v1389 = vadd.f32 0.0, %v1388
  %v1390 = vpop.f32.mrf.mxu0
  %v1391 = vadd.f32 0.0, %v1390
  %1392 = vdwg.mxu0
  %1393 = vmatpush.bf16.msra.mxu0 %v1310
  %1394 = vmatpush.bf16.msra.mxu0 %v1308
  %1395 = vmatpush.bf16.msra.mxu0 %v1306
  %1396 = vmatpush.bf16.msra.mxu0 %v1304
  %1397 = vmatpush.bf16.msra.mxu0 %v1302
  %1398 = vmatpush.bf16.msra.mxu0 %v1300
  %1399 = vmatpush.bf16.msra.mxu0 %v1298
  %1400 = vmatpush.bf16.msra.mxu0 %v1296
  %1401 = vmatmul.bf16.gmra.mxu0 %v1059
  %v1402 = vpop.f32.mrf.mxu0
  %v1403 = vadd.f32 %v1354, %v1402
  %v1404 = vpop.f32.mrf.mxu0
  %v1405 = vadd.f32 %v1356, %v1404
  %1406 = vmatmul.bf16.gmra.mxu0 %v1075
  %v1407 = vpop.f32.mrf.mxu0
  %v1408 = vadd.f32 %v1359, %v1407
  %v1409 = vpop.f32.mrf.mxu0
  %v1410 = vadd.f32 %v1361, %v1409
  %1411 = vmatmul.bf16.gmra.mxu0 %v1091
  %v1412 = vpop.f32.mrf.mxu0
  %v1413 = vadd.f32 %v1364, %v1412
  %v1414 = vpop.f32.mrf.mxu0
  %v1415 = vadd.f32 %v1366, %v1414
  %1416 = vmatmul.bf16.gmra.mxu0 %v1107
  %v1417 = vpop.f32.mrf.mxu0
  %v1418 = vadd.f32 %v1369, %v1417
  %v1419 = vpop.f32.mrf.mxu0
  %v1420 = vadd.f32 %v1371, %v1419
  %1421 = vmatmul.bf16.gmra.mxu0 %v1123
  %v1422 = vpop.f32.mrf.mxu0
  %v1423 = vadd.f32 %v1374, %v1422
  %v1424 = vpop.f32.mrf.mxu0
  %v1425 = vadd.f32 %v1376, %v1424
  %1426 = vmatmul.bf16.gmra.mxu0 %v1139
  %v1427 = vpop.f32.mrf.mxu0
  %v1428 = vadd.f32 %v1379, %v1427
  %v1429 = vpop.f32.mrf.mxu0
  %v1430 = vadd.f32 %v1381, %v1429
  %1431 = vmatmul.bf16.gmra.mxu0 %v1155
  %v1432 = vpop.f32.mrf.mxu0
  %v1433 = vadd.f32 %v1384, %v1432
  %v1434 = vpop.f32.mrf.mxu0
  %v1435 = vadd.f32 %v1386, %v1434
  %1436 = vmatmul.bf16.gmra.mxu0 %v1167
  %v1437 = vpop.f32.mrf.mxu0
  %v1438 = vadd.f32 %v1389, %v1437
  %v1439 = vpop.f32.mrf.mxu0
  %v1440 = vadd.f32 %v1391, %v1439
  %1441 = vdwg.mxu0
  %1442 = vmatpush.bf16.msra.mxu0 %v1295
  %1443 = vmatpush.bf16.msra.mxu0 %v1293
  %1444 = vmatpush.bf16.msra.mxu0 %v1291
  %1445 = vmatpush.bf16.msra.mxu0 %v1289
  %1446 = vmatpush.bf16.msra.mxu0 %v1287
  %1447 = vmatpush.bf16.msra.mxu0 %v1285
  %1448 = vmatpush.bf16.msra.mxu0 %v1283
  %1449 = vmatpush.bf16.msra.mxu0 %v1281
  %1450 = vmatmul.bf16.gmra.mxu0 %v1047
  %v1451 = vpop.f32.mrf.mxu0
  %v1452 = vadd.f32 0.0, %v1451
  %v1453 = vpop.f32.mrf.mxu0
  %v1454 = vadd.f32 0.0, %v1453
  %1455 = vmatmul.bf16.gmra.mxu0 %v1067
  %v1456 = vpop.f32.mrf.mxu0
  %v1457 = vadd.f32 0.0, %v1456
  %v1458 = vpop.f32.mrf.mxu0
  %v1459 = vadd.f32 0.0, %v1458
  %1460 = vmatmul.bf16.gmra.mxu0 %v1083
  %v1461 = vpop.f32.mrf.mxu0
  %v1462 = vadd.f32 0.0, %v1461
  %v1463 = vpop.f32.mrf.mxu0
  %v1464 = vadd.f32 0.0, %v1463
  %1465 = vmatmul.bf16.gmra.mxu0 %v1099
  %v1466 = vpop.f32.mrf.mxu0
  %v1467 = vadd.f32 0.0, %v1466
  %v1468 = vpop.f32.mrf.mxu0
  %v1469 = vadd.f32 0.0, %v1468
  %1470 = vmatmul.bf16.gmra.mxu0 %v1115
  %v1471 = vpop.f32.mrf.mxu0
  %v1472 = vadd.f32 0.0, %v1471
  %v1473 = vpop.f32.mrf.mxu0
  %v1474 = vadd.f32 0.0, %v1473
  %1475 = vmatmul.bf16.gmra.mxu0 %v1131
  %v1476 = vpop.f32.mrf.mxu0
  %v1477 = vadd.f32 0.0, %v1476
  %v1478 = vpop.f32.mrf.mxu0
  %v1479 = vadd.f32 0.0, %v1478
  %1480 = vmatmul.bf16.gmra.mxu0 %v1147
  %v1481 = vpop.f32.mrf.mxu0
  %v1482 = vadd.f32 0.0, %v1481
  %v1483 = vpop.f32.mrf.mxu0
  %v1484 = vadd.f32 0.0, %v1483
  %1485 = vmatmul.bf16.gmra.mxu0 %v1163
  %v1486 = vpop.f32.mrf.mxu0
  %v1487 = vadd.f32 0.0, %v1486
  %v1488 = vpop.f32.mrf.mxu0
  %v1489 = vadd.f32 0.0, %v1488
  %1490 = vdwg.mxu0
  %1491 = vmatpush.bf16.msra.mxu0 %v1311
  %1492 = vmatpush.bf16.msra.mxu0 %v1309
  %1493 = vmatpush.bf16.msra.mxu0 %v1307
  %1494 = vmatpush.bf16.msra.mxu0 %v1305
  %1495 = vmatpush.bf16.msra.mxu0 %v1303
  %1496 = vmatpush.bf16.msra.mxu0 %v1301
  %1497 = vmatpush.bf16.msra.mxu0 %v1299
  %1498 = vmatpush.bf16.msra.mxu0 %v1297
  %1499 = vmatmul.bf16.gmra.mxu0 %v1059
  %v1500 = vpop.f32.mrf.mxu0
  %v1501 = vadd.f32 %v1452, %v1500
  %v1502 = vpop.f32.mrf.mxu0
  %v1503 = vadd.f32 %v1454, %v1502
  %1504 = vmatmul.bf16.gmra.mxu0 %v1075
  %v1505 = vpop.f32.mrf.mxu0
  %v1506 = vadd.f32 %v1457, %v1505
  %v1507 = vpop.f32.mrf.mxu0
  %v1508 = vadd.f32 %v1459, %v1507
  %1509 = vmatmul.bf16.gmra.mxu0 %v1091
  %v1510 = vpop.f32.mrf.mxu0
  %v1511 = vadd.f32 %v1462, %v1510
  %v1512 = vpop.f32.mrf.mxu0
  %v1513 = vadd.f32 %v1464, %v1512
  %1514 = vmatmul.bf16.gmra.mxu0 %v1107
  %v1515 = vpop.f32.mrf.mxu0
  %v1516 = vadd.f32 %v1467, %v1515
  %v1517 = vpop.f32.mrf.mxu0
  %v1518 = vadd.f32 %v1469, %v1517
  %1519 = vmatmul.bf16.gmra.mxu0 %v1123
  %v1520 = vpop.f32.mrf.mxu0
  %v1521 = vadd.f32 %v1472, %v1520
  %v1522 = vpop.f32.mrf.mxu0
  %v1523 = vadd.f32 %v1474, %v1522
  %1524 = vmatmul.bf16.gmra.mxu0 %v1139
  %v1525 = vpop.f32.mrf.mxu0
  %v1526 = vadd.f32 %v1477, %v1525
  %v1527 = vpop.f32.mrf.mxu0
  %v1528 = vadd.f32 %v1479, %v1527
  %1529 = vmatmul.bf16.gmra.mxu0 %v1155
  %v1530 = vpop.f32.mrf.mxu0
  %v1531 = vadd.f32 %v1482, %v1530
  %v1532 = vpop.f32.mrf.mxu0
  %v1533 = vadd.f32 %v1484, %v1532
  %1534 = vmatmul.bf16.gmra.mxu0 %v1167
  %v1535 = vpop.f32.mrf.mxu0
  %v1536 = vadd.f32 %v1487, %v1535
  %v1537 = vpop.f32.mrf.mxu0
  %v1538 = vadd.f32 %v1489, %v1537
  %1539 = vdwg.mxu0
  %v1572 = vunpack.c.l.b16 %v970
  %v1573 = vunpack.c.h.b16 %v970
  %v1574 = vunpack.c.l.b16 %v971
  %v1575 = vunpack.c.h.b16 %v971
  %v1576 = vunpack.c.l.b16 %v972
  %v1577 = vunpack.c.h.b16 %v972
  %v1578 = vunpack.c.l.b16 %v973
  %v1579 = vunpack.c.h.b16 %v973
  %v1580 = vunpack.c.l.b16 %v974
  %v1581 = vunpack.c.h.b16 %v974
  %v1582 = vunpack.c.l.b16 %v975
  %v1583 = vunpack.c.h.b16 %v975
  %v1584 = vunpack.c.l.b16 %v976
  %v1585 = vunpack.c.h.b16 %v976
  %v1586 = vunpack.c.l.b16 %v977
  %v1587 = vunpack.c.h.b16 %v977
  %v1588 = vunpack.c.l.b16 %v978
  %v1589 = vunpack.c.h.b16 %v978
  %v1590 = vunpack.c.l.b16 %v979
  %v1591 = vunpack.c.h.b16 %v979
  %v1592 = vunpack.c.l.b16 %v980
  %v1593 = vunpack.c.h.b16 %v980
  %v1594 = vunpack.c.l.b16 %v981
  %v1595 = vunpack.c.h.b16 %v981
  %v1596 = vunpack.c.l.b16 %v982
  %v1597 = vunpack.c.h.b16 %v982
  %v1598 = vunpack.c.l.b16 %v983
  %v1599 = vunpack.c.h.b16 %v983
  %v1600 = vunpack.c.l.b16 %v984
  %v1601 = vunpack.c.h.b16 %v984
  %v1602 = vunpack.c.l.b16 %v985
  %v1603 = vunpack.c.h.b16 %v985
  %v1604 = vunpack.c.l.b16 %v986
  %v1605 = vunpack.c.h.b16 %v986
  %v1606 = vunpack.c.l.b16 %v987
  %v1607 = vunpack.c.h.b16 %v987
  %v1608 = vunpack.c.l.b16 %v988
  %v1609 = vunpack.c.h.b16 %v988
  %v1610 = vunpack.c.l.b16 %v989
  %v1611 = vunpack.c.h.b16 %v989
  %v1612 = vunpack.c.l.b16 %v990
  %v1613 = vunpack.c.h.b16 %v990
  %v1614 = vunpack.c.l.b16 %v991
  %v1615 = vunpack.c.h.b16 %v991
  %v1616 = vunpack.c.l.b16 %v992
  %v1617 = vunpack.c.h.b16 %v992
  %v1618 = vunpack.c.l.b16 %v993
  %v1619 = vunpack.c.h.b16 %v993
  %v1620 = vunpack.c.l.b16 %v994
  %v1621 = vunpack.c.h.b16 %v994
  %v1622 = vunpack.c.l.b16 %v995
  %v1623 = vunpack.c.h.b16 %v995
  %v1624 = vunpack.c.l.b16 %v996
  %v1625 = vunpack.c.h.b16 %v996
  %v1626 = vunpack.c.l.b16 %v997
  %v1627 = vunpack.c.h.b16 %v997
  %v1628 = vunpack.c.l.b16 %v998
  %v1629 = vunpack.c.h.b16 %v998
  %v1630 = vunpack.c.l.b16 %v999
  %v1631 = vunpack.c.h.b16 %v999
  %v1632 = vunpack.c.l.b16 %v1000
  %v1633 = vunpack.c.h.b16 %v1000
  %v1634 = vunpack.c.l.b16 %v1001
  %v1635 = vunpack.c.h.b16 %v1001
  %v1636 = vpack.c.b16 %v1574, %v1572
  %v1637 = vpack.c.b16 %v1575, %v1573
  %v1638 = vpack.c.b16 %v1578, %v1576
  %v1639 = vpack.c.b16 %v1579, %v1577
  %v1640 = vpack.c.b16 %v1582, %v1580
  %v1641 = vpack.c.b16 %v1583, %v1581
  %v1642 = vpack.c.b16 %v1586, %v1584
  %v1643 = vpack.c.b16 %v1587, %v1585
  %v1644 = vpack.c.b16 %v1590, %v1588
  %v1645 = vpack.c.b16 %v1591, %v1589
  %v1646 = vpack.c.b16 %v1594, %v1592
  %v1647 = vpack.c.b16 %v1595, %v1593
  %v1648 = vpack.c.b16 %v1598, %v1596
  %v1649 = vpack.c.b16 %v1599, %v1597
  %v1650 = vpack.c.b16 %v1602, %v1600
  %v1651 = vpack.c.b16 %v1603, %v1601
  %v1652 = vpack.c.b16 %v1606, %v1604
  %v1653 = vpack.c.b16 %v1607, %v1605
  %v1654 = vpack.c.b16 %v1610, %v1608
  %v1655 = vpack.c.b16 %v1611, %v1609
  %v1656 = vpack.c.b16 %v1614, %v1612
  %v1657 = vpack.c.b16 %v1615, %v1613
  %v1658 = vpack.c.b16 %v1618, %v1616
  %v1659 = vpack.c.b16 %v1619, %v1617
  %v1660 = vpack.c.b16 %v1622, %v1620
  %v1661 = vpack.c.b16 %v1623, %v1621
  %v1662 = vpack.c.b16 %v1626, %v1624
  %v1663 = vpack.c.b16 %v1627, %v1625
  %v1664 = vpack.c.b16 %v1630, %v1628
  %v1665 = vpack.c.b16 %v1631, %v1629
  %v1666 = vpack.c.b16 %v1634, %v1632
  %v1667 = vpack.c.b16 %v1635, %v1633
  %1700 = vmatpush.bf16.msra.mxu0 %v1650
  %1701 = vmatpush.bf16.msra.mxu0 %v1648
  %1702 = vmatpush.bf16.msra.mxu0 %v1646
  %1703 = vmatpush.bf16.msra.mxu0 %v1644
  %1704 = vmatpush.bf16.msra.mxu0 %v1642
  %1705 = vmatpush.bf16.msra.mxu0 %v1640
  %1706 = vmatpush.bf16.msra.mxu0 %v1638
  %1707 = vmatpush.bf16.msra.mxu0 %v1636
  %1708 = vmatmul.bf16.gmra.mxu0 %v938
  %v1709 = vpop.f32.mrf.mxu0
  %v1710 = vadd.f32 %v1403, %v1709
  %v1711 = vpop.f32.mrf.mxu0
  %v1712 = vadd.f32 %v1405, %v1711
  %1713 = vmatmul.bf16.gmra.mxu0 %v940
  %v1714 = vpop.f32.mrf.mxu0
  %v1715 = vadd.f32 %v1408, %v1714
  %v1716 = vpop.f32.mrf.mxu0
  %v1717 = vadd.f32 %v1410, %v1716
  %1718 = vmatmul.bf16.gmra.mxu0 %v942
  %v1719 = vpop.f32.mrf.mxu0
  %v1720 = vadd.f32 %v1413, %v1719
  %v1721 = vpop.f32.mrf.mxu0
  %v1722 = vadd.f32 %v1415, %v1721
  %1723 = vmatmul.bf16.gmra.mxu0 %v944
  %v1724 = vpop.f32.mrf.mxu0
  %v1725 = vadd.f32 %v1418, %v1724
  %v1726 = vpop.f32.mrf.mxu0
  %v1727 = vadd.f32 %v1420, %v1726
  %1728 = vmatmul.bf16.gmra.mxu0 %v946
  %v1729 = vpop.f32.mrf.mxu0
  %v1730 = vadd.f32 %v1423, %v1729
  %v1731 = vpop.f32.mrf.mxu0
  %v1732 = vadd.f32 %v1425, %v1731
  %1733 = vmatmul.bf16.gmra.mxu0 %v948
  %v1734 = vpop.f32.mrf.mxu0
  %v1735 = vadd.f32 %v1428, %v1734
  %v1736 = vpop.f32.mrf.mxu0
  %v1737 = vadd.f32 %v1430, %v1736
  %1738 = vmatmul.bf16.gmra.mxu0 %v950
  %v1739 = vpop.f32.mrf.mxu0
  %v1740 = vadd.f32 %v1433, %v1739
  %v1741 = vpop.f32.mrf.mxu0
  %v1742 = vadd.f32 %v1435, %v1741
  %1743 = vmatmul.bf16.gmra.mxu0 %v952
  %v1744 = vpop.f32.mrf.mxu0
  %v1745 = vadd.f32 %v1438, %v1744
  %v1746 = vpop.f32.mrf.mxu0
  %v1747 = vadd.f32 %v1440, %v1746
  %1748 = vdwg.mxu0
  %1749 = vmatpush.bf16.msra.mxu0 %v1666
  %1750 = vmatpush.bf16.msra.mxu0 %v1664
  %1751 = vmatpush.bf16.msra.mxu0 %v1662
  %1752 = vmatpush.bf16.msra.mxu0 %v1660
  %1753 = vmatpush.bf16.msra.mxu0 %v1658
  %1754 = vmatpush.bf16.msra.mxu0 %v1656
  %1755 = vmatpush.bf16.msra.mxu0 %v1654
  %1756 = vmatpush.bf16.msra.mxu0 %v1652
  %1757 = vmatmul.bf16.gmra.mxu0 %v939
  %v1758 = vpop.f32.mrf.mxu0
  %v1759 = vadd.f32 %v1710, %v1758
  %v1760 = vpop.f32.mrf.mxu0
  %v1761 = vadd.f32 %v1712, %v1760
  %1762 = vmatmul.bf16.gmra.mxu0 %v941
  %v1763 = vpop.f32.mrf.mxu0
  %v1764 = vadd.f32 %v1715, %v1763
  %v1765 = vpop.f32.mrf.mxu0
  %v1766 = vadd.f32 %v1717, %v1765
  %1767 = vmatmul.bf16.gmra.mxu0 %v943
  %v1768 = vpop.f32.mrf.mxu0
  %v1769 = vadd.f32 %v1720, %v1768
  %v1770 = vpop.f32.mrf.mxu0
  %v1771 = vadd.f32 %v1722, %v1770
  %1772 = vmatmul.bf16.gmra.mxu0 %v945
  %v1773 = vpop.f32.mrf.mxu0
  %v1774 = vadd.f32 %v1725, %v1773
  %v1775 = vpop.f32.mrf.mxu0
  %v1776 = vadd.f32 %v1727, %v1775
  %1777 = vmatmul.bf16.gmra.mxu0 %v947
  %v1778 = vpop.f32.mrf.mxu0
  %v1779 = vadd.f32 %v1730, %v1778
  %v1780 = vpop.f32.mrf.mxu0
  %v1781 = vadd.f32 %v1732, %v1780
  %1782 = vmatmul.bf16.gmra.mxu0 %v949
  %v1783 = vpop.f32.mrf.mxu0
  %v1784 = vadd.f32 %v1735, %v1783
  %v1785 = vpop.f32.mrf.mxu0
  %v1786 = vadd.f32 %v1737, %v1785
  %1787 = vmatmul.bf16.gmra.mxu0 %v951
  %v1788 = vpop.f32.mrf.mxu0
  %v1789 = vadd.f32 %v1740, %v1788
  %v1790 = vpop.f32.mrf.mxu0
  %v1791 = vadd.f32 %v1742, %v1790
  %1792 = vmatmul.bf16.gmra.mxu0 %v953
  %v1793 = vpop.f32.mrf.mxu0
  %v1794 = vadd.f32 %v1745, %v1793
  %v1795 = vpop.f32.mrf.mxu0
  %v1796 = vadd.f32 %v1747, %v1795
  %1797 = vdwg.mxu0
  %1798 = vmatpush.bf16.msra.mxu0 %v1651
  %1799 = vmatpush.bf16.msra.mxu0 %v1649
  %1800 = vmatpush.bf16.msra.mxu0 %v1647
  %1801 = vmatpush.bf16.msra.mxu0 %v1645
  %1802 = vmatpush.bf16.msra.mxu0 %v1643
  %1803 = vmatpush.bf16.msra.mxu0 %v1641
  %1804 = vmatpush.bf16.msra.mxu0 %v1639
  %1805 = vmatpush.bf16.msra.mxu0 %v1637
  %1806 = vmatmul.bf16.gmra.mxu0 %v938
  %v1807 = vpop.f32.mrf.mxu0
  %v1808 = vadd.f32 %v1501, %v1807
  %v1809 = vpop.f32.mrf.mxu0
  %v1810 = vadd.f32 %v1503, %v1809
  %1811 = vmatmul.bf16.gmra.mxu0 %v940
  %v1812 = vpop.f32.mrf.mxu0
  %v1813 = vadd.f32 %v1506, %v1812
  %v1814 = vpop.f32.mrf.mxu0
  %v1815 = vadd.f32 %v1508, %v1814
  %1816 = vmatmul.bf16.gmra.mxu0 %v942
  %v1817 = vpop.f32.mrf.mxu0
  %v1818 = vadd.f32 %v1511, %v1817
  %v1819 = vpop.f32.mrf.mxu0
  %v1820 = vadd.f32 %v1513, %v1819
  %1821 = vmatmul.bf16.gmra.mxu0 %v944
  %v1822 = vpop.f32.mrf.mxu0
  %v1823 = vadd.f32 %v1516, %v1822
  %v1824 = vpop.f32.mrf.mxu0
  %v1825 = vadd.f32 %v1518, %v1824
  %1826 = vmatmul.bf16.gmra.mxu0 %v946
  %v1827 = vpop.f32.mrf.mxu0
  %v1828 = vadd.f32 %v1521, %v1827
  %v1829 = vpop.f32.mrf.mxu0
  %v1830 = vadd.f32 %v1523, %v1829
  %1831 = vmatmul.bf16.gmra.mxu0 %v948
  %v1832 = vpop.f32.mrf.mxu0
  %v1833 = vadd.f32 %v1526, %v1832
  %v1834 = vpop.f32.mrf.mxu0
  %v1835 = vadd.f32 %v1528, %v1834
  %1836 = vmatmul.bf16.gmra.mxu0 %v950
  %v1837 = vpop.f32.mrf.mxu0
  %v1838 = vadd.f32 %v1531, %v1837
  %v1839 = vpop.f32.mrf.mxu0
  %v1840 = vadd.f32 %v1533, %v1839
  %1841 = vmatmul.bf16.gmra.mxu0 %v952
  %v1842 = vpop.f32.mrf.mxu0
  %v1843 = vadd.f32 %v1536, %v1842
  %v1844 = vpop.f32.mrf.mxu0
  %v1845 = vadd.f32 %v1538, %v1844
  %1846 = vdwg.mxu0
  %1847 = vmatpush.bf16.msra.mxu0 %v1667
  %1848 = vmatpush.bf16.msra.mxu0 %v1665
  %1849 = vmatpush.bf16.msra.mxu0 %v1663
  %1850 = vmatpush.bf16.msra.mxu0 %v1661
  %1851 = vmatpush.bf16.msra.mxu0 %v1659
  %1852 = vmatpush.bf16.msra.mxu0 %v1657
  %1853 = vmatpush.bf16.msra.mxu0 %v1655
  %1854 = vmatpush.bf16.msra.mxu0 %v1653
  %1855 = vmatmul.bf16.gmra.mxu0 %v939
  %v1856 = vpop.f32.mrf.mxu0
  %v1857 = vadd.f32 %v1808, %v1856
  %v1858 = vpop.f32.mrf.mxu0
  %v1859 = vadd.f32 %v1810, %v1858
  %1860 = vmatmul.bf16.gmra.mxu0 %v941
  %v1861 = vpop.f32.mrf.mxu0
  %v1862 = vadd.f32 %v1813, %v1861
  %v1863 = vpop.f32.mrf.mxu0
  %v1864 = vadd.f32 %v1815, %v1863
  %1865 = vmatmul.bf16.gmra.mxu0 %v943
  %v1866 = vpop.f32.mrf.mxu0
  %v1867 = vadd.f32 %v1818, %v1866
  %v1868 = vpop.f32.mrf.mxu0
  %v1869 = vadd.f32 %v1820, %v1868
  %1870 = vmatmul.bf16.gmra.mxu0 %v945
  %v1871 = vpop.f32.mrf.mxu0
  %v1872 = vadd.f32 %v1823, %v1871
  %v1873 = vpop.f32.mrf.mxu0
  %v1874 = vadd.f32 %v1825, %v1873
  %1875 = vmatmul.bf16.gmra.mxu0 %v947
  %v1876 = vpop.f32.mrf.mxu0
  %v1877 = vadd.f32 %v1828, %v1876
  %v1878 = vpop.f32.mrf.mxu0
  %v1879 = vadd.f32 %v1830, %v1878
  %1880 = vmatmul.bf16.gmra.mxu0 %v949
  %v1881 = vpop.f32.mrf.mxu0
  %v1882 = vadd.f32 %v1833, %v1881
  %v1883 = vpop.f32.mrf.mxu0
  %v1884 = vadd.f32 %v1835, %v1883
  %1885 = vmatmul.bf16.gmra.mxu0 %v951
  %v1886 = vpop.f32.mrf.mxu0
  %v1887 = vadd.f32 %v1838, %v1886
  %v1888 = vpop.f32.mrf.mxu0
  %v1889 = vadd.f32 %v1840, %v1888
  %1890 = vmatmul.bf16.gmra.mxu0 %v953
  %v1891 = vpop.f32.mrf.mxu0
  %v1892 = vadd.f32 %v1843, %v1891
  %v1893 = vpop.f32.mrf.mxu0
  %v1894 = vadd.f32 %v1845, %v1893
  %1895 = vdwg.mxu0
  %s1896 = scalar_lea.vmem %s3, 512
  %v1897 = vld [vmem:[%s1896] sm:$0xff]
  %v1898 = vld [vmem:[%s1896 + $0x8] sm:$0xff]
  %v1899 = vld [vmem:[%s1896 + $0x10] sm:$0xff]
  %v1900 = vld [vmem:[%s1896 + $0x18] sm:$0xff]
  %v1901 = vld [vmem:[%s1896 + $0x20] sm:$0xff]
  %v1902 = vld [vmem:[%s1896 + $0x28] sm:$0xff]
  %v1903 = vld [vmem:[%s1896 + $0x30] sm:$0xff]
  %v1904 = vld [vmem:[%s1896 + $0x38] sm:$0xff]
  %v1905 = vld [vmem:[%s1896 + $0x40] sm:$0xff]
  %v1906 = vld [vmem:[%s1896 + $0x48] sm:$0xff]
  %v1907 = vld [vmem:[%s1896 + $0x50] sm:$0xff]
  %v1908 = vld [vmem:[%s1896 + $0x58] sm:$0xff]
  %v1909 = vld [vmem:[%s1896 + $0x60] sm:$0xff]
  %v1910 = vld [vmem:[%s1896 + $0x68] sm:$0xff]
  %v1911 = vld [vmem:[%s1896 + $0x70] sm:$0xff]
  %v1912 = vld [vmem:[%s1896 + $0x78] sm:$0xff]
  %v1913 = vld [vmem:[%s1896 + $0x80] sm:$0xff]
  %v1914 = vld [vmem:[%s1896 + $0x88] sm:$0xff]
  %v1915 = vld [vmem:[%s1896 + $0x90] sm:$0xff]
  %v1916 = vld [vmem:[%s1896 + $0x98] sm:$0xff]
  %v1917 = vld [vmem:[%s1896 + $0xa0] sm:$0xff]
  %v1918 = vld [vmem:[%s1896 + $0xa8] sm:$0xff]
  %v1919 = vld [vmem:[%s1896 + $0xb0] sm:$0xff]
  %v1920 = vld [vmem:[%s1896 + $0xb8] sm:$0xff]
  %v1921 = vld [vmem:[%s1896 + $0xc0] sm:$0xff]
  %v1922 = vld [vmem:[%s1896 + $0xc8] sm:$0xff]
  %v1923 = vld [vmem:[%s1896 + $0xd0] sm:$0xff]
  %v1924 = vld [vmem:[%s1896 + $0xd8] sm:$0xff]
  %v1925 = vld [vmem:[%s1896 + $0xe0] sm:$0xff]
  %v1926 = vld [vmem:[%s1896 + $0xe8] sm:$0xff]
  %v1927 = vld [vmem:[%s1896 + $0xf0] sm:$0xff]
  %v1928 = vld [vmem:[%s1896 + $0xf8] sm:$0xff]
  %vm1930 = vcmask 1046528
  %v1931 = vrot.slane %v938, 1
  %v1932 = vrot.slane %v940, 1
  %v1933 = vsel %vm1930, %v1931, %v1932
  %v1934 = vrot.slane %v939, 1
  %v1935 = vrot.slane %v941, 1
  %v1936 = vsel %vm1930, %v1934, %v1935
  %v1937 = vrot.slane %v942, 1
  %v1938 = vsel %vm1930, %v1932, %v1937
  %v1939 = vrot.slane %v943, 1
  %v1940 = vsel %vm1930, %v1935, %v1939
  %v1941 = vrot.slane %v944, 1
  %v1942 = vsel %vm1930, %v1937, %v1941
  %v1943 = vrot.slane %v945, 1
  %v1944 = vsel %vm1930, %v1939, %v1943
  %v1945 = vrot.slane %v946, 1
  %v1946 = vsel %vm1930, %v1941, %v1945
  %v1947 = vrot.slane %v947, 1
  %v1948 = vsel %vm1930, %v1943, %v1947
  %v1949 = vrot.slane %v948, 1
  %v1950 = vsel %vm1930, %v1945, %v1949
  %v1951 = vrot.slane %v949, 1
  %v1952 = vsel %vm1930, %v1947, %v1951
  %v1953 = vrot.slane %v950, 1
  %v1954 = vsel %vm1930, %v1949, %v1953
  %v1955 = vrot.slane %v951, 1
  %v1956 = vsel %vm1930, %v1951, %v1955
  %v1957 = vrot.slane %v952, 1
  %v1958 = vsel %vm1930, %v1953, %v1957
  %v1959 = vrot.slane %v953, 1
  %v1960 = vsel %vm1930, %v1955, %v1959
  %v1961 = vrot.slane 0, 1
  %v1962 = vsel %vm1930, %v1957, %v1961
  %v1963 = vsel %vm1930, %v1959, %v1961
  %v2012 = vunpack.c.l.b16 %v1897
  %v2013 = vunpack.c.h.b16 %v1897
  %v2014 = vunpack.c.l.b16 %v1898
  %v2015 = vunpack.c.h.b16 %v1898
  %v2016 = vunpack.c.l.b16 %v1899
  %v2017 = vunpack.c.h.b16 %v1899
  %v2018 = vunpack.c.l.b16 %v1900
  %v2019 = vunpack.c.h.b16 %v1900
  %v2020 = vunpack.c.l.b16 %v1901
  %v2021 = vunpack.c.h.b16 %v1901
  %v2022 = vunpack.c.l.b16 %v1902
  %v2023 = vunpack.c.h.b16 %v1902
  %v2024 = vunpack.c.l.b16 %v1903
  %v2025 = vunpack.c.h.b16 %v1903
  %v2026 = vunpack.c.l.b16 %v1904
  %v2027 = vunpack.c.h.b16 %v1904
  %v2028 = vunpack.c.l.b16 %v1905
  %v2029 = vunpack.c.h.b16 %v1905
  %v2030 = vunpack.c.l.b16 %v1906
  %v2031 = vunpack.c.h.b16 %v1906
  %v2032 = vunpack.c.l.b16 %v1907
  %v2033 = vunpack.c.h.b16 %v1907
  %v2034 = vunpack.c.l.b16 %v1908
  %v2035 = vunpack.c.h.b16 %v1908
  %v2036 = vunpack.c.l.b16 %v1909
  %v2037 = vunpack.c.h.b16 %v1909
  %v2038 = vunpack.c.l.b16 %v1910
  %v2039 = vunpack.c.h.b16 %v1910
  %v2040 = vunpack.c.l.b16 %v1911
  %v2041 = vunpack.c.h.b16 %v1911
  %v2042 = vunpack.c.l.b16 %v1912
  %v2043 = vunpack.c.h.b16 %v1912
  %v2044 = vunpack.c.l.b16 %v1913
  %v2045 = vunpack.c.h.b16 %v1913
  %v2046 = vunpack.c.l.b16 %v1914
  %v2047 = vunpack.c.h.b16 %v1914
  %v2048 = vunpack.c.l.b16 %v1915
  %v2049 = vunpack.c.h.b16 %v1915
  %v2050 = vunpack.c.l.b16 %v1916
  %v2051 = vunpack.c.h.b16 %v1916
  %v2052 = vunpack.c.l.b16 %v1917
  %v2053 = vunpack.c.h.b16 %v1917
  %v2054 = vunpack.c.l.b16 %v1918
  %v2055 = vunpack.c.h.b16 %v1918
  %v2056 = vunpack.c.l.b16 %v1919
  %v2057 = vunpack.c.h.b16 %v1919
  %v2058 = vunpack.c.l.b16 %v1920
  %v2059 = vunpack.c.h.b16 %v1920
  %v2060 = vunpack.c.l.b16 %v1921
  %v2061 = vunpack.c.h.b16 %v1921
  %v2062 = vunpack.c.l.b16 %v1922
  %v2063 = vunpack.c.h.b16 %v1922
  %v2064 = vunpack.c.l.b16 %v1923
  %v2065 = vunpack.c.h.b16 %v1923
  %v2066 = vunpack.c.l.b16 %v1924
  %v2067 = vunpack.c.h.b16 %v1924
  %v2068 = vunpack.c.l.b16 %v1925
  %v2069 = vunpack.c.h.b16 %v1925
  %v2070 = vunpack.c.l.b16 %v1926
  %v2071 = vunpack.c.h.b16 %v1926
  %v2072 = vunpack.c.l.b16 %v1927
  %v2073 = vunpack.c.h.b16 %v1927
  %v2074 = vunpack.c.l.b16 %v1928
  %v2075 = vunpack.c.h.b16 %v1928
  %v2076 = vpack.c.b16 %v2014, %v2012
  %v2077 = vpack.c.b16 %v2015, %v2013
  %v2078 = vpack.c.b16 %v2018, %v2016
  %v2079 = vpack.c.b16 %v2019, %v2017
  %v2080 = vpack.c.b16 %v2022, %v2020
  %v2081 = vpack.c.b16 %v2023, %v2021
  %v2082 = vpack.c.b16 %v2026, %v2024
  %v2083 = vpack.c.b16 %v2027, %v2025
  %v2084 = vpack.c.b16 %v2030, %v2028
  %v2085 = vpack.c.b16 %v2031, %v2029
  %v2086 = vpack.c.b16 %v2034, %v2032
  %v2087 = vpack.c.b16 %v2035, %v2033
  %v2088 = vpack.c.b16 %v2038, %v2036
  %v2089 = vpack.c.b16 %v2039, %v2037
  %v2090 = vpack.c.b16 %v2042, %v2040
  %v2091 = vpack.c.b16 %v2043, %v2041
  %v2092 = vpack.c.b16 %v2046, %v2044
  %v2093 = vpack.c.b16 %v2047, %v2045
  %v2094 = vpack.c.b16 %v2050, %v2048
  %v2095 = vpack.c.b16 %v2051, %v2049
  %v2096 = vpack.c.b16 %v2054, %v2052
  %v2097 = vpack.c.b16 %v2055, %v2053
  %v2098 = vpack.c.b16 %v2058, %v2056
  %v2099 = vpack.c.b16 %v2059, %v2057
  %v2100 = vpack.c.b16 %v2062, %v2060
  %v2101 = vpack.c.b16 %v2063, %v2061
  %v2102 = vpack.c.b16 %v2066, %v2064
  %v2103 = vpack.c.b16 %v2067, %v2065
  %v2104 = vpack.c.b16 %v2070, %v2068
  %v2105 = vpack.c.b16 %v2071, %v2069
  %v2106 = vpack.c.b16 %v2074, %v2072
  %v2107 = vpack.c.b16 %v2075, %v2073
  %2140 = vmatpush.bf16.msra.mxu0 %v2090
  %2141 = vmatpush.bf16.msra.mxu0 %v2088
  %2142 = vmatpush.bf16.msra.mxu0 %v2086
  %2143 = vmatpush.bf16.msra.mxu0 %v2084
  %2144 = vmatpush.bf16.msra.mxu0 %v2082
  %2145 = vmatpush.bf16.msra.mxu0 %v2080
  %2146 = vmatpush.bf16.msra.mxu0 %v2078
  %2147 = vmatpush.bf16.msra.mxu0 %v2076
  %2148 = vmatmul.bf16.gmra.mxu0 %v1933
  %v2149 = vpop.f32.mrf.mxu0
  %v2150 = vadd.f32 0.0, %v2149
  %v2151 = vpop.f32.mrf.mxu0
  %v2152 = vadd.f32 0.0, %v2151
  %2153 = vmatmul.bf16.gmra.mxu0 %v1938
  %v2154 = vpop.f32.mrf.mxu0
  %v2155 = vadd.f32 0.0, %v2154
  %v2156 = vpop.f32.mrf.mxu0
  %v2157 = vadd.f32 0.0, %v2156
  %2158 = vmatmul.bf16.gmra.mxu0 %v1942
  %v2159 = vpop.f32.mrf.mxu0
  %v2160 = vadd.f32 0.0, %v2159
  %v2161 = vpop.f32.mrf.mxu0
  %v2162 = vadd.f32 0.0, %v2161
  %2163 = vmatmul.bf16.gmra.mxu0 %v1946
  %v2164 = vpop.f32.mrf.mxu0
  %v2165 = vadd.f32 0.0, %v2164
  %v2166 = vpop.f32.mrf.mxu0
  %v2167 = vadd.f32 0.0, %v2166
  %2168 = vmatmul.bf16.gmra.mxu0 %v1950
  %v2169 = vpop.f32.mrf.mxu0
  %v2170 = vadd.f32 0.0, %v2169
  %v2171 = vpop.f32.mrf.mxu0
  %v2172 = vadd.f32 0.0, %v2171
  %2173 = vmatmul.bf16.gmra.mxu0 %v1954
  %v2174 = vpop.f32.mrf.mxu0
  %v2175 = vadd.f32 0.0, %v2174
  %v2176 = vpop.f32.mrf.mxu0
  %v2177 = vadd.f32 0.0, %v2176
  %2178 = vmatmul.bf16.gmra.mxu0 %v1958
  %v2179 = vpop.f32.mrf.mxu0
  %v2180 = vadd.f32 0.0, %v2179
  %v2181 = vpop.f32.mrf.mxu0
  %v2182 = vadd.f32 0.0, %v2181
  %2183 = vmatmul.bf16.gmra.mxu0 %v1962
  %v2184 = vpop.f32.mrf.mxu0
  %v2185 = vadd.f32 0.0, %v2184
  %v2186 = vpop.f32.mrf.mxu0
  %v2187 = vadd.f32 0.0, %v2186
  %2188 = vdwg.mxu0
  %2189 = vmatpush.bf16.msra.mxu0 %v2106
  %2190 = vmatpush.bf16.msra.mxu0 %v2104
  %2191 = vmatpush.bf16.msra.mxu0 %v2102
  %2192 = vmatpush.bf16.msra.mxu0 %v2100
  %2193 = vmatpush.bf16.msra.mxu0 %v2098
  %2194 = vmatpush.bf16.msra.mxu0 %v2096
  %2195 = vmatpush.bf16.msra.mxu0 %v2094
  %2196 = vmatpush.bf16.msra.mxu0 %v2092
  %2197 = vmatmul.bf16.gmra.mxu0 %v1936
  %v2198 = vpop.f32.mrf.mxu0
  %v2199 = vadd.f32 %v2150, %v2198
  %v2200 = vpop.f32.mrf.mxu0
  %v2201 = vadd.f32 %v2152, %v2200
  %2202 = vmatmul.bf16.gmra.mxu0 %v1940
  %v2203 = vpop.f32.mrf.mxu0
  %v2204 = vadd.f32 %v2155, %v2203
  %v2205 = vpop.f32.mrf.mxu0
  %v2206 = vadd.f32 %v2157, %v2205
  %2207 = vmatmul.bf16.gmra.mxu0 %v1944
  %v2208 = vpop.f32.mrf.mxu0
  %v2209 = vadd.f32 %v2160, %v2208
  %v2210 = vpop.f32.mrf.mxu0
  %v2211 = vadd.f32 %v2162, %v2210
  %2212 = vmatmul.bf16.gmra.mxu0 %v1948
  %v2213 = vpop.f32.mrf.mxu0
  %v2214 = vadd.f32 %v2165, %v2213
  %v2215 = vpop.f32.mrf.mxu0
  %v2216 = vadd.f32 %v2167, %v2215
  %2217 = vmatmul.bf16.gmra.mxu0 %v1952
  %v2218 = vpop.f32.mrf.mxu0
  %v2219 = vadd.f32 %v2170, %v2218
  %v2220 = vpop.f32.mrf.mxu0
  %v2221 = vadd.f32 %v2172, %v2220
  %2222 = vmatmul.bf16.gmra.mxu0 %v1956
  %v2223 = vpop.f32.mrf.mxu0
  %v2224 = vadd.f32 %v2175, %v2223
  %v2225 = vpop.f32.mrf.mxu0
  %v2226 = vadd.f32 %v2177, %v2225
  %2227 = vmatmul.bf16.gmra.mxu0 %v1960
  %v2228 = vpop.f32.mrf.mxu0
  %v2229 = vadd.f32 %v2180, %v2228
  %v2230 = vpop.f32.mrf.mxu0
  %v2231 = vadd.f32 %v2182, %v2230
  %2232 = vmatmul.bf16.gmra.mxu0 %v1963
  %v2233 = vpop.f32.mrf.mxu0
  %v2234 = vadd.f32 %v2185, %v2233
  %v2235 = vpop.f32.mrf.mxu0
  %v2236 = vadd.f32 %v2187, %v2235
  %2237 = vdwg.mxu0
  %2238 = vmatpush.bf16.msra.mxu0 %v2091
  %2239 = vmatpush.bf16.msra.mxu0 %v2089
  %2240 = vmatpush.bf16.msra.mxu0 %v2087
  %2241 = vmatpush.bf16.msra.mxu0 %v2085
  %2242 = vmatpush.bf16.msra.mxu0 %v2083
  %2243 = vmatpush.bf16.msra.mxu0 %v2081
  %2244 = vmatpush.bf16.msra.mxu0 %v2079
  %2245 = vmatpush.bf16.msra.mxu0 %v2077
  %2246 = vmatmul.bf16.gmra.mxu0 %v1933
  %v2247 = vpop.f32.mrf.mxu0
  %v2248 = vadd.f32 0.0, %v2247
  %v2249 = vpop.f32.mrf.mxu0
  %v2250 = vadd.f32 0.0, %v2249
  %2251 = vmatmul.bf16.gmra.mxu0 %v1938
  %v2252 = vpop.f32.mrf.mxu0
  %v2253 = vadd.f32 0.0, %v2252
  %v2254 = vpop.f32.mrf.mxu0
  %v2255 = vadd.f32 0.0, %v2254
  %2256 = vmatmul.bf16.gmra.mxu0 %v1942
  %v2257 = vpop.f32.mrf.mxu0
  %v2258 = vadd.f32 0.0, %v2257
  %v2259 = vpop.f32.mrf.mxu0
  %v2260 = vadd.f32 0.0, %v2259
  %2261 = vmatmul.bf16.gmra.mxu0 %v1946
  %v2262 = vpop.f32.mrf.mxu0
  %v2263 = vadd.f32 0.0, %v2262
  %v2264 = vpop.f32.mrf.mxu0
  %v2265 = vadd.f32 0.0, %v2264
  %2266 = vmatmul.bf16.gmra.mxu0 %v1950
  %v2267 = vpop.f32.mrf.mxu0
  %v2268 = vadd.f32 0.0, %v2267
  %v2269 = vpop.f32.mrf.mxu0
  %v2270 = vadd.f32 0.0, %v2269
  %2271 = vmatmul.bf16.gmra.mxu0 %v1954
  %v2272 = vpop.f32.mrf.mxu0
  %v2273 = vadd.f32 0.0, %v2272
  %v2274 = vpop.f32.mrf.mxu0
  %v2275 = vadd.f32 0.0, %v2274
  %2276 = vmatmul.bf16.gmra.mxu0 %v1958
  %v2277 = vpop.f32.mrf.mxu0
  %v2278 = vadd.f32 0.0, %v2277
  %v2279 = vpop.f32.mrf.mxu0
  %v2280 = vadd.f32 0.0, %v2279
  %2281 = vmatmul.bf16.gmra.mxu0 %v1962
  %v2282 = vpop.f32.mrf.mxu0
  %v2283 = vadd.f32 0.0, %v2282
  %v2284 = vpop.f32.mrf.mxu0
  %v2285 = vadd.f32 0.0, %v2284
  %2286 = vdwg.mxu0
  %2287 = vmatpush.bf16.msra.mxu0 %v2107
  %2288 = vmatpush.bf16.msra.mxu0 %v2105
  %2289 = vmatpush.bf16.msra.mxu0 %v2103
  %2290 = vmatpush.bf16.msra.mxu0 %v2101
  %2291 = vmatpush.bf16.msra.mxu0 %v2099
  %2292 = vmatpush.bf16.msra.mxu0 %v2097
  %2293 = vmatpush.bf16.msra.mxu0 %v2095
  %2294 = vmatpush.bf16.msra.mxu0 %v2093
  %2295 = vmatmul.bf16.gmra.mxu0 %v1936
  %v2296 = vpop.f32.mrf.mxu0
  %v2297 = vadd.f32 %v2248, %v2296
  %v2298 = vpop.f32.mrf.mxu0
  %v2299 = vadd.f32 %v2250, %v2298
  %2300 = vmatmul.bf16.gmra.mxu0 %v1940
  %v2301 = vpop.f32.mrf.mxu0
  %v2302 = vadd.f32 %v2253, %v2301
  %v2303 = vpop.f32.mrf.mxu0
  %v2304 = vadd.f32 %v2255, %v2303
  %2305 = vmatmul.bf16.gmra.mxu0 %v1944
  %v2306 = vpop.f32.mrf.mxu0
  %v2307 = vadd.f32 %v2258, %v2306
  %v2308 = vpop.f32.mrf.mxu0
  %v2309 = vadd.f32 %v2260, %v2308
  %2310 = vmatmul.bf16.gmra.mxu0 %v1948
  %v2311 = vpop.f32.mrf.mxu0
  %v2312 = vadd.f32 %v2263, %v2311
  %v2313 = vpop.f32.mrf.mxu0
  %v2314 = vadd.f32 %v2265, %v2313
  %2315 = vmatmul.bf16.gmra.mxu0 %v1952
  %v2316 = vpop.f32.mrf.mxu0
  %v2317 = vadd.f32 %v2268, %v2316
  %v2318 = vpop.f32.mrf.mxu0
  %v2319 = vadd.f32 %v2270, %v2318
  %2320 = vmatmul.bf16.gmra.mxu0 %v1956
  %v2321 = vpop.f32.mrf.mxu0
  %v2322 = vadd.f32 %v2273, %v2321
  %v2323 = vpop.f32.mrf.mxu0
  %v2324 = vadd.f32 %v2275, %v2323
  %2325 = vmatmul.bf16.gmra.mxu0 %v1960
  %v2326 = vpop.f32.mrf.mxu0
  %v2327 = vadd.f32 %v2278, %v2326
  %v2328 = vpop.f32.mrf.mxu0
  %v2329 = vadd.f32 %v2280, %v2328
  %2330 = vmatmul.bf16.gmra.mxu0 %v1963
  %v2331 = vpop.f32.mrf.mxu0
  %v2332 = vadd.f32 %v2283, %v2331
  %v2333 = vpop.f32.mrf.mxu0
  %v2334 = vadd.f32 %v2285, %v2333
  %2335 = vdwg.mxu0
  %v2336 = vadd.f32 %v1759, %v2199
  %v2337 = vadd.f32 %v1857, %v2297
  %v2338 = vadd.f32 %v1761, %v2201
  %v2339 = vadd.f32 %v1859, %v2299
  %v2340 = vadd.f32 %v1764, %v2204
  %v2341 = vadd.f32 %v1862, %v2302
  %v2342 = vadd.f32 %v1766, %v2206
  %v2343 = vadd.f32 %v1864, %v2304
  %v2344 = vadd.f32 %v1769, %v2209
  %v2345 = vadd.f32 %v1867, %v2307
  %v2346 = vadd.f32 %v1771, %v2211
  %v2347 = vadd.f32 %v1869, %v2309
  %v2348 = vadd.f32 %v1774, %v2214
  %v2349 = vadd.f32 %v1872, %v2312
  %v2350 = vadd.f32 %v1776, %v2216
  %v2351 = vadd.f32 %v1874, %v2314
  %v2352 = vadd.f32 %v1779, %v2219
  %v2353 = vadd.f32 %v1877, %v2317
  %v2354 = vadd.f32 %v1781, %v2221
  %v2355 = vadd.f32 %v1879, %v2319
  %v2356 = vadd.f32 %v1784, %v2224
  %v2357 = vadd.f32 %v1882, %v2322
  %v2358 = vadd.f32 %v1786, %v2226
  %v2359 = vadd.f32 %v1884, %v2324
  %v2360 = vadd.f32 %v1789, %v2229
  %v2361 = vadd.f32 %v1887, %v2327
  %v2362 = vadd.f32 %v1791, %v2231
  %v2363 = vadd.f32 %v1889, %v2329
  %v2364 = vadd.f32 %v1794, %v2234
  %v2365 = vadd.f32 %v1892, %v2332
  %v2366 = vadd.f32 %v1796, %v2236
  %v2367 = vadd.f32 %v1894, %v2334
  %s2368 = scalar_lea.vmem %s3, 768
  %v2369 = vld [vmem:[%s2368] sm:$0xff]
  %v2370 = vld [vmem:[%s2368 + $0x8] sm:$0xff]
  %v2371 = vld [vmem:[%s2368 + $0x10] sm:$0xff]
  %v2372 = vld [vmem:[%s2368 + $0x18] sm:$0xff]
  %v2373 = vld [vmem:[%s2368 + $0x20] sm:$0xff]
  %v2374 = vld [vmem:[%s2368 + $0x28] sm:$0xff]
  %v2375 = vld [vmem:[%s2368 + $0x30] sm:$0xff]
  %v2376 = vld [vmem:[%s2368 + $0x38] sm:$0xff]
  %v2377 = vld [vmem:[%s2368 + $0x40] sm:$0xff]
  %v2378 = vld [vmem:[%s2368 + $0x48] sm:$0xff]
  %v2379 = vld [vmem:[%s2368 + $0x50] sm:$0xff]
  %v2380 = vld [vmem:[%s2368 + $0x58] sm:$0xff]
  %v2381 = vld [vmem:[%s2368 + $0x60] sm:$0xff]
  %v2382 = vld [vmem:[%s2368 + $0x68] sm:$0xff]
  %v2383 = vld [vmem:[%s2368 + $0x70] sm:$0xff]
  %v2384 = vld [vmem:[%s2368 + $0x78] sm:$0xff]
  %v2385 = vld [vmem:[%s2368 + $0x80] sm:$0xff]
  %v2386 = vld [vmem:[%s2368 + $0x88] sm:$0xff]
  %v2387 = vld [vmem:[%s2368 + $0x90] sm:$0xff]
  %v2388 = vld [vmem:[%s2368 + $0x98] sm:$0xff]
  %v2389 = vld [vmem:[%s2368 + $0xa0] sm:$0xff]
  %v2390 = vld [vmem:[%s2368 + $0xa8] sm:$0xff]
  %v2391 = vld [vmem:[%s2368 + $0xb0] sm:$0xff]
  %v2392 = vld [vmem:[%s2368 + $0xb8] sm:$0xff]
  %v2393 = vld [vmem:[%s2368 + $0xc0] sm:$0xff]
  %v2394 = vld [vmem:[%s2368 + $0xc8] sm:$0xff]
  %v2395 = vld [vmem:[%s2368 + $0xd0] sm:$0xff]
  %v2396 = vld [vmem:[%s2368 + $0xd8] sm:$0xff]
  %v2397 = vld [vmem:[%s2368 + $0xe0] sm:$0xff]
  %v2398 = vld [vmem:[%s2368 + $0xe8] sm:$0xff]
  %v2399 = vld [vmem:[%s2368 + $0xf0] sm:$0xff]
  %v2400 = vld [vmem:[%s2368 + $0xf8] sm:$0xff]
  %vm2401 = vsmask.f32 6400
  %v2402 = vrot.slane %v1037, 1
  %v2403 = vrot.slane %v1039, 2
  %v2404 = vor.u32 %v2402, %v2403
  %v2405 = vrot.slane %v1060, 1
  %v2406 = vrot.slane %v1044, 2
  %v2407 = vor.u32 %v2405, %v2406
  %v2408 = vsel %vm2401, %v2404, %v2407
  %v2409 = vrot.slane %v1049, 1
  %v2410 = vrot.slane %v1051, 2
  %v2411 = vor.u32 %v2409, %v2410
  %v2412 = vrot.slane %v1068, 1
  %v2413 = vrot.slane %v1056, 2
  %v2414 = vor.u32 %v2412, %v2413
  %v2415 = vsel %vm2401, %v2411, %v2414
  %v2416 = vrot.slane %v1076, 1
  %v2417 = vrot.slane %v1064, 2
  %v2418 = vor.u32 %v2416, %v2417
  %v2419 = vsel %vm2401, %v2407, %v2418
  %v2420 = vrot.slane %v1084, 1
  %v2421 = vrot.slane %v1072, 2
  %v2422 = vor.u32 %v2420, %v2421
  %v2423 = vsel %vm2401, %v2414, %v2422
  %v2424 = vrot.slane %v1092, 1
  %v2425 = vrot.slane %v1080, 2
  %v2426 = vor.u32 %v2424, %v2425
  %v2427 = vsel %vm2401, %v2418, %v2426
  %v2428 = vrot.slane %v1100, 1
  %v2429 = vrot.slane %v1088, 2
  %v2430 = vor.u32 %v2428, %v2429
  %v2431 = vsel %vm2401, %v2422, %v2430
  %v2432 = vrot.slane %v1108, 1
  %v2433 = vrot.slane %v1096, 2
  %v2434 = vor.u32 %v2432, %v2433
  %v2435 = vsel %vm2401, %v2426, %v2434
  %v2436 = vrot.slane %v1116, 1
  %v2437 = vrot.slane %v1104, 2
  %v2438 = vor.u32 %v2436, %v2437
  %v2439 = vsel %vm2401, %v2430, %v2438
  %v2440 = vrot.slane %v1124, 1
  %v2441 = vrot.slane %v1112, 2
  %v2442 = vor.u32 %v2440, %v2441
  %v2443 = vsel %vm2401, %v2434, %v2442
  %v2444 = vrot.slane %v1132, 1
  %v2445 = vrot.slane %v1120, 2
  %v2446 = vor.u32 %v2444, %v2445
  %v2447 = vsel %vm2401, %v2438, %v2446
  %v2448 = vrot.slane %v1140, 1
  %v2449 = vrot.slane %v1128, 2
  %v2450 = vor.u32 %v2448, %v2449
  %v2451 = vsel %vm2401, %v2442, %v2450
  %v2452 = vrot.slane %v1148, 1
  %v2453 = vrot.slane %v1136, 2
  %v2454 = vor.u32 %v2452, %v2453
  %v2455 = vsel %vm2401, %v2446, %v2454
  %v2456 = vrot.slane %v1156, 1
  %v2457 = vrot.slane %v1144, 2
  %v2458 = vor.u32 %v2456, %v2457
  %v2459 = vsel %vm2401, %v2450, %v2458
  %v2460 = vrot.slane %v1164, 1
  %v2461 = vrot.slane %v1152, 2
  %v2462 = vor.u32 %v2460, %v2461
  %v2463 = vsel %vm2401, %v2454, %v2462
  %v2464 = vshrl.u32 0, 16
  %v2466 = vrot.slane %v2464, 1
  %v2467 = vrot.slane %v1160, 2
  %v2468 = vor.u32 %v2466, %v2467
  %v2469 = vsel %vm2401, %v2458, %v2468
  %v2470 = vsel %vm2401, %v2462, %v2468
  %v2519 = vunpack.c.l.b16 %v2369
  %v2520 = vunpack.c.h.b16 %v2369
  %v2521 = vunpack.c.l.b16 %v2370
  %v2522 = vunpack.c.h.b16 %v2370
  %v2523 = vunpack.c.l.b16 %v2371
  %v2524 = vunpack.c.h.b16 %v2371
  %v2525 = vunpack.c.l.b16 %v2372
  %v2526 = vunpack.c.h.b16 %v2372
  %v2527 = vunpack.c.l.b16 %v2373
  %v2528 = vunpack.c.h.b16 %v2373
  %v2529 = vunpack.c.l.b16 %v2374
  %v2530 = vunpack.c.h.b16 %v2374
  %v2531 = vunpack.c.l.b16 %v2375
  %v2532 = vunpack.c.h.b16 %v2375
  %v2533 = vunpack.c.l.b16 %v2376
  %v2534 = vunpack.c.h.b16 %v2376
  %v2535 = vunpack.c.l.b16 %v2377
  %v2536 = vunpack.c.h.b16 %v2377
  %v2537 = vunpack.c.l.b16 %v2378
  %v2538 = vunpack.c.h.b16 %v2378
  %v2539 = vunpack.c.l.b16 %v2379
  %v2540 = vunpack.c.h.b16 %v2379
  %v2541 = vunpack.c.l.b16 %v2380
  %v2542 = vunpack.c.h.b16 %v2380
  %v2543 = vunpack.c.l.b16 %v2381
  %v2544 = vunpack.c.h.b16 %v2381
  %v2545 = vunpack.c.l.b16 %v2382
  %v2546 = vunpack.c.h.b16 %v2382
  %v2547 = vunpack.c.l.b16 %v2383
  %v2548 = vunpack.c.h.b16 %v2383
  %v2549 = vunpack.c.l.b16 %v2384
  %v2550 = vunpack.c.h.b16 %v2384
  %v2551 = vunpack.c.l.b16 %v2385
  %v2552 = vunpack.c.h.b16 %v2385
  %v2553 = vunpack.c.l.b16 %v2386
  %v2554 = vunpack.c.h.b16 %v2386
  %v2555 = vunpack.c.l.b16 %v2387
  %v2556 = vunpack.c.h.b16 %v2387
  %v2557 = vunpack.c.l.b16 %v2388
  %v2558 = vunpack.c.h.b16 %v2388
  %v2559 = vunpack.c.l.b16 %v2389
  %v2560 = vunpack.c.h.b16 %v2389
  %v2561 = vunpack.c.l.b16 %v2390
  %v2562 = vunpack.c.h.b16 %v2390
  %v2563 = vunpack.c.l.b16 %v2391
  %v2564 = vunpack.c.h.b16 %v2391
  %v2565 = vunpack.c.l.b16 %v2392
  %v2566 = vunpack.c.h.b16 %v2392
  %v2567 = vunpack.c.l.b16 %v2393
  %v2568 = vunpack.c.h.b16 %v2393
  %v2569 = vunpack.c.l.b16 %v2394
  %v2570 = vunpack.c.h.b16 %v2394
  %v2571 = vunpack.c.l.b16 %v2395
  %v2572 = vunpack.c.h.b16 %v2395
  %v2573 = vunpack.c.l.b16 %v2396
  %v2574 = vunpack.c.h.b16 %v2396
  %v2575 = vunpack.c.l.b16 %v2397
  %v2576 = vunpack.c.h.b16 %v2397
  %v2577 = vunpack.c.l.b16 %v2398
  %v2578 = vunpack.c.h.b16 %v2398
  %v2579 = vunpack.c.l.b16 %v2399
  %v2580 = vunpack.c.h.b16 %v2399
  %v2581 = vunpack.c.l.b16 %v2400
  %v2582 = vunpack.c.h.b16 %v2400
  %v2583 = vpack.c.b16 %v2521, %v2519
  %v2584 = vpack.c.b16 %v2522, %v2520
  %v2585 = vpack.c.b16 %v2525, %v2523
  %v2586 = vpack.c.b16 %v2526, %v2524
  %v2587 = vpack.c.b16 %v2529, %v2527
  %v2588 = vpack.c.b16 %v2530, %v2528
  %v2589 = vpack.c.b16 %v2533, %v2531
  %v2590 = vpack.c.b16 %v2534, %v2532
  %v2591 = vpack.c.b16 %v2537, %v2535
  %v2592 = vpack.c.b16 %v2538, %v2536
  %v2593 = vpack.c.b16 %v2541, %v2539
  %v2594 = vpack.c.b16 %v2542, %v2540
  %v2595 = vpack.c.b16 %v2545, %v2543
  %v2596 = vpack.c.b16 %v2546, %v2544
  %v2597 = vpack.c.b16 %v2549, %v2547
  %v2598 = vpack.c.b16 %v2550, %v2548
  %v2599 = vpack.c.b16 %v2553, %v2551
  %v2600 = vpack.c.b16 %v2554, %v2552
  %v2601 = vpack.c.b16 %v2557, %v2555
  %v2602 = vpack.c.b16 %v2558, %v2556
  %v2603 = vpack.c.b16 %v2561, %v2559
  %v2604 = vpack.c.b16 %v2562, %v2560
  %v2605 = vpack.c.b16 %v2565, %v2563
  %v2606 = vpack.c.b16 %v2566, %v2564
  %v2607 = vpack.c.b16 %v2569, %v2567
  %v2608 = vpack.c.b16 %v2570, %v2568
  %v2609 = vpack.c.b16 %v2573, %v2571
  %v2610 = vpack.c.b16 %v2574, %v2572
  %v2611 = vpack.c.b16 %v2577, %v2575
  %v2612 = vpack.c.b16 %v2578, %v2576
  %v2613 = vpack.c.b16 %v2581, %v2579
  %v2614 = vpack.c.b16 %v2582, %v2580
  %2647 = vmatpush.bf16.msra.mxu0 %v2597
  %2648 = vmatpush.bf16.msra.mxu0 %v2595
  %2649 = vmatpush.bf16.msra.mxu0 %v2593
  %2650 = vmatpush.bf16.msra.mxu0 %v2591
  %2651 = vmatpush.bf16.msra.mxu0 %v2589
  %2652 = vmatpush.bf16.msra.mxu0 %v2587
  %2653 = vmatpush.bf16.msra.mxu0 %v2585
  %2654 = vmatpush.bf16.msra.mxu0 %v2583
  %2655 = vmatmul.bf16.gmra.mxu0 %v2408
  %v2656 = vpop.f32.mrf.mxu0
  %v2657 = vadd.f32 0.0, %v2656
  %v2658 = vpop.f32.mrf.mxu0
  %v2659 = vadd.f32 0.0, %v2658
  %2660 = vmatmul.bf16.gmra.mxu0 %v2419
  %v2661 = vpop.f32.mrf.mxu0
  %v2662 = vadd.f32 0.0, %v2661
  %v2663 = vpop.f32.mrf.mxu0
  %v2664 = vadd.f32 0.0, %v2663
  %2665 = vmatmul.bf16.gmra.mxu0 %v2427
  %v2666 = vpop.f32.mrf.mxu0
  %v2667 = vadd.f32 0.0, %v2666
  %v2668 = vpop.f32.mrf.mxu0
  %v2669 = vadd.f32 0.0, %v2668
  %2670 = vmatmul.bf16.gmra.mxu0 %v2435
  %v2671 = vpop.f32.mrf.mxu0
  %v2672 = vadd.f32 0.0, %v2671
  %v2673 = vpop.f32.mrf.mxu0
  %v2674 = vadd.f32 0.0, %v2673
  %2675 = vmatmul.bf16.gmra.mxu0 %v2443
  %v2676 = vpop.f32.mrf.mxu0
  %v2677 = vadd.f32 0.0, %v2676
  %v2678 = vpop.f32.mrf.mxu0
  %v2679 = vadd.f32 0.0, %v2678
  %2680 = vmatmul.bf16.gmra.mxu0 %v2451
  %v2681 = vpop.f32.mrf.mxu0
  %v2682 = vadd.f32 0.0, %v2681
  %v2683 = vpop.f32.mrf.mxu0
  %v2684 = vadd.f32 0.0, %v2683
  %2685 = vmatmul.bf16.gmra.mxu0 %v2459
  %v2686 = vpop.f32.mrf.mxu0
  %v2687 = vadd.f32 0.0, %v2686
  %v2688 = vpop.f32.mrf.mxu0
  %v2689 = vadd.f32 0.0, %v2688
  %2690 = vmatmul.bf16.gmra.mxu0 %v2469
  %v2691 = vpop.f32.mrf.mxu0
  %v2692 = vadd.f32 0.0, %v2691
  %v2693 = vpop.f32.mrf.mxu0
  %v2694 = vadd.f32 0.0, %v2693
  %2695 = vdwg.mxu0
  %2696 = vmatpush.bf16.msra.mxu0 %v2613
  %2697 = vmatpush.bf16.msra.mxu0 %v2611
  %2698 = vmatpush.bf16.msra.mxu0 %v2609
  %2699 = vmatpush.bf16.msra.mxu0 %v2607
  %2700 = vmatpush.bf16.msra.mxu0 %v2605
  %2701 = vmatpush.bf16.msra.mxu0 %v2603
  %2702 = vmatpush.bf16.msra.mxu0 %v2601
  %2703 = vmatpush.bf16.msra.mxu0 %v2599
  %2704 = vmatmul.bf16.gmra.mxu0 %v2415
  %v2705 = vpop.f32.mrf.mxu0
  %v2706 = vadd.f32 %v2657, %v2705
  %v2707 = vpop.f32.mrf.mxu0
  %v2708 = vadd.f32 %v2659, %v2707
  %2709 = vmatmul.bf16.gmra.mxu0 %v2423
  %v2710 = vpop.f32.mrf.mxu0
  %v2711 = vadd.f32 %v2662, %v2710
  %v2712 = vpop.f32.mrf.mxu0
  %v2713 = vadd.f32 %v2664, %v2712
  %2714 = vmatmul.bf16.gmra.mxu0 %v2431
  %v2715 = vpop.f32.mrf.mxu0
  %v2716 = vadd.f32 %v2667, %v2715
  %v2717 = vpop.f32.mrf.mxu0
  %v2718 = vadd.f32 %v2669, %v2717
  %2719 = vmatmul.bf16.gmra.mxu0 %v2439
  %v2720 = vpop.f32.mrf.mxu0
  %v2721 = vadd.f32 %v2672, %v2720
  %v2722 = vpop.f32.mrf.mxu0
  %v2723 = vadd.f32 %v2674, %v2722
  %2724 = vmatmul.bf16.gmra.mxu0 %v2447
  %v2725 = vpop.f32.mrf.mxu0
  %v2726 = vadd.f32 %v2677, %v2725
  %v2727 = vpop.f32.mrf.mxu0
  %v2728 = vadd.f32 %v2679, %v2727
  %2729 = vmatmul.bf16.gmra.mxu0 %v2455
  %v2730 = vpop.f32.mrf.mxu0
  %v2731 = vadd.f32 %v2682, %v2730
  %v2732 = vpop.f32.mrf.mxu0
  %v2733 = vadd.f32 %v2684, %v2732
  %2734 = vmatmul.bf16.gmra.mxu0 %v2463
  %v2735 = vpop.f32.mrf.mxu0
  %v2736 = vadd.f32 %v2687, %v2735
  %v2737 = vpop.f32.mrf.mxu0
  %v2738 = vadd.f32 %v2689, %v2737
  %2739 = vmatmul.bf16.gmra.mxu0 %v2470
  %v2740 = vpop.f32.mrf.mxu0
  %v2741 = vadd.f32 %v2692, %v2740
  %v2742 = vpop.f32.mrf.mxu0
  %v2743 = vadd.f32 %v2694, %v2742
  %2744 = vdwg.mxu0
  %2745 = vmatpush.bf16.msra.mxu0 %v2598
  %2746 = vmatpush.bf16.msra.mxu0 %v2596
  %2747 = vmatpush.bf16.msra.mxu0 %v2594
  %2748 = vmatpush.bf16.msra.mxu0 %v2592
  %2749 = vmatpush.bf16.msra.mxu0 %v2590
  %2750 = vmatpush.bf16.msra.mxu0 %v2588
  %2751 = vmatpush.bf16.msra.mxu0 %v2586
  %2752 = vmatpush.bf16.msra.mxu0 %v2584
  %2753 = vmatmul.bf16.gmra.mxu0 %v2408
  %v2754 = vpop.f32.mrf.mxu0
  %v2755 = vadd.f32 0.0, %v2754
  %v2756 = vpop.f32.mrf.mxu0
  %v2757 = vadd.f32 0.0, %v2756
  %2758 = vmatmul.bf16.gmra.mxu0 %v2419
  %v2759 = vpop.f32.mrf.mxu0
  %v2760 = vadd.f32 0.0, %v2759
  %v2761 = vpop.f32.mrf.mxu0
  %v2762 = vadd.f32 0.0, %v2761
  %2763 = vmatmul.bf16.gmra.mxu0 %v2427
  %v2764 = vpop.f32.mrf.mxu0
  %v2765 = vadd.f32 0.0, %v2764
  %v2766 = vpop.f32.mrf.mxu0
  %v2767 = vadd.f32 0.0, %v2766
  %2768 = vmatmul.bf16.gmra.mxu0 %v2435
  %v2769 = vpop.f32.mrf.mxu0
  %v2770 = vadd.f32 0.0, %v2769
  %v2771 = vpop.f32.mrf.mxu0
  %v2772 = vadd.f32 0.0, %v2771
  %2773 = vmatmul.bf16.gmra.mxu0 %v2443
  %v2774 = vpop.f32.mrf.mxu0
  %v2775 = vadd.f32 0.0, %v2774
  %v2776 = vpop.f32.mrf.mxu0
  %v2777 = vadd.f32 0.0, %v2776
  %2778 = vmatmul.bf16.gmra.mxu0 %v2451
  %v2779 = vpop.f32.mrf.mxu0
  %v2780 = vadd.f32 0.0, %v2779
  %v2781 = vpop.f32.mrf.mxu0
  %v2782 = vadd.f32 0.0, %v2781
  %2783 = vmatmul.bf16.gmra.mxu0 %v2459
  %v2784 = vpop.f32.mrf.mxu0
  %v2785 = vadd.f32 0.0, %v2784
  %v2786 = vpop.f32.mrf.mxu0
  %v2787 = vadd.f32 0.0, %v2786
  %2788 = vmatmul.bf16.gmra.mxu0 %v2469
  %v2789 = vpop.f32.mrf.mxu0
  %v2790 = vadd.f32 0.0, %v2789
  %v2791 = vpop.f32.mrf.mxu0
  %v2792 = vadd.f32 0.0, %v2791
  %2793 = vdwg.mxu0
  %2794 = vmatpush.bf16.msra.mxu0 %v2614
  %2795 = vmatpush.bf16.msra.mxu0 %v2612
  %2796 = vmatpush.bf16.msra.mxu0 %v2610
  %2797 = vmatpush.bf16.msra.mxu0 %v2608
  %2798 = vmatpush.bf16.msra.mxu0 %v2606
  %2799 = vmatpush.bf16.msra.mxu0 %v2604
  %2800 = vmatpush.bf16.msra.mxu0 %v2602
  %2801 = vmatpush.bf16.msra.mxu0 %v2600
  %2802 = vmatmul.bf16.gmra.mxu0 %v2415
  %v2803 = vpop.f32.mrf.mxu0
  %v2804 = vadd.f32 %v2755, %v2803
  %v2805 = vpop.f32.mrf.mxu0
  %v2806 = vadd.f32 %v2757, %v2805
  %2807 = vmatmul.bf16.gmra.mxu0 %v2423
  %v2808 = vpop.f32.mrf.mxu0
  %v2809 = vadd.f32 %v2760, %v2808
  %v2810 = vpop.f32.mrf.mxu0
  %v2811 = vadd.f32 %v2762, %v2810
  %2812 = vmatmul.bf16.gmra.mxu0 %v2431
  %v2813 = vpop.f32.mrf.mxu0
  %v2814 = vadd.f32 %v2765, %v2813
  %v2815 = vpop.f32.mrf.mxu0
  %v2816 = vadd.f32 %v2767, %v2815
  %2817 = vmatmul.bf16.gmra.mxu0 %v2439
  %v2818 = vpop.f32.mrf.mxu0
  %v2819 = vadd.f32 %v2770, %v2818
  %v2820 = vpop.f32.mrf.mxu0
  %v2821 = vadd.f32 %v2772, %v2820
  %2822 = vmatmul.bf16.gmra.mxu0 %v2447
  %v2823 = vpop.f32.mrf.mxu0
  %v2824 = vadd.f32 %v2775, %v2823
  %v2825 = vpop.f32.mrf.mxu0
  %v2826 = vadd.f32 %v2777, %v2825
  %2827 = vmatmul.bf16.gmra.mxu0 %v2455
  %v2828 = vpop.f32.mrf.mxu0
  %v2829 = vadd.f32 %v2780, %v2828
  %v2830 = vpop.f32.mrf.mxu0
  %v2831 = vadd.f32 %v2782, %v2830
  %2832 = vmatmul.bf16.gmra.mxu0 %v2463
  %v2833 = vpop.f32.mrf.mxu0
  %v2834 = vadd.f32 %v2785, %v2833
  %v2835 = vpop.f32.mrf.mxu0
  %v2836 = vadd.f32 %v2787, %v2835
  %2837 = vmatmul.bf16.gmra.mxu0 %v2470
  %v2838 = vpop.f32.mrf.mxu0
  %v2839 = vadd.f32 %v2790, %v2838
  %v2840 = vpop.f32.mrf.mxu0
  %v2841 = vadd.f32 %v2792, %v2840
  %2842 = vdwg.mxu0
  %v2843 = vadd.f32 %v2336, %v2706
  %v2844 = vadd.f32 %v2337, %v2804
  %v2845 = vadd.f32 %v2338, %v2708
  %v2846 = vadd.f32 %v2339, %v2806
  %v2847 = vadd.f32 %v2340, %v2711
  %v2848 = vadd.f32 %v2341, %v2809
  %v2849 = vadd.f32 %v2342, %v2713
  %v2850 = vadd.f32 %v2343, %v2811
  %v2851 = vadd.f32 %v2344, %v2716
  %v2852 = vadd.f32 %v2345, %v2814
  %v2853 = vadd.f32 %v2346, %v2718
  %v2854 = vadd.f32 %v2347, %v2816
  %v2855 = vadd.f32 %v2348, %v2721
  %v2856 = vadd.f32 %v2349, %v2819
  %v2857 = vadd.f32 %v2350, %v2723
  %v2858 = vadd.f32 %v2351, %v2821
  %v2859 = vadd.f32 %v2352, %v2726
  %v2860 = vadd.f32 %v2353, %v2824
  %v2861 = vadd.f32 %v2354, %v2728
  %v2862 = vadd.f32 %v2355, %v2826
  %v2863 = vadd.f32 %v2356, %v2731
  %v2864 = vadd.f32 %v2357, %v2829
  %v2865 = vadd.f32 %v2358, %v2733
  %v2866 = vadd.f32 %v2359, %v2831
  %v2867 = vadd.f32 %v2360, %v2736
  %v2868 = vadd.f32 %v2361, %v2834
  %v2869 = vadd.f32 %v2362, %v2738
  %v2870 = vadd.f32 %v2363, %v2836
  %v2871 = vadd.f32 %v2364, %v2741
  %v2872 = vadd.f32 %v2365, %v2839
  %v2873 = vadd.f32 %v2366, %v2743
  %v2874 = vadd.f32 %v2367, %v2841
  %s2875 = scalar_lea.vmem %s3, 1024
  %v2876 = vld [vmem:[%s2875] sm:$0xff]
  %v2877 = vld [vmem:[%s2875 + $0x8] sm:$0xff]
  %v2878 = vld [vmem:[%s2875 + $0x10] sm:$0xff]
  %v2879 = vld [vmem:[%s2875 + $0x18] sm:$0xff]
  %v2880 = vld [vmem:[%s2875 + $0x20] sm:$0xff]
  %v2881 = vld [vmem:[%s2875 + $0x28] sm:$0xff]
  %v2882 = vld [vmem:[%s2875 + $0x30] sm:$0xff]
  %v2883 = vld [vmem:[%s2875 + $0x38] sm:$0xff]
  %v2884 = vld [vmem:[%s2875 + $0x40] sm:$0xff]
  %v2885 = vld [vmem:[%s2875 + $0x48] sm:$0xff]
  %v2886 = vld [vmem:[%s2875 + $0x50] sm:$0xff]
  %v2887 = vld [vmem:[%s2875 + $0x58] sm:$0xff]
  %v2888 = vld [vmem:[%s2875 + $0x60] sm:$0xff]
  %v2889 = vld [vmem:[%s2875 + $0x68] sm:$0xff]
  %v2890 = vld [vmem:[%s2875 + $0x70] sm:$0xff]
  %v2891 = vld [vmem:[%s2875 + $0x78] sm:$0xff]
  %v2892 = vld [vmem:[%s2875 + $0x80] sm:$0xff]
  %v2893 = vld [vmem:[%s2875 + $0x88] sm:$0xff]
  %v2894 = vld [vmem:[%s2875 + $0x90] sm:$0xff]
  %v2895 = vld [vmem:[%s2875 + $0x98] sm:$0xff]
  %v2896 = vld [vmem:[%s2875 + $0xa0] sm:$0xff]
  %v2897 = vld [vmem:[%s2875 + $0xa8] sm:$0xff]
  %v2898 = vld [vmem:[%s2875 + $0xb0] sm:$0xff]
  %v2899 = vld [vmem:[%s2875 + $0xb8] sm:$0xff]
  %v2900 = vld [vmem:[%s2875 + $0xc0] sm:$0xff]
  %v2901 = vld [vmem:[%s2875 + $0xc8] sm:$0xff]
  %v2902 = vld [vmem:[%s2875 + $0xd0] sm:$0xff]
  %v2903 = vld [vmem:[%s2875 + $0xd8] sm:$0xff]
  %v2904 = vld [vmem:[%s2875 + $0xe0] sm:$0xff]
  %v2905 = vld [vmem:[%s2875 + $0xe8] sm:$0xff]
  %v2906 = vld [vmem:[%s2875 + $0xf0] sm:$0xff]
  %v2907 = vld [vmem:[%s2875 + $0xf8] sm:$0xff]
  %vm2908 = vcmask 1045504
  %v2909 = vrot.slane %v938, 2
  %v2910 = vrot.slane %v940, 2
  %v2911 = vsel %vm2908, %v2909, %v2910
  %v2912 = vrot.slane %v939, 2
  %v2913 = vrot.slane %v941, 2
  %v2914 = vsel %vm2908, %v2912, %v2913
  %v2915 = vrot.slane %v942, 2
  %v2916 = vsel %vm2908, %v2910, %v2915
  %v2917 = vrot.slane %v943, 2
  %v2918 = vsel %vm2908, %v2913, %v2917
  %v2919 = vrot.slane %v944, 2
  %v2920 = vsel %vm2908, %v2915, %v2919
  %v2921 = vrot.slane %v945, 2
  %v2922 = vsel %vm2908, %v2917, %v2921
  %v2923 = vrot.slane %v946, 2
  %v2924 = vsel %vm2908, %v2919, %v2923
  %v2925 = vrot.slane %v947, 2
  %v2926 = vsel %vm2908, %v2921, %v2925
  %v2927 = vrot.slane %v948, 2
  %v2928 = vsel %vm2908, %v2923, %v2927
  %v2929 = vrot.slane %v949, 2
  %v2930 = vsel %vm2908, %v2925, %v2929
  %v2931 = vrot.slane %v950, 2
  %v2932 = vsel %vm2908, %v2927, %v2931
  %v2933 = vrot.slane %v951, 2
  %v2934 = vsel %vm2908, %v2929, %v2933
  %v2935 = vrot.slane %v952, 2
  %v2936 = vsel %vm2908, %v2931, %v2935
  %v2937 = vrot.slane %v953, 2
  %v2938 = vsel %vm2908, %v2933, %v2937
  %v2939 = vrot.slane 0, 2
  %v2940 = vsel %vm2908, %v2935, %v2939
  %v2941 = vsel %vm2908, %v2937, %v2939
  %v2990 = vunpack.c.l.b16 %v2876
  %v2991 = vunpack.c.h.b16 %v2876
  %v2992 = vunpack.c.l.b16 %v2877
  %v2993 = vunpack.c.h.b16 %v2877
  %v2994 = vunpack.c.l.b16 %v2878
  %v2995 = vunpack.c.h.b16 %v2878
  %v2996 = vunpack.c.l.b16 %v2879
  %v2997 = vunpack.c.h.b16 %v2879
  %v2998 = vunpack.c.l.b16 %v2880
  %v2999 = vunpack.c.h.b16 %v2880
  %v3000 = vunpack.c.l.b16 %v2881
  %v3001 = vunpack.c.h.b16 %v2881
  %v3002 = vunpack.c.l.b16 %v2882
  %v3003 = vunpack.c.h.b16 %v2882
  %v3004 = vunpack.c.l.b16 %v2883
  %v3005 = vunpack.c.h.b16 %v2883
  %v3006 = vunpack.c.l.b16 %v2884
  %v3007 = vunpack.c.h.b16 %v2884
  %v3008 = vunpack.c.l.b16 %v2885
  %v3009 = vunpack.c.h.b16 %v2885
  %v3010 = vunpack.c.l.b16 %v2886
  %v3011 = vunpack.c.h.b16 %v2886
  %v3012 = vunpack.c.l.b16 %v2887
  %v3013 = vunpack.c.h.b16 %v2887
  %v3014 = vunpack.c.l.b16 %v2888
  %v3015 = vunpack.c.h.b16 %v2888
  %v3016 = vunpack.c.l.b16 %v2889
  %v3017 = vunpack.c.h.b16 %v2889
  %v3018 = vunpack.c.l.b16 %v2890
  %v3019 = vunpack.c.h.b16 %v2890
  %v3020 = vunpack.c.l.b16 %v2891
  %v3021 = vunpack.c.h.b16 %v2891
  %v3022 = vunpack.c.l.b16 %v2892
  %v3023 = vunpack.c.h.b16 %v2892
  %v3024 = vunpack.c.l.b16 %v2893
  %v3025 = vunpack.c.h.b16 %v2893
  %v3026 = vunpack.c.l.b16 %v2894
  %v3027 = vunpack.c.h.b16 %v2894
  %v3028 = vunpack.c.l.b16 %v2895
  %v3029 = vunpack.c.h.b16 %v2895
  %v3030 = vunpack.c.l.b16 %v2896
  %v3031 = vunpack.c.h.b16 %v2896
  %v3032 = vunpack.c.l.b16 %v2897
  %v3033 = vunpack.c.h.b16 %v2897
  %v3034 = vunpack.c.l.b16 %v2898
  %v3035 = vunpack.c.h.b16 %v2898
  %v3036 = vunpack.c.l.b16 %v2899
  %v3037 = vunpack.c.h.b16 %v2899
  %v3038 = vunpack.c.l.b16 %v2900
  %v3039 = vunpack.c.h.b16 %v2900
  %v3040 = vunpack.c.l.b16 %v2901
  %v3041 = vunpack.c.h.b16 %v2901
  %v3042 = vunpack.c.l.b16 %v2902
  %v3043 = vunpack.c.h.b16 %v2902
  %v3044 = vunpack.c.l.b16 %v2903
  %v3045 = vunpack.c.h.b16 %v2903
  %v3046 = vunpack.c.l.b16 %v2904
  %v3047 = vunpack.c.h.b16 %v2904
  %v3048 = vunpack.c.l.b16 %v2905
  %v3049 = vunpack.c.h.b16 %v2905
  %v3050 = vunpack.c.l.b16 %v2906
  %v3051 = vunpack.c.h.b16 %v2906
  %v3052 = vunpack.c.l.b16 %v2907
  %v3053 = vunpack.c.h.b16 %v2907
  %v3054 = vpack.c.b16 %v2992, %v2990
  %v3055 = vpack.c.b16 %v2993, %v2991
  %v3056 = vpack.c.b16 %v2996, %v2994
  %v3057 = vpack.c.b16 %v2997, %v2995
  %v3058 = vpack.c.b16 %v3000, %v2998
  %v3059 = vpack.c.b16 %v3001, %v2999
  %v3060 = vpack.c.b16 %v3004, %v3002
  %v3061 = vpack.c.b16 %v3005, %v3003
  %v3062 = vpack.c.b16 %v3008, %v3006
  %v3063 = vpack.c.b16 %v3009, %v3007
  %v3064 = vpack.c.b16 %v3012, %v3010
  %v3065 = vpack.c.b16 %v3013, %v3011
  %v3066 = vpack.c.b16 %v3016, %v3014
  %v3067 = vpack.c.b16 %v3017, %v3015
  %v3068 = vpack.c.b16 %v3020, %v3018
  %v3069 = vpack.c.b16 %v3021, %v3019
  %v3070 = vpack.c.b16 %v3024, %v3022
  %v3071 = vpack.c.b16 %v3025, %v3023
  %v3072 = vpack.c.b16 %v3028, %v3026
  %v3073 = vpack.c.b16 %v3029, %v3027
  %v3074 = vpack.c.b16 %v3032, %v3030
  %v3075 = vpack.c.b16 %v3033, %v3031
  %v3076 = vpack.c.b16 %v3036, %v3034
  %v3077 = vpack.c.b16 %v3037, %v3035
  %v3078 = vpack.c.b16 %v3040, %v3038
  %v3079 = vpack.c.b16 %v3041, %v3039
  %v3080 = vpack.c.b16 %v3044, %v3042
  %v3081 = vpack.c.b16 %v3045, %v3043
  %v3082 = vpack.c.b16 %v3048, %v3046
  %v3083 = vpack.c.b16 %v3049, %v3047
  %v3084 = vpack.c.b16 %v3052, %v3050
  %v3085 = vpack.c.b16 %v3053, %v3051
  %3118 = vmatpush.bf16.msra.mxu0 %v3068
  %3119 = vmatpush.bf16.msra.mxu0 %v3066
  %3120 = vmatpush.bf16.msra.mxu0 %v3064
  %3121 = vmatpush.bf16.msra.mxu0 %v3062
  %3122 = vmatpush.bf16.msra.mxu0 %v3060
  %3123 = vmatpush.bf16.msra.mxu0 %v3058
  %3124 = vmatpush.bf16.msra.mxu0 %v3056
  %3125 = vmatpush.bf16.msra.mxu0 %v3054
  %3126 = vmatmul.bf16.gmra.mxu0 %v2911
  %v3127 = vpop.f32.mrf.mxu0
  %v3128 = vadd.f32 0.0, %v3127
  %v3129 = vpop.f32.mrf.mxu0
  %v3130 = vadd.f32 0.0, %v3129
  %3131 = vmatmul.bf16.gmra.mxu0 %v2916
  %v3132 = vpop.f32.mrf.mxu0
  %v3133 = vadd.f32 0.0, %v3132
  %v3134 = vpop.f32.mrf.mxu0
  %v3135 = vadd.f32 0.0, %v3134
  %3136 = vmatmul.bf16.gmra.mxu0 %v2920
  %v3137 = vpop.f32.mrf.mxu0
  %v3138 = vadd.f32 0.0, %v3137
  %v3139 = vpop.f32.mrf.mxu0
  %v3140 = vadd.f32 0.0, %v3139
  %3141 = vmatmul.bf16.gmra.mxu0 %v2924
  %v3142 = vpop.f32.mrf.mxu0
  %v3143 = vadd.f32 0.0, %v3142
  %v3144 = vpop.f32.mrf.mxu0
  %v3145 = vadd.f32 0.0, %v3144
  %3146 = vmatmul.bf16.gmra.mxu0 %v2928
  %v3147 = vpop.f32.mrf.mxu0
  %v3148 = vadd.f32 0.0, %v3147
  %v3149 = vpop.f32.mrf.mxu0
  %v3150 = vadd.f32 0.0, %v3149
  %3151 = vmatmul.bf16.gmra.mxu0 %v2932
  %v3152 = vpop.f32.mrf.mxu0
  %v3153 = vadd.f32 0.0, %v3152
  %v3154 = vpop.f32.mrf.mxu0
  %v3155 = vadd.f32 0.0, %v3154
  %3156 = vmatmul.bf16.gmra.mxu0 %v2936
  %v3157 = vpop.f32.mrf.mxu0
  %v3158 = vadd.f32 0.0, %v3157
  %v3159 = vpop.f32.mrf.mxu0
  %v3160 = vadd.f32 0.0, %v3159
  %3161 = vmatmul.bf16.gmra.mxu0 %v2940
  %v3162 = vpop.f32.mrf.mxu0
  %v3163 = vadd.f32 0.0, %v3162
  %v3164 = vpop.f32.mrf.mxu0
  %v3165 = vadd.f32 0.0, %v3164
  %3166 = vdwg.mxu0
  %3167 = vmatpush.bf16.msra.mxu0 %v3084
  %3168 = vmatpush.bf16.msra.mxu0 %v3082
  %3169 = vmatpush.bf16.msra.mxu0 %v3080
  %3170 = vmatpush.bf16.msra.mxu0 %v3078
  %3171 = vmatpush.bf16.msra.mxu0 %v3076
  %3172 = vmatpush.bf16.msra.mxu0 %v3074
  %3173 = vmatpush.bf16.msra.mxu0 %v3072
  %3174 = vmatpush.bf16.msra.mxu0 %v3070
  %3175 = vmatmul.bf16.gmra.mxu0 %v2914
  %v3176 = vpop.f32.mrf.mxu0
  %v3177 = vadd.f32 %v3128, %v3176
  %v3178 = vpop.f32.mrf.mxu0
  %v3179 = vadd.f32 %v3130, %v3178
  %3180 = vmatmul.bf16.gmra.mxu0 %v2918
  %v3181 = vpop.f32.mrf.mxu0
  %v3182 = vadd.f32 %v3133, %v3181
  %v3183 = vpop.f32.mrf.mxu0
  %v3184 = vadd.f32 %v3135, %v3183
  %3185 = vmatmul.bf16.gmra.mxu0 %v2922
  %v3186 = vpop.f32.mrf.mxu0
  %v3187 = vadd.f32 %v3138, %v3186
  %v3188 = vpop.f32.mrf.mxu0
  %v3189 = vadd.f32 %v3140, %v3188
  %3190 = vmatmul.bf16.gmra.mxu0 %v2926
  %v3191 = vpop.f32.mrf.mxu0
  %v3192 = vadd.f32 %v3143, %v3191
  %v3193 = vpop.f32.mrf.mxu0
  %v3194 = vadd.f32 %v3145, %v3193
  %3195 = vmatmul.bf16.gmra.mxu0 %v2930
  %v3196 = vpop.f32.mrf.mxu0
  %v3197 = vadd.f32 %v3148, %v3196
  %v3198 = vpop.f32.mrf.mxu0
  %v3199 = vadd.f32 %v3150, %v3198
  %3200 = vmatmul.bf16.gmra.mxu0 %v2934
  %v3201 = vpop.f32.mrf.mxu0
  %v3202 = vadd.f32 %v3153, %v3201
  %v3203 = vpop.f32.mrf.mxu0
  %v3204 = vadd.f32 %v3155, %v3203
  %3205 = vmatmul.bf16.gmra.mxu0 %v2938
  %v3206 = vpop.f32.mrf.mxu0
  %v3207 = vadd.f32 %v3158, %v3206
  %v3208 = vpop.f32.mrf.mxu0
  %v3209 = vadd.f32 %v3160, %v3208
  %3210 = vmatmul.bf16.gmra.mxu0 %v2941
  %v3211 = vpop.f32.mrf.mxu0
  %v3212 = vadd.f32 %v3163, %v3211
  %v3213 = vpop.f32.mrf.mxu0
  %v3214 = vadd.f32 %v3165, %v3213
  %3215 = vdwg.mxu0
  %3216 = vmatpush.bf16.msra.mxu0 %v3069
  %3217 = vmatpush.bf16.msra.mxu0 %v3067
  %3218 = vmatpush.bf16.msra.mxu0 %v3065
  %3219 = vmatpush.bf16.msra.mxu0 %v3063
  %3220 = vmatpush.bf16.msra.mxu0 %v3061
  %3221 = vmatpush.bf16.msra.mxu0 %v3059
  %3222 = vmatpush.bf16.msra.mxu0 %v3057
  %3223 = vmatpush.bf16.msra.mxu0 %v3055
  %3224 = vmatmul.bf16.gmra.mxu0 %v2911
  %v3225 = vpop.f32.mrf.mxu0
  %v3226 = vadd.f32 0.0, %v3225
  %v3227 = vpop.f32.mrf.mxu0
  %v3228 = vadd.f32 0.0, %v3227
  %3229 = vmatmul.bf16.gmra.mxu0 %v2916
  %v3230 = vpop.f32.mrf.mxu0
  %v3231 = vadd.f32 0.0, %v3230
  %v3232 = vpop.f32.mrf.mxu0
  %v3233 = vadd.f32 0.0, %v3232
  %3234 = vmatmul.bf16.gmra.mxu0 %v2920
  %v3235 = vpop.f32.mrf.mxu0
  %v3236 = vadd.f32 0.0, %v3235
  %v3237 = vpop.f32.mrf.mxu0
  %v3238 = vadd.f32 0.0, %v3237
  %3239 = vmatmul.bf16.gmra.mxu0 %v2924
  %v3240 = vpop.f32.mrf.mxu0
  %v3241 = vadd.f32 0.0, %v3240
  %v3242 = vpop.f32.mrf.mxu0
  %v3243 = vadd.f32 0.0, %v3242
  %3244 = vmatmul.bf16.gmra.mxu0 %v2928
  %v3245 = vpop.f32.mrf.mxu0
  %v3246 = vadd.f32 0.0, %v3245
  %v3247 = vpop.f32.mrf.mxu0
  %v3248 = vadd.f32 0.0, %v3247
  %3249 = vmatmul.bf16.gmra.mxu0 %v2932
  %v3250 = vpop.f32.mrf.mxu0
  %v3251 = vadd.f32 0.0, %v3250
  %v3252 = vpop.f32.mrf.mxu0
  %v3253 = vadd.f32 0.0, %v3252
  %3254 = vmatmul.bf16.gmra.mxu0 %v2936
  %v3255 = vpop.f32.mrf.mxu0
  %v3256 = vadd.f32 0.0, %v3255
  %v3257 = vpop.f32.mrf.mxu0
  %v3258 = vadd.f32 0.0, %v3257
  %3259 = vmatmul.bf16.gmra.mxu0 %v2940
  %v3260 = vpop.f32.mrf.mxu0
  %v3261 = vadd.f32 0.0, %v3260
  %v3262 = vpop.f32.mrf.mxu0
  %v3263 = vadd.f32 0.0, %v3262
  %3264 = vdwg.mxu0
  %3265 = vmatpush.bf16.msra.mxu0 %v3085
  %3266 = vmatpush.bf16.msra.mxu0 %v3083
  %3267 = vmatpush.bf16.msra.mxu0 %v3081
  %3268 = vmatpush.bf16.msra.mxu0 %v3079
  %3269 = vmatpush.bf16.msra.mxu0 %v3077
  %3270 = vmatpush.bf16.msra.mxu0 %v3075
  %3271 = vmatpush.bf16.msra.mxu0 %v3073
  %3272 = vmatpush.bf16.msra.mxu0 %v3071
  %3273 = vmatmul.bf16.gmra.mxu0 %v2914
  %v3274 = vpop.f32.mrf.mxu0
  %v3275 = vadd.f32 %v3226, %v3274
  %v3276 = vpop.f32.mrf.mxu0
  %v3277 = vadd.f32 %v3228, %v3276
  %3278 = vmatmul.bf16.gmra.mxu0 %v2918
  %v3279 = vpop.f32.mrf.mxu0
  %v3280 = vadd.f32 %v3231, %v3279
  %v3281 = vpop.f32.mrf.mxu0
  %v3282 = vadd.f32 %v3233, %v3281
  %3283 = vmatmul.bf16.gmra.mxu0 %v2922
  %v3284 = vpop.f32.mrf.mxu0
  %v3285 = vadd.f32 %v3236, %v3284
  %v3286 = vpop.f32.mrf.mxu0
  %v3287 = vadd.f32 %v3238, %v3286
  %3288 = vmatmul.bf16.gmra.mxu0 %v2926
  %v3289 = vpop.f32.mrf.mxu0
  %v3290 = vadd.f32 %v3241, %v3289
  %v3291 = vpop.f32.mrf.mxu0
  %v3292 = vadd.f32 %v3243, %v3291
  %3293 = vmatmul.bf16.gmra.mxu0 %v2930
  %v3294 = vpop.f32.mrf.mxu0
  %v3295 = vadd.f32 %v3246, %v3294
  %v3296 = vpop.f32.mrf.mxu0
  %v3297 = vadd.f32 %v3248, %v3296
  %3298 = vmatmul.bf16.gmra.mxu0 %v2934
  %v3299 = vpop.f32.mrf.mxu0
  %v3300 = vadd.f32 %v3251, %v3299
  %v3301 = vpop.f32.mrf.mxu0
  %v3302 = vadd.f32 %v3253, %v3301
  %3303 = vmatmul.bf16.gmra.mxu0 %v2938
  %v3304 = vpop.f32.mrf.mxu0
  %v3305 = vadd.f32 %v3256, %v3304
  %v3306 = vpop.f32.mrf.mxu0
  %v3307 = vadd.f32 %v3258, %v3306
  %3308 = vmatmul.bf16.gmra.mxu0 %v2941
  %v3309 = vpop.f32.mrf.mxu0
  %v3310 = vadd.f32 %v3261, %v3309
  %v3311 = vpop.f32.mrf.mxu0
  %v3312 = vadd.f32 %v3263, %v3311
  %3313 = vdwg.mxu0
  %v3314 = vadd.f32 %v2843, %v3177
  %v3315 = vadd.f32 %v2844, %v3275
  %v3316 = vadd.f32 %v2845, %v3179
  %v3317 = vadd.f32 %v2846, %v3277
  %v3318 = vadd.f32 %v2847, %v3182
  %v3319 = vadd.f32 %v2848, %v3280
  %v3320 = vadd.f32 %v2849, %v3184
  %v3321 = vadd.f32 %v2850, %v3282
  %v3322 = vadd.f32 %v2851, %v3187
  %v3323 = vadd.f32 %v2852, %v3285
  %v3324 = vadd.f32 %v2853, %v3189
  %v3325 = vadd.f32 %v2854, %v3287
  %v3326 = vadd.f32 %v2855, %v3192
  %v3327 = vadd.f32 %v2856, %v3290
  %v3328 = vadd.f32 %v2857, %v3194
  %v3329 = vadd.f32 %v2858, %v3292
  %v3330 = vadd.f32 %v2859, %v3197
  %v3331 = vadd.f32 %v2860, %v3295
  %v3332 = vadd.f32 %v2861, %v3199
  %v3333 = vadd.f32 %v2862, %v3297
  %v3334 = vadd.f32 %v2863, %v3202
  %v3335 = vadd.f32 %v2864, %v3300
  %v3336 = vadd.f32 %v2865, %v3204
  %v3337 = vadd.f32 %v2866, %v3302
  %v3338 = vadd.f32 %v2867, %v3207
  %v3339 = vadd.f32 %v2868, %v3305
  %v3340 = vadd.f32 %v2869, %v3209
  %v3341 = vadd.f32 %v2870, %v3307
  %v3342 = vadd.f32 %v2871, %v3212
  %v3343 = vadd.f32 %v2872, %v3310
  %v3344 = vadd.f32 %v2873, %v3214
  %v3345 = vadd.f32 %v2874, %v3312
  %v3346 = vld [vmem:[%s4] sm:$0x3]
  %v3348 = vperm.slane %v3346, 0
  %v3349 = vperm.slane %v3346, 1
  %v3352 = vadd.f32 %v3314, %v3348
  %v3353 = vadd.f32 %v3315, %v3349
  %v3354 = vadd.f32 %v3316, %v3348
  %v3355 = vadd.f32 %v3317, %v3349
  %v3356 = vadd.f32 %v3318, %v3348
  %v3357 = vadd.f32 %v3319, %v3349
  %v3358 = vadd.f32 %v3320, %v3348
  %v3359 = vadd.f32 %v3321, %v3349
  %v3360 = vadd.f32 %v3322, %v3348
  %v3361 = vadd.f32 %v3323, %v3349
  %v3362 = vadd.f32 %v3324, %v3348
  %v3363 = vadd.f32 %v3325, %v3349
  %v3364 = vadd.f32 %v3326, %v3348
  %v3365 = vadd.f32 %v3327, %v3349
  %v3366 = vadd.f32 %v3328, %v3348
  %v3367 = vadd.f32 %v3329, %v3349
  %v3368 = vadd.f32 %v3330, %v3348
  %v3369 = vadd.f32 %v3331, %v3349
  %v3370 = vadd.f32 %v3332, %v3348
  %v3371 = vadd.f32 %v3333, %v3349
  %v3372 = vadd.f32 %v3334, %v3348
  %v3373 = vadd.f32 %v3335, %v3349
  %v3374 = vadd.f32 %v3336, %v3348
  %v3375 = vadd.f32 %v3337, %v3349
  %v3376 = vadd.f32 %v3338, %v3348
  %v3377 = vadd.f32 %v3339, %v3349
  %v3378 = vadd.f32 %v3340, %v3348
  %v3379 = vadd.f32 %v3341, %v3349
  %v3380 = vadd.f32 %v3342, %v3348
  %v3381 = vadd.f32 %v3343, %v3349
  %v3382 = vadd.f32 %v3344, %v3348
  %v3383 = vadd.f32 %v3345, %v3349
  %v3384 = vmax.f32 %v3352, 0.0
  %v3385 = vmax.f32 %v3353, 0.0
  %v3386 = vmax.f32 %v3354, 0.0
  %v3387 = vmax.f32 %v3355, 0.0
  %v3388 = vmax.f32 %v3356, 0.0
  %v3389 = vmax.f32 %v3357, 0.0
  %v3390 = vmax.f32 %v3358, 0.0
  %v3391 = vmax.f32 %v3359, 0.0
  %v3392 = vmax.f32 %v3360, 0.0
  %v3393 = vmax.f32 %v3361, 0.0
  %v3394 = vmax.f32 %v3362, 0.0
  %v3395 = vmax.f32 %v3363, 0.0
  %v3396 = vmax.f32 %v3364, 0.0
  %v3397 = vmax.f32 %v3365, 0.0
  %v3398 = vmax.f32 %v3366, 0.0
  %v3399 = vmax.f32 %v3367, 0.0
  %v3400 = vmax.f32 %v3368, 0.0
  %v3401 = vmax.f32 %v3369, 0.0
  %v3402 = vmax.f32 %v3370, 0.0
  %v3403 = vmax.f32 %v3371, 0.0
  %v3404 = vmax.f32 %v3372, 0.0
  %v3405 = vmax.f32 %v3373, 0.0
  %v3406 = vmax.f32 %v3374, 0.0
  %v3407 = vmax.f32 %v3375, 0.0
  %v3408 = vmax.f32 %v3376, 0.0
  %v3409 = vmax.f32 %v3377, 0.0
  %v3410 = vmax.f32 %v3378, 0.0
  %v3411 = vmax.f32 %v3379, 0.0
  %v3412 = vmax.f32 %v3380, 0.0
  %v3413 = vmax.f32 %v3381, 0.0
  %v3414 = vmax.f32 %v3382, 0.0
  %v3415 = vmax.f32 %v3383, 0.0
  %v3416 = vpack.c.bf16 %v3384, %v3384
  %v3417 = vpack.c.bf16 %v3385, %v3385
  %v3418 = vpack.c.bf16 %v3388, %v3388
  %v3419 = vpack.c.bf16 %v3389, %v3389
  %v3420 = vpack.c.bf16 %v3392, %v3392
  %v3421 = vpack.c.bf16 %v3393, %v3393
  %v3422 = vpack.c.bf16 %v3396, %v3396
  %v3423 = vpack.c.bf16 %v3397, %v3397
  %v3424 = vpack.c.bf16 %v3400, %v3400
  %v3425 = vpack.c.bf16 %v3401, %v3401
  %v3426 = vpack.c.bf16 %v3404, %v3404
  %v3427 = vpack.c.bf16 %v3405, %v3405
  %v3428 = vpack.c.bf16 %v3408, %v3408
  %v3429 = vpack.c.bf16 %v3409, %v3409
  %v3430 = vpack.c.bf16 %v3412, %v3412
  %v3431 = vpack.c.bf16 %v3413, %v3413
  %v3432 = vld [vmem:[%s5] sm:$0xf]
  %v3433 = vld [vmem:[%s5 + $0x4] sm:$0xf]
  %v3434 = vld [vmem:[%s5 + $0x8] sm:$0xf]
  %v3435 = vld [vmem:[%s5 + $0xc] sm:$0xf]
  %v3436 = vld [vmem:[%s5 + $0x10] sm:$0xf]
  %v3437 = vld [vmem:[%s5 + $0x14] sm:$0xf]
  %v3438 = vld [vmem:[%s5 + $0x18] sm:$0xf]
  %v3439 = vld [vmem:[%s5 + $0x1c] sm:$0xf]
  %v3440 = vld [vmem:[%s5 + $0x20] sm:$0xf]
  %v3441 = vld [vmem:[%s5 + $0x24] sm:$0xf]
  %v3442 = vld [vmem:[%s5 + $0x28] sm:$0xf]
  %v3443 = vld [vmem:[%s5 + $0x2c] sm:$0xf]
  %v3444 = vld [vmem:[%s5 + $0x30] sm:$0xf]
  %v3445 = vld [vmem:[%s5 + $0x34] sm:$0xf]
  %v3446 = vld [vmem:[%s5 + $0x38] sm:$0xf]
  %v3447 = vld [vmem:[%s5 + $0x3c] sm:$0xf]
  %v3448 = vld [vmem:[%s5 + $0x40] sm:$0xf]
  %v3449 = vld [vmem:[%s5 + $0x44] sm:$0xf]
  %v3450 = vld [vmem:[%s5 + $0x48] sm:$0xf]
  %v3451 = vld [vmem:[%s5 + $0x4c] sm:$0xf]
  %s3452 = scalar_lea.vmem %s5, 80
  %v3453 = vld [vmem:[%s3452] sm:$0xf]
  %v3454 = vld [vmem:[%s3452 + $0x4] sm:$0xf]
  %v3455 = vld [vmem:[%s3452 + $0x8] sm:$0xf]
  %v3456 = vld [vmem:[%s3452 + $0xc] sm:$0xf]
  %v3457 = vld [vmem:[%s3452 + $0x10] sm:$0xf]
  %v3458 = vld [vmem:[%s3452 + $0x14] sm:$0xf]
  %v3459 = vld [vmem:[%s3452 + $0x18] sm:$0xf]
  %v3460 = vld [vmem:[%s3452 + $0x1c] sm:$0xf]
  %v3461 = vld [vmem:[%s3452 + $0x20] sm:$0xf]
  %v3462 = vld [vmem:[%s3452 + $0x24] sm:$0xf]
  %v3463 = vld [vmem:[%s3452 + $0x28] sm:$0xf]
  %v3464 = vld [vmem:[%s3452 + $0x2c] sm:$0xf]
  %v3465 = vld [vmem:[%s3452 + $0x30] sm:$0xf]
  %v3466 = vld [vmem:[%s3452 + $0x34] sm:$0xf]
  %v3467 = vld [vmem:[%s3452 + $0x38] sm:$0xf]
  %v3468 = vld [vmem:[%s3452 + $0x3c] sm:$0xf]
  %v3469 = vld [vmem:[%s3452 + $0x40] sm:$0xf]
  %v3470 = vld [vmem:[%s3452 + $0x44] sm:$0xf]
  %v3471 = vld [vmem:[%s3452 + $0x48] sm:$0xf]
  %v3472 = vld [vmem:[%s3452 + $0x4c] sm:$0xf]
  %v3489 = vunpack.c.l.b16 %v3416
  %v3490 = vunpack.c.l.b16 %v3417
  %v3491 = vunpack.c.l.b16 %v3418
  %v3492 = vunpack.c.l.b16 %v3419
  %v3493 = vunpack.c.l.b16 %v3420
  %v3494 = vunpack.c.l.b16 %v3421
  %v3495 = vunpack.c.l.b16 %v3422
  %v3496 = vunpack.c.l.b16 %v3423
  %v3497 = vunpack.c.l.b16 %v3424
  %v3498 = vunpack.c.l.b16 %v3425
  %v3499 = vunpack.c.l.b16 %v3426
  %v3500 = vunpack.c.l.b16 %v3427
  %v3501 = vunpack.c.l.b16 %v3428
  %v3502 = vunpack.c.l.b16 %v3429
  %v3503 = vunpack.c.l.b16 %v3430
  %v3504 = vunpack.c.l.b16 %v3431
  %v3505 = vrot.slane %v3489, 1
  %vm3506 = vcmask 1041409
  %v3507 = vsel %vm3506, %v3491, %v3505
  %v3508 = vrot.slane %v3493, 7
  %vm3509 = vcmask 1042434
  %v3510 = vsel %vm3509, %v3508, %v3507
  %v3511 = vrot.slane %v3495, 6
  %vm3512 = vcmask 1043459
  %v3513 = vsel %vm3512, %v3511, %v3510
  %v3514 = vrot.slane %v3497, 5
  %vm3515 = vcmask 1044484
  %v3516 = vsel %vm3515, %v3514, %v3513
  %v3517 = vrot.slane %v3499, 4
  %vm3518 = vcmask 1045509
  %v3519 = vsel %vm3518, %v3517, %v3516
  %v3520 = vrot.slane %v3501, 3
  %vm3521 = vcmask 1046534
  %v3522 = vsel %vm3521, %v3520, %v3519
  %v3523 = vrot.slane %v3503, 2
  %vm3524 = vcmask 1047559
  %v3525 = vsel %vm3524, %v3523, %v3522
  %v3526 = vrot.slane %v3490, 1
  %v3527 = vsel %vm3506, %v3492, %v3526
  %v3528 = vrot.slane %v3494, 7
  %v3529 = vsel %vm3509, %v3528, %v3527
  %v3530 = vrot.slane %v3496, 6
  %v3531 = vsel %vm3512, %v3530, %v3529
  %v3532 = vrot.slane %v3498, 5
  %v3533 = vsel %vm3515, %v3532, %v3531
  %v3534 = vrot.slane %v3500, 4
  %v3535 = vsel %vm3518, %v3534, %v3533
  %v3536 = vrot.slane %v3502, 3
  %v3537 = vsel %vm3521, %v3536, %v3535
  %v3538 = vrot.slane %v3504, 2
  %v3539 = vsel %vm3524, %v3538, %v3537
  %v3540 = vpack.c.b16 %v3525, %v3525
  %v3541 = vpack.c.b16 %v3539, %v3539
  %v3563 = vunpack.c.l.b16 %v3453
  %v3564 = vunpack.c.l.b16 %v3454
  %v3565 = vunpack.c.l.b16 %v3455
  %v3566 = vunpack.c.l.b16 %v3456
  %v3567 = vunpack.c.l.b16 %v3457
  %v3568 = vunpack.c.l.b16 %v3458
  %v3569 = vunpack.c.l.b16 %v3459
  %v3570 = vunpack.c.l.b16 %v3460
  %v3571 = vunpack.c.l.b16 %v3461
  %v3572 = vunpack.c.l.b16 %v3462
  %v3573 = vunpack.c.l.b16 %v3463
  %v3574 = vunpack.c.l.b16 %v3464
  %v3575 = vunpack.c.l.b16 %v3465
  %v3576 = vunpack.c.l.b16 %v3466
  %v3577 = vunpack.c.l.b16 %v3467
  %v3578 = vunpack.c.l.b16 %v3468
  %v3579 = vunpack.c.l.b16 %v3469
  %v3580 = vunpack.c.l.b16 %v3470
  %v3581 = vunpack.c.l.b16 %v3471
  %v3582 = vunpack.c.l.b16 %v3472
  %v3583 = vpack.c.b16 %v3564, %v3563
  %v3584 = vpack.c.b16 %v3566, %v3565
  %v3585 = vpack.c.b16 %v3568, %v3567
  %v3586 = vpack.c.b16 %v3570, %v3569
  %v3587 = vpack.c.b16 %v3572, %v3571
  %v3588 = vpack.c.b16 %v3574, %v3573
  %v3589 = vpack.c.b16 %v3576, %v3575
  %v3590 = vpack.c.b16 %v3578, %v3577
  %v3591 = vpack.c.b16 %v3580, %v3579
  %v3592 = vpack.c.b16 %v3582, %v3581
  %v3604 = vsel %vm341, %v3541, 0
  %3606 = vmatpush.bf16.msra.mxu0 %v3590
  %3607 = vmatpush.bf16.msra.mxu0 %v3589
  %3608 = vmatpush.bf16.msra.mxu0 %v3588
  %3609 = vmatpush.bf16.msra.mxu0 %v3587
  %3610 = vmatpush.bf16.msra.mxu0 %v3586
  %3611 = vmatpush.bf16.msra.mxu0 %v3585
  %3612 = vmatpush.bf16.msra.mxu0 %v3584
  %3613 = vmatpush.bf16.msra.mxu0 %v3583
  %3614 = vmatmul.bf16.gmra.mxu0 %v3540
  %v3615 = vpop.f32.mrf.mxu0
  %v3616 = vadd.f32 0.0, %v3615
  %v3617 = vpop.f32.mrf.mxu0
  %3618 = vdwg.mxu0
  %3619 = vmatpush.bf16.msra.mxu0 0
  %3620 = vmatpush.bf16.msra.mxu0 0
  %3621 = vmatpush.bf16.msra.mxu0 0
  %3622 = vmatpush.bf16.msra.mxu0 0
  %3623 = vmatpush.bf16.msra.mxu0 0
  %3624 = vmatpush.bf16.msra.mxu0 0
  %3625 = vmatpush.bf16.msra.mxu0 %v3592
  %3626 = vmatpush.bf16.msra.mxu0 %v3591
  %3627 = vmatmul.bf16.gmra.mxu0 %v3604
  %v3628 = vpop.f32.mrf.mxu0
  %v3629 = vadd.f32 %v3616, %v3628
  %v3630 = vpop.f32.mrf.mxu0
  %3631 = vdwg.mxu0
  %v3632 = vrot.slane %v3491, 7
  %v3633 = vsel %vm3506, %v3632, %v3489
  %v3634 = vrot.slane %v3493, 6
  %v3635 = vsel %vm3509, %v3634, %v3633
  %v3636 = vrot.slane %v3495, 5
  %v3637 = vsel %vm3512, %v3636, %v3635
  %v3638 = vrot.slane %v3497, 4
  %v3639 = vsel %vm3515, %v3638, %v3637
  %v3640 = vrot.slane %v3499, 3
  %v3641 = vsel %vm3518, %v3640, %v3639
  %v3642 = vrot.slane %v3501, 2
  %v3643 = vsel %vm3521, %v3642, %v3641
  %v3644 = vrot.slane %v3503, 1
  %v3645 = vsel %vm3524, %v3644, %v3643
  %v3646 = vrot.slane %v3492, 7
  %v3647 = vsel %vm3506, %v3646, %v3490
  %v3648 = vrot.slane %v3494, 6
  %v3649 = vsel %vm3509, %v3648, %v3647
  %v3650 = vrot.slane %v3496, 5
  %v3651 = vsel %vm3512, %v3650, %v3649
  %v3652 = vrot.slane %v3498, 4
  %v3653 = vsel %vm3515, %v3652, %v3651
  %v3654 = vrot.slane %v3500, 3
  %v3655 = vsel %vm3518, %v3654, %v3653
  %v3656 = vrot.slane %v3502, 2
  %v3657 = vsel %vm3521, %v3656, %v3655
  %v3658 = vrot.slane %v3504, 1
  %v3659 = vsel %vm3524, %v3658, %v3657
  %v3660 = vpack.c.b16 %v3645, %v3645
  %v3661 = vpack.c.b16 %v3659, %v3659
  %v3683 = vunpack.c.l.b16 %v3432
  %v3684 = vunpack.c.l.b16 %v3433
  %v3685 = vunpack.c.l.b16 %v3434
  %v3686 = vunpack.c.l.b16 %v3435
  %v3687 = vunpack.c.l.b16 %v3436
  %v3688 = vunpack.c.l.b16 %v3437
  %v3689 = vunpack.c.l.b16 %v3438
  %v3690 = vunpack.c.l.b16 %v3439
  %v3691 = vunpack.c.l.b16 %v3440
  %v3692 = vunpack.c.l.b16 %v3441
  %v3693 = vunpack.c.l.b16 %v3442
  %v3694 = vunpack.c.l.b16 %v3443
  %v3695 = vunpack.c.l.b16 %v3444
  %v3696 = vunpack.c.l.b16 %v3445
  %v3697 = vunpack.c.l.b16 %v3446
  %v3698 = vunpack.c.l.b16 %v3447
  %v3699 = vunpack.c.l.b16 %v3448
  %v3700 = vunpack.c.l.b16 %v3449
  %v3701 = vunpack.c.l.b16 %v3450
  %v3702 = vunpack.c.l.b16 %v3451
  %v3703 = vpack.c.b16 %v3684, %v3683
  %v3704 = vpack.c.b16 %v3686, %v3685
  %v3705 = vpack.c.b16 %v3688, %v3687
  %v3706 = vpack.c.b16 %v3690, %v3689
  %v3707 = vpack.c.b16 %v3692, %v3691
  %v3708 = vpack.c.b16 %v3694, %v3693
  %v3709 = vpack.c.b16 %v3696, %v3695
  %v3710 = vpack.c.b16 %v3698, %v3697
  %v3711 = vpack.c.b16 %v3700, %v3699
  %v3712 = vpack.c.b16 %v3702, %v3701
  %v3724 = vsel %vm341, %v3661, 0
  %3726 = vmatpush.bf16.msra.mxu0 %v3710
  %3727 = vmatpush.bf16.msra.mxu0 %v3709
  %3728 = vmatpush.bf16.msra.mxu0 %v3708
  %3729 = vmatpush.bf16.msra.mxu0 %v3707
  %3730 = vmatpush.bf16.msra.mxu0 %v3706
  %3731 = vmatpush.bf16.msra.mxu0 %v3705
  %3732 = vmatpush.bf16.msra.mxu0 %v3704
  %3733 = vmatpush.bf16.msra.mxu0 %v3703
  %3734 = vmatmul.bf16.gmra.mxu0 %v3660
  %v3735 = vpop.f32.mrf.mxu0
  %v3736 = vadd.f32 %v3629, %v3735
  %v3737 = vpop.f32.mrf.mxu0
  %3738 = vdwg.mxu0
  %3739 = vmatpush.bf16.msra.mxu0 0
  %3740 = vmatpush.bf16.msra.mxu0 0
  %3741 = vmatpush.bf16.msra.mxu0 0
  %3742 = vmatpush.bf16.msra.mxu0 0
  %3743 = vmatpush.bf16.msra.mxu0 0
  %3744 = vmatpush.bf16.msra.mxu0 0
  %3745 = vmatpush.bf16.msra.mxu0 %v3712
  %3746 = vmatpush.bf16.msra.mxu0 %v3711
  %3747 = vmatmul.bf16.gmra.mxu0 %v3724
  %v3748 = vpop.f32.mrf.mxu0
  %v3749 = vadd.f32 %v3736, %v3748
  %v3750 = vpop.f32.mrf.mxu0
  %3751 = vdwg.mxu0
  %s3752 = scalar_lea.vmem %s5, 160
  %v3753 = vld [vmem:[%s3752] sm:$0xf]
  %v3754 = vld [vmem:[%s3752 + $0x4] sm:$0xf]
  %v3755 = vld [vmem:[%s3752 + $0x8] sm:$0xf]
  %v3756 = vld [vmem:[%s3752 + $0xc] sm:$0xf]
  %v3757 = vld [vmem:[%s3752 + $0x10] sm:$0xf]
  %v3758 = vld [vmem:[%s3752 + $0x14] sm:$0xf]
  %v3759 = vld [vmem:[%s3752 + $0x18] sm:$0xf]
  %v3760 = vld [vmem:[%s3752 + $0x1c] sm:$0xf]
  %v3761 = vld [vmem:[%s3752 + $0x20] sm:$0xf]
  %v3762 = vld [vmem:[%s3752 + $0x24] sm:$0xf]
  %v3763 = vld [vmem:[%s3752 + $0x28] sm:$0xf]
  %v3764 = vld [vmem:[%s3752 + $0x2c] sm:$0xf]
  %v3765 = vld [vmem:[%s3752 + $0x30] sm:$0xf]
  %v3766 = vld [vmem:[%s3752 + $0x34] sm:$0xf]
  %v3767 = vld [vmem:[%s3752 + $0x38] sm:$0xf]
  %v3768 = vld [vmem:[%s3752 + $0x3c] sm:$0xf]
  %v3769 = vld [vmem:[%s3752 + $0x40] sm:$0xf]
  %v3770 = vld [vmem:[%s3752 + $0x44] sm:$0xf]
  %v3771 = vld [vmem:[%s3752 + $0x48] sm:$0xf]
  %v3772 = vld [vmem:[%s3752 + $0x4c] sm:$0xf]
  %v3773 = vrot.slane %v3489, 2
  %v3774 = vrot.slane %v3491, 1
  %v3775 = vsel %vm3506, %v3774, %v3773
  %v3776 = vsel %vm3509, %v3493, %v3775
  %v3777 = vrot.slane %v3495, 7
  %v3778 = vsel %vm3512, %v3777, %v3776
  %v3779 = vrot.slane %v3497, 6
  %v3780 = vsel %vm3515, %v3779, %v3778
  %v3781 = vrot.slane %v3499, 5
  %v3782 = vsel %vm3518, %v3781, %v3780
  %v3783 = vrot.slane %v3501, 4
  %v3784 = vsel %vm3521, %v3783, %v3782
  %v3785 = vrot.slane %v3503, 3
  %v3786 = vsel %vm3524, %v3785, %v3784
  %v3787 = vrot.slane %v3490, 2
  %v3788 = vrot.slane %v3492, 1
  %v3789 = vsel %vm3506, %v3788, %v3787
  %v3790 = vsel %vm3509, %v3494, %v3789
  %v3791 = vrot.slane %v3496, 7
  %v3792 = vsel %vm3512, %v3791, %v3790
  %v3793 = vrot.slane %v3498, 6
  %v3794 = vsel %vm3515, %v3793, %v3792
  %v3795 = vrot.slane %v3500, 5
  %v3796 = vsel %vm3518, %v3795, %v3794
  %v3797 = vrot.slane %v3502, 4
  %v3798 = vsel %vm3521, %v3797, %v3796
  %v3799 = vrot.slane %v3504, 3
  %v3800 = vsel %vm3524, %v3799, %v3798
  %v3801 = vpack.c.b16 %v3786, %v3786
  %v3802 = vpack.c.b16 %v3800, %v3800
  %v3824 = vunpack.c.l.b16 %v3753
  %v3825 = vunpack.c.l.b16 %v3754
  %v3826 = vunpack.c.l.b16 %v3755
  %v3827 = vunpack.c.l.b16 %v3756
  %v3828 = vunpack.c.l.b16 %v3757
  %v3829 = vunpack.c.l.b16 %v3758
  %v3830 = vunpack.c.l.b16 %v3759
  %v3831 = vunpack.c.l.b16 %v3760
  %v3832 = vunpack.c.l.b16 %v3761
  %v3833 = vunpack.c.l.b16 %v3762
  %v3834 = vunpack.c.l.b16 %v3763
  %v3835 = vunpack.c.l.b16 %v3764
  %v3836 = vunpack.c.l.b16 %v3765
  %v3837 = vunpack.c.l.b16 %v3766
  %v3838 = vunpack.c.l.b16 %v3767
  %v3839 = vunpack.c.l.b16 %v3768
  %v3840 = vunpack.c.l.b16 %v3769
  %v3841 = vunpack.c.l.b16 %v3770
  %v3842 = vunpack.c.l.b16 %v3771
  %v3843 = vunpack.c.l.b16 %v3772
  %v3844 = vpack.c.b16 %v3825, %v3824
  %v3845 = vpack.c.b16 %v3827, %v3826
  %v3846 = vpack.c.b16 %v3829, %v3828
  %v3847 = vpack.c.b16 %v3831, %v3830
  %v3848 = vpack.c.b16 %v3833, %v3832
  %v3849 = vpack.c.b16 %v3835, %v3834
  %v3850 = vpack.c.b16 %v3837, %v3836
  %v3851 = vpack.c.b16 %v3839, %v3838
  %v3852 = vpack.c.b16 %v3841, %v3840
  %v3853 = vpack.c.b16 %v3843, %v3842
  %v3865 = vsel %vm341, %v3802, 0
  %3867 = vmatpush.bf16.msra.mxu0 %v3851
  %3868 = vmatpush.bf16.msra.mxu0 %v3850
  %3869 = vmatpush.bf16.msra.mxu0 %v3849
  %3870 = vmatpush.bf16.msra.mxu0 %v3848
  %3871 = vmatpush.bf16.msra.mxu0 %v3847
  %3872 = vmatpush.bf16.msra.mxu0 %v3846
  %3873 = vmatpush.bf16.msra.mxu0 %v3845
  %3874 = vmatpush.bf16.msra.mxu0 %v3844
  %3875 = vmatmul.bf16.gmra.mxu0 %v3801
  %v3876 = vpop.f32.mrf.mxu0
  %v3877 = vadd.f32 0.0, %v3876
  %v3878 = vpop.f32.mrf.mxu0
  %3879 = vdwg.mxu0
  %3880 = vmatpush.bf16.msra.mxu0 0
  %3881 = vmatpush.bf16.msra.mxu0 0
  %3882 = vmatpush.bf16.msra.mxu0 0
  %3883 = vmatpush.bf16.msra.mxu0 0
  %3884 = vmatpush.bf16.msra.mxu0 0
  %3885 = vmatpush.bf16.msra.mxu0 0
  %3886 = vmatpush.bf16.msra.mxu0 %v3853
  %3887 = vmatpush.bf16.msra.mxu0 %v3852
  %3888 = vmatmul.bf16.gmra.mxu0 %v3865
  %v3889 = vpop.f32.mrf.mxu0
  %v3890 = vadd.f32 %v3877, %v3889
  %v3891 = vpop.f32.mrf.mxu0
  %3892 = vdwg.mxu0
  %v3893 = vadd.f32 %v3749, %v3890
  %s3894 = scalar_lea.vmem %s5, 240
  %v3895 = vld [vmem:[%s3894] sm:$0xf]
  %v3896 = vld [vmem:[%s3894 + $0x4] sm:$0xf]
  %v3897 = vld [vmem:[%s3894 + $0x8] sm:$0xf]
  %v3898 = vld [vmem:[%s3894 + $0xc] sm:$0xf]
  %v3899 = vld [vmem:[%s3894 + $0x10] sm:$0xf]
  %v3900 = vld [vmem:[%s3894 + $0x14] sm:$0xf]
  %v3901 = vld [vmem:[%s3894 + $0x18] sm:$0xf]
  %v3902 = vld [vmem:[%s3894 + $0x1c] sm:$0xf]
  %v3903 = vld [vmem:[%s3894 + $0x20] sm:$0xf]
  %v3904 = vld [vmem:[%s3894 + $0x24] sm:$0xf]
  %v3905 = vld [vmem:[%s3894 + $0x28] sm:$0xf]
  %v3906 = vld [vmem:[%s3894 + $0x2c] sm:$0xf]
  %v3907 = vld [vmem:[%s3894 + $0x30] sm:$0xf]
  %v3908 = vld [vmem:[%s3894 + $0x34] sm:$0xf]
  %v3909 = vld [vmem:[%s3894 + $0x38] sm:$0xf]
  %v3910 = vld [vmem:[%s3894 + $0x3c] sm:$0xf]
  %v3911 = vld [vmem:[%s3894 + $0x40] sm:$0xf]
  %v3912 = vld [vmem:[%s3894 + $0x44] sm:$0xf]
  %v3913 = vld [vmem:[%s3894 + $0x48] sm:$0xf]
  %v3914 = vld [vmem:[%s3894 + $0x4c] sm:$0xf]
  %v3915 = vrot.slane %v3489, 3
  %v3916 = vrot.slane %v3491, 2
  %v3917 = vsel %vm3506, %v3916, %v3915
  %v3918 = vrot.slane %v3493, 1
  %v3919 = vsel %vm3509, %v3918, %v3917
  %v3920 = vsel %vm3512, %v3495, %v3919
  %v3921 = vrot.slane %v3497, 7
  %v3922 = vsel %vm3515, %v3921, %v3920
  %v3923 = vrot.slane %v3499, 6
  %v3924 = vsel %vm3518, %v3923, %v3922
  %v3925 = vrot.slane %v3501, 5
  %v3926 = vsel %vm3521, %v3925, %v3924
  %v3927 = vrot.slane %v3503, 4
  %v3928 = vsel %vm3524, %v3927, %v3926
  %v3929 = vrot.slane %v3490, 3
  %v3930 = vrot.slane %v3492, 2
  %v3931 = vsel %vm3506, %v3930, %v3929
  %v3932 = vrot.slane %v3494, 1
  %v3933 = vsel %vm3509, %v3932, %v3931
  %v3934 = vsel %vm3512, %v3496, %v3933
  %v3935 = vrot.slane %v3498, 7
  %v3936 = vsel %vm3515, %v3935, %v3934
  %v3937 = vrot.slane %v3500, 6
  %v3938 = vsel %vm3518, %v3937, %v3936
  %v3939 = vrot.slane %v3502, 5
  %v3940 = vsel %vm3521, %v3939, %v3938
  %v3941 = vrot.slane %v3504, 4
  %v3942 = vsel %vm3524, %v3941, %v3940
  %v3943 = vpack.c.b16 %v3928, %v3928
  %v3944 = vpack.c.b16 %v3942, %v3942
  %v3966 = vunpack.c.l.b16 %v3895
  %v3967 = vunpack.c.l.b16 %v3896
  %v3968 = vunpack.c.l.b16 %v3897
  %v3969 = vunpack.c.l.b16 %v3898
  %v3970 = vunpack.c.l.b16 %v3899
  %v3971 = vunpack.c.l.b16 %v3900
  %v3972 = vunpack.c.l.b16 %v3901
  %v3973 = vunpack.c.l.b16 %v3902
  %v3974 = vunpack.c.l.b16 %v3903
  %v3975 = vunpack.c.l.b16 %v3904
  %v3976 = vunpack.c.l.b16 %v3905
  %v3977 = vunpack.c.l.b16 %v3906
  %v3978 = vunpack.c.l.b16 %v3907
  %v3979 = vunpack.c.l.b16 %v3908
  %v3980 = vunpack.c.l.b16 %v3909
  %v3981 = vunpack.c.l.b16 %v3910
  %v3982 = vunpack.c.l.b16 %v3911
  %v3983 = vunpack.c.l.b16 %v3912
  %v3984 = vunpack.c.l.b16 %v3913
  %v3985 = vunpack.c.l.b16 %v3914
  %v3986 = vpack.c.b16 %v3967, %v3966
  %v3987 = vpack.c.b16 %v3969, %v3968
  %v3988 = vpack.c.b16 %v3971, %v3970
  %v3989 = vpack.c.b16 %v3973, %v3972
  %v3990 = vpack.c.b16 %v3975, %v3974
  %v3991 = vpack.c.b16 %v3977, %v3976
  %v3992 = vpack.c.b16 %v3979, %v3978
  %v3993 = vpack.c.b16 %v3981, %v3980
  %v3994 = vpack.c.b16 %v3983, %v3982
  %v3995 = vpack.c.b16 %v3985, %v3984
  %v4007 = vsel %vm341, %v3944, 0
  %4009 = vmatpush.bf16.msra.mxu0 %v3993
  %4010 = vmatpush.bf16.msra.mxu0 %v3992
  %4011 = vmatpush.bf16.msra.mxu0 %v3991
  %4012 = vmatpush.bf16.msra.mxu0 %v3990
  %4013 = vmatpush.bf16.msra.mxu0 %v3989
  %4014 = vmatpush.bf16.msra.mxu0 %v3988
  %4015 = vmatpush.bf16.msra.mxu0 %v3987
  %4016 = vmatpush.bf16.msra.mxu0 %v3986
  %4017 = vmatmul.bf16.gmra.mxu0 %v3943
  %v4018 = vpop.f32.mrf.mxu0
  %v4019 = vadd.f32 0.0, %v4018
  %v4020 = vpop.f32.mrf.mxu0
  %4021 = vdwg.mxu0
  %4022 = vmatpush.bf16.msra.mxu0 0
  %4023 = vmatpush.bf16.msra.mxu0 0
  %4024 = vmatpush.bf16.msra.mxu0 0
  %4025 = vmatpush.bf16.msra.mxu0 0
  %4026 = vmatpush.bf16.msra.mxu0 0
  %4027 = vmatpush.bf16.msra.mxu0 0
  %4028 = vmatpush.bf16.msra.mxu0 %v3995
  %4029 = vmatpush.bf16.msra.mxu0 %v3994
  %4030 = vmatmul.bf16.gmra.mxu0 %v4007
  %v4031 = vpop.f32.mrf.mxu0
  %v4032 = vadd.f32 %v4019, %v4031
  %v4033 = vpop.f32.mrf.mxu0
  %4034 = vdwg.mxu0
  %v4035 = vadd.f32 %v3893, %v4032
  %s4036 = scalar_lea.vmem %s5, 320
  %v4037 = vld [vmem:[%s4036] sm:$0xf]
  %v4038 = vld [vmem:[%s4036 + $0x4] sm:$0xf]
  %v4039 = vld [vmem:[%s4036 + $0x8] sm:$0xf]
  %v4040 = vld [vmem:[%s4036 + $0xc] sm:$0xf]
  %v4041 = vld [vmem:[%s4036 + $0x10] sm:$0xf]
  %v4042 = vld [vmem:[%s4036 + $0x14] sm:$0xf]
  %v4043 = vld [vmem:[%s4036 + $0x18] sm:$0xf]
  %v4044 = vld [vmem:[%s4036 + $0x1c] sm:$0xf]
  %v4045 = vld [vmem:[%s4036 + $0x20] sm:$0xf]
  %v4046 = vld [vmem:[%s4036 + $0x24] sm:$0xf]
  %v4047 = vld [vmem:[%s4036 + $0x28] sm:$0xf]
  %v4048 = vld [vmem:[%s4036 + $0x2c] sm:$0xf]
  %v4049 = vld [vmem:[%s4036 + $0x30] sm:$0xf]
  %v4050 = vld [vmem:[%s4036 + $0x34] sm:$0xf]
  %v4051 = vld [vmem:[%s4036 + $0x38] sm:$0xf]
  %v4052 = vld [vmem:[%s4036 + $0x3c] sm:$0xf]
  %v4053 = vld [vmem:[%s4036 + $0x40] sm:$0xf]
  %v4054 = vld [vmem:[%s4036 + $0x44] sm:$0xf]
  %v4055 = vld [vmem:[%s4036 + $0x48] sm:$0xf]
  %v4056 = vld [vmem:[%s4036 + $0x4c] sm:$0xf]
  %v4057 = vrot.slane %v3489, 4
  %v4058 = vrot.slane %v3491, 3
  %v4059 = vsel %vm3506, %v4058, %v4057
  %v4060 = vrot.slane %v3493, 2
  %v4061 = vsel %vm3509, %v4060, %v4059
  %v4062 = vrot.slane %v3495, 1
  %v4063 = vsel %vm3512, %v4062, %v4061
  %v4064 = vsel %vm3515, %v3497, %v4063
  %v4065 = vrot.slane %v3499, 7
  %v4066 = vsel %vm3518, %v4065, %v4064
  %v4067 = vrot.slane %v3501, 6
  %v4068 = vsel %vm3521, %v4067, %v4066
  %v4069 = vrot.slane %v3503, 5
  %v4070 = vsel %vm3524, %v4069, %v4068
  %v4071 = vrot.slane %v3490, 4
  %v4072 = vrot.slane %v3492, 3
  %v4073 = vsel %vm3506, %v4072, %v4071
  %v4074 = vrot.slane %v3494, 2
  %v4075 = vsel %vm3509, %v4074, %v4073
  %v4076 = vrot.slane %v3496, 1
  %v4077 = vsel %vm3512, %v4076, %v4075
  %v4078 = vsel %vm3515, %v3498, %v4077
  %v4079 = vrot.slane %v3500, 7
  %v4080 = vsel %vm3518, %v4079, %v4078
  %v4081 = vrot.slane %v3502, 6
  %v4082 = vsel %vm3521, %v4081, %v4080
  %v4083 = vrot.slane %v3504, 5
  %v4084 = vsel %vm3524, %v4083, %v4082
  %v4085 = vpack.c.b16 %v4070, %v4070
  %v4086 = vpack.c.b16 %v4084, %v4084
  %v4108 = vunpack.c.l.b16 %v4037
  %v4109 = vunpack.c.l.b16 %v4038
  %v4110 = vunpack.c.l.b16 %v4039
  %v4111 = vunpack.c.l.b16 %v4040
  %v4112 = vunpack.c.l.b16 %v4041
  %v4113 = vunpack.c.l.b16 %v4042
  %v4114 = vunpack.c.l.b16 %v4043
  %v4115 = vunpack.c.l.b16 %v4044
  %v4116 = vunpack.c.l.b16 %v4045
  %v4117 = vunpack.c.l.b16 %v4046
  %v4118 = vunpack.c.l.b16 %v4047
  %v4119 = vunpack.c.l.b16 %v4048
  %v4120 = vunpack.c.l.b16 %v4049
  %v4121 = vunpack.c.l.b16 %v4050
  %v4122 = vunpack.c.l.b16 %v4051
  %v4123 = vunpack.c.l.b16 %v4052
  %v4124 = vunpack.c.l.b16 %v4053
  %v4125 = vunpack.c.l.b16 %v4054
  %v4126 = vunpack.c.l.b16 %v4055
  %v4127 = vunpack.c.l.b16 %v4056
  %v4128 = vpack.c.b16 %v4109, %v4108
  %v4129 = vpack.c.b16 %v4111, %v4110
  %v4130 = vpack.c.b16 %v4113, %v4112
  %v4131 = vpack.c.b16 %v4115, %v4114
  %v4132 = vpack.c.b16 %v4117, %v4116
  %v4133 = vpack.c.b16 %v4119, %v4118
  %v4134 = vpack.c.b16 %v4121, %v4120
  %v4135 = vpack.c.b16 %v4123, %v4122
  %v4136 = vpack.c.b16 %v4125, %v4124
  %v4137 = vpack.c.b16 %v4127, %v4126
  %v4149 = vsel %vm341, %v4086, 0
  %4151 = vmatpush.bf16.msra.mxu0 %v4135
  %4152 = vmatpush.bf16.msra.mxu0 %v4134
  %4153 = vmatpush.bf16.msra.mxu0 %v4133
  %4154 = vmatpush.bf16.msra.mxu0 %v4132
  %4155 = vmatpush.bf16.msra.mxu0 %v4131
  %4156 = vmatpush.bf16.msra.mxu0 %v4130
  %4157 = vmatpush.bf16.msra.mxu0 %v4129
  %4158 = vmatpush.bf16.msra.mxu0 %v4128
  %4159 = vmatmul.bf16.gmra.mxu0 %v4085
  %v4160 = vpop.f32.mrf.mxu0
  %v4161 = vadd.f32 0.0, %v4160
  %v4162 = vpop.f32.mrf.mxu0
  %4163 = vdwg.mxu0
  %4164 = vmatpush.bf16.msra.mxu0 0
  %4165 = vmatpush.bf16.msra.mxu0 0
  %4166 = vmatpush.bf16.msra.mxu0 0
  %4167 = vmatpush.bf16.msra.mxu0 0
  %4168 = vmatpush.bf16.msra.mxu0 0
  %4169 = vmatpush.bf16.msra.mxu0 0
  %4170 = vmatpush.bf16.msra.mxu0 %v4137
  %4171 = vmatpush.bf16.msra.mxu0 %v4136
  %4172 = vmatmul.bf16.gmra.mxu0 %v4149
  %v4173 = vpop.f32.mrf.mxu0
  %v4174 = vadd.f32 %v4161, %v4173
  %v4175 = vpop.f32.mrf.mxu0
  %4176 = vdwg.mxu0
  %v4177 = vadd.f32 %v4035, %v4174
  %s4178 = scalar_lea.vmem %s5, 400
  %v4179 = vld [vmem:[%s4178] sm:$0xf]
  %v4180 = vld [vmem:[%s4178 + $0x4] sm:$0xf]
  %v4181 = vld [vmem:[%s4178 + $0x8] sm:$0xf]
  %v4182 = vld [vmem:[%s4178 + $0xc] sm:$0xf]
  %v4183 = vld [vmem:[%s4178 + $0x10] sm:$0xf]
  %v4184 = vld [vmem:[%s4178 + $0x14] sm:$0xf]
  %v4185 = vld [vmem:[%s4178 + $0x18] sm:$0xf]
  %v4186 = vld [vmem:[%s4178 + $0x1c] sm:$0xf]
  %v4187 = vld [vmem:[%s4178 + $0x20] sm:$0xf]
  %v4188 = vld [vmem:[%s4178 + $0x24] sm:$0xf]
  %v4189 = vld [vmem:[%s4178 + $0x28] sm:$0xf]
  %v4190 = vld [vmem:[%s4178 + $0x2c] sm:$0xf]
  %v4191 = vld [vmem:[%s4178 + $0x30] sm:$0xf]
  %v4192 = vld [vmem:[%s4178 + $0x34] sm:$0xf]
  %v4193 = vld [vmem:[%s4178 + $0x38] sm:$0xf]
  %v4194 = vld [vmem:[%s4178 + $0x3c] sm:$0xf]
  %v4195 = vld [vmem:[%s4178 + $0x40] sm:$0xf]
  %v4196 = vld [vmem:[%s4178 + $0x44] sm:$0xf]
  %v4197 = vld [vmem:[%s4178 + $0x48] sm:$0xf]
  %v4198 = vld [vmem:[%s4178 + $0x4c] sm:$0xf]
  %v4199 = vrot.slane %v3489, 5
  %v4200 = vrot.slane %v3491, 4
  %v4201 = vsel %vm3506, %v4200, %v4199
  %v4202 = vrot.slane %v3493, 3
  %v4203 = vsel %vm3509, %v4202, %v4201
  %v4204 = vrot.slane %v3495, 2
  %v4205 = vsel %vm3512, %v4204, %v4203
  %v4206 = vrot.slane %v3497, 1
  %v4207 = vsel %vm3515, %v4206, %v4205
  %v4208 = vsel %vm3518, %v3499, %v4207
  %v4209 = vrot.slane %v3501, 7
  %v4210 = vsel %vm3521, %v4209, %v4208
  %v4211 = vrot.slane %v3503, 6
  %v4212 = vsel %vm3524, %v4211, %v4210
  %v4213 = vrot.slane %v3490, 5
  %v4214 = vrot.slane %v3492, 4
  %v4215 = vsel %vm3506, %v4214, %v4213
  %v4216 = vrot.slane %v3494, 3
  %v4217 = vsel %vm3509, %v4216, %v4215
  %v4218 = vrot.slane %v3496, 2
  %v4219 = vsel %vm3512, %v4218, %v4217
  %v4220 = vrot.slane %v3498, 1
  %v4221 = vsel %vm3515, %v4220, %v4219
  %v4222 = vsel %vm3518, %v3500, %v4221
  %v4223 = vrot.slane %v3502, 7
  %v4224 = vsel %vm3521, %v4223, %v4222
  %v4225 = vrot.slane %v3504, 6
  %v4226 = vsel %vm3524, %v4225, %v4224
  %v4227 = vpack.c.b16 %v4212, %v4212
  %v4228 = vpack.c.b16 %v4226, %v4226
  %v4250 = vunpack.c.l.b16 %v4179
  %v4251 = vunpack.c.l.b16 %v4180
  %v4252 = vunpack.c.l.b16 %v4181
  %v4253 = vunpack.c.l.b16 %v4182
  %v4254 = vunpack.c.l.b16 %v4183
  %v4255 = vunpack.c.l.b16 %v4184
  %v4256 = vunpack.c.l.b16 %v4185
  %v4257 = vunpack.c.l.b16 %v4186
  %v4258 = vunpack.c.l.b16 %v4187
  %v4259 = vunpack.c.l.b16 %v4188
  %v4260 = vunpack.c.l.b16 %v4189
  %v4261 = vunpack.c.l.b16 %v4190
  %v4262 = vunpack.c.l.b16 %v4191
  %v4263 = vunpack.c.l.b16 %v4192
  %v4264 = vunpack.c.l.b16 %v4193
  %v4265 = vunpack.c.l.b16 %v4194
  %v4266 = vunpack.c.l.b16 %v4195
  %v4267 = vunpack.c.l.b16 %v4196
  %v4268 = vunpack.c.l.b16 %v4197
  %v4269 = vunpack.c.l.b16 %v4198
  %v4270 = vpack.c.b16 %v4251, %v4250
  %v4271 = vpack.c.b16 %v4253, %v4252
  %v4272 = vpack.c.b16 %v4255, %v4254
  %v4273 = vpack.c.b16 %v4257, %v4256
  %v4274 = vpack.c.b16 %v4259, %v4258
  %v4275 = vpack.c.b16 %v4261, %v4260
  %v4276 = vpack.c.b16 %v4263, %v4262
  %v4277 = vpack.c.b16 %v4265, %v4264
  %v4278 = vpack.c.b16 %v4267, %v4266
  %v4279 = vpack.c.b16 %v4269, %v4268
  %v4291 = vsel %vm341, %v4228, 0
  %4293 = vmatpush.bf16.msra.mxu0 %v4277
  %4294 = vmatpush.bf16.msra.mxu0 %v4276
  %4295 = vmatpush.bf16.msra.mxu0 %v4275
  %4296 = vmatpush.bf16.msra.mxu0 %v4274
  %4297 = vmatpush.bf16.msra.mxu0 %v4273
  %4298 = vmatpush.bf16.msra.mxu0 %v4272
  %4299 = vmatpush.bf16.msra.mxu0 %v4271
  %4300 = vmatpush.bf16.msra.mxu0 %v4270
  %4301 = vmatmul.bf16.gmra.mxu0 %v4227
  %v4302 = vpop.f32.mrf.mxu0
  %v4303 = vadd.f32 0.0, %v4302
  %v4304 = vpop.f32.mrf.mxu0
  %4305 = vdwg.mxu0
  %4306 = vmatpush.bf16.msra.mxu0 0
  %4307 = vmatpush.bf16.msra.mxu0 0
  %4308 = vmatpush.bf16.msra.mxu0 0
  %4309 = vmatpush.bf16.msra.mxu0 0
  %4310 = vmatpush.bf16.msra.mxu0 0
  %4311 = vmatpush.bf16.msra.mxu0 0
  %4312 = vmatpush.bf16.msra.mxu0 %v4279
  %4313 = vmatpush.bf16.msra.mxu0 %v4278
  %4314 = vmatmul.bf16.gmra.mxu0 %v4291
  %v4315 = vpop.f32.mrf.mxu0
  %v4316 = vadd.f32 %v4303, %v4315
  %v4317 = vpop.f32.mrf.mxu0
  %4318 = vdwg.mxu0
  %v4319 = vadd.f32 %v4177, %v4316
  %s4320 = scalar_lea.vmem %s5, 480
  %v4321 = vld [vmem:[%s4320] sm:$0xf]
  %v4322 = vld [vmem:[%s4320 + $0x4] sm:$0xf]
  %v4323 = vld [vmem:[%s4320 + $0x8] sm:$0xf]
  %v4324 = vld [vmem:[%s4320 + $0xc] sm:$0xf]
  %v4325 = vld [vmem:[%s4320 + $0x10] sm:$0xf]
  %v4326 = vld [vmem:[%s4320 + $0x14] sm:$0xf]
  %v4327 = vld [vmem:[%s4320 + $0x18] sm:$0xf]
  %v4328 = vld [vmem:[%s4320 + $0x1c] sm:$0xf]
  %v4329 = vld [vmem:[%s4320 + $0x20] sm:$0xf]
  %v4330 = vld [vmem:[%s4320 + $0x24] sm:$0xf]
  %v4331 = vld [vmem:[%s4320 + $0x28] sm:$0xf]
  %v4332 = vld [vmem:[%s4320 + $0x2c] sm:$0xf]
  %v4333 = vld [vmem:[%s4320 + $0x30] sm:$0xf]
  %v4334 = vld [vmem:[%s4320 + $0x34] sm:$0xf]
  %v4335 = vld [vmem:[%s4320 + $0x38] sm:$0xf]
  %v4336 = vld [vmem:[%s4320 + $0x3c] sm:$0xf]
  %v4337 = vld [vmem:[%s4320 + $0x40] sm:$0xf]
  %v4338 = vld [vmem:[%s4320 + $0x44] sm:$0xf]
  %v4339 = vld [vmem:[%s4320 + $0x48] sm:$0xf]
  %v4340 = vld [vmem:[%s4320 + $0x4c] sm:$0xf]
  %v4341 = vrot.slane %v3489, 6
  %v4342 = vrot.slane %v3491, 5
  %v4343 = vsel %vm3506, %v4342, %v4341
  %v4344 = vrot.slane %v3493, 4
  %v4345 = vsel %vm3509, %v4344, %v4343
  %v4346 = vrot.slane %v3495, 3
  %v4347 = vsel %vm3512, %v4346, %v4345
  %v4348 = vrot.slane %v3497, 2
  %v4349 = vsel %vm3515, %v4348, %v4347
  %v4350 = vrot.slane %v3499, 1
  %v4351 = vsel %vm3518, %v4350, %v4349
  %v4352 = vsel %vm3521, %v3501, %v4351
  %v4353 = vrot.slane %v3503, 7
  %v4354 = vsel %vm3524, %v4353, %v4352
  %v4355 = vrot.slane %v3490, 6
  %v4356 = vrot.slane %v3492, 5
  %v4357 = vsel %vm3506, %v4356, %v4355
  %v4358 = vrot.slane %v3494, 4
  %v4359 = vsel %vm3509, %v4358, %v4357
  %v4360 = vrot.slane %v3496, 3
  %v4361 = vsel %vm3512, %v4360, %v4359
  %v4362 = vrot.slane %v3498, 2
  %v4363 = vsel %vm3515, %v4362, %v4361
  %v4364 = vrot.slane %v3500, 1
  %v4365 = vsel %vm3518, %v4364, %v4363
  %v4366 = vsel %vm3521, %v3502, %v4365
  %v4367 = vrot.slane %v3504, 7
  %v4368 = vsel %vm3524, %v4367, %v4366
  %v4369 = vpack.c.b16 %v4354, %v4354
  %v4370 = vpack.c.b16 %v4368, %v4368
  %v4392 = vunpack.c.l.b16 %v4321
  %v4393 = vunpack.c.l.b16 %v4322
  %v4394 = vunpack.c.l.b16 %v4323
  %v4395 = vunpack.c.l.b16 %v4324
  %v4396 = vunpack.c.l.b16 %v4325
  %v4397 = vunpack.c.l.b16 %v4326
  %v4398 = vunpack.c.l.b16 %v4327
  %v4399 = vunpack.c.l.b16 %v4328
  %v4400 = vunpack.c.l.b16 %v4329
  %v4401 = vunpack.c.l.b16 %v4330
  %v4402 = vunpack.c.l.b16 %v4331
  %v4403 = vunpack.c.l.b16 %v4332
  %v4404 = vunpack.c.l.b16 %v4333
  %v4405 = vunpack.c.l.b16 %v4334
  %v4406 = vunpack.c.l.b16 %v4335
  %v4407 = vunpack.c.l.b16 %v4336
  %v4408 = vunpack.c.l.b16 %v4337
  %v4409 = vunpack.c.l.b16 %v4338
  %v4410 = vunpack.c.l.b16 %v4339
  %v4411 = vunpack.c.l.b16 %v4340
  %v4412 = vpack.c.b16 %v4393, %v4392
  %v4413 = vpack.c.b16 %v4395, %v4394
  %v4414 = vpack.c.b16 %v4397, %v4396
  %v4415 = vpack.c.b16 %v4399, %v4398
  %v4416 = vpack.c.b16 %v4401, %v4400
  %v4417 = vpack.c.b16 %v4403, %v4402
  %v4418 = vpack.c.b16 %v4405, %v4404
  %v4419 = vpack.c.b16 %v4407, %v4406
  %v4420 = vpack.c.b16 %v4409, %v4408
  %v4421 = vpack.c.b16 %v4411, %v4410
  %v4433 = vsel %vm341, %v4370, 0
  %4435 = vmatpush.bf16.msra.mxu0 %v4419
  %4436 = vmatpush.bf16.msra.mxu0 %v4418
  %4437 = vmatpush.bf16.msra.mxu0 %v4417
  %4438 = vmatpush.bf16.msra.mxu0 %v4416
  %4439 = vmatpush.bf16.msra.mxu0 %v4415
  %4440 = vmatpush.bf16.msra.mxu0 %v4414
  %4441 = vmatpush.bf16.msra.mxu0 %v4413
  %4442 = vmatpush.bf16.msra.mxu0 %v4412
  %4443 = vmatmul.bf16.gmra.mxu0 %v4369
  %v4444 = vpop.f32.mrf.mxu0
  %v4445 = vadd.f32 0.0, %v4444
  %v4446 = vpop.f32.mrf.mxu0
  %4447 = vdwg.mxu0
  %4448 = vmatpush.bf16.msra.mxu0 0
  %4449 = vmatpush.bf16.msra.mxu0 0
  %4450 = vmatpush.bf16.msra.mxu0 0
  %4451 = vmatpush.bf16.msra.mxu0 0
  %4452 = vmatpush.bf16.msra.mxu0 0
  %4453 = vmatpush.bf16.msra.mxu0 0
  %4454 = vmatpush.bf16.msra.mxu0 %v4421
  %4455 = vmatpush.bf16.msra.mxu0 %v4420
  %4456 = vmatmul.bf16.gmra.mxu0 %v4433
  %v4457 = vpop.f32.mrf.mxu0
  %v4458 = vadd.f32 %v4445, %v4457
  %v4459 = vpop.f32.mrf.mxu0
  %4460 = vdwg.mxu0
  %v4461 = vadd.f32 %v4319, %v4458
  %s4462 = scalar_lea.vmem %s5, 560
  %v4463 = vld [vmem:[%s4462] sm:$0xf]
  %v4464 = vld [vmem:[%s4462 + $0x4] sm:$0xf]
  %v4465 = vld [vmem:[%s4462 + $0x8] sm:$0xf]
  %v4466 = vld [vmem:[%s4462 + $0xc] sm:$0xf]
  %v4467 = vld [vmem:[%s4462 + $0x10] sm:$0xf]
  %v4468 = vld [vmem:[%s4462 + $0x14] sm:$0xf]
  %v4469 = vld [vmem:[%s4462 + $0x18] sm:$0xf]
  %v4470 = vld [vmem:[%s4462 + $0x1c] sm:$0xf]
  %v4471 = vld [vmem:[%s4462 + $0x20] sm:$0xf]
  %v4472 = vld [vmem:[%s4462 + $0x24] sm:$0xf]
  %v4473 = vld [vmem:[%s4462 + $0x28] sm:$0xf]
  %v4474 = vld [vmem:[%s4462 + $0x2c] sm:$0xf]
  %v4475 = vld [vmem:[%s4462 + $0x30] sm:$0xf]
  %v4476 = vld [vmem:[%s4462 + $0x34] sm:$0xf]
  %v4477 = vld [vmem:[%s4462 + $0x38] sm:$0xf]
  %v4478 = vld [vmem:[%s4462 + $0x3c] sm:$0xf]
  %v4479 = vld [vmem:[%s4462 + $0x40] sm:$0xf]
  %v4480 = vld [vmem:[%s4462 + $0x44] sm:$0xf]
  %v4481 = vld [vmem:[%s4462 + $0x48] sm:$0xf]
  %v4482 = vld [vmem:[%s4462 + $0x4c] sm:$0xf]
  %v4483 = vrot.slane %v3489, 7
  %v4484 = vrot.slane %v3491, 6
  %v4485 = vsel %vm3506, %v4484, %v4483
  %v4486 = vrot.slane %v3493, 5
  %v4487 = vsel %vm3509, %v4486, %v4485
  %v4488 = vrot.slane %v3495, 4
  %v4489 = vsel %vm3512, %v4488, %v4487
  %v4490 = vrot.slane %v3497, 3
  %v4491 = vsel %vm3515, %v4490, %v4489
  %v4492 = vrot.slane %v3499, 2
  %v4493 = vsel %vm3518, %v4492, %v4491
  %v4494 = vrot.slane %v3501, 1
  %v4495 = vsel %vm3521, %v4494, %v4493
  %v4496 = vsel %vm3524, %v3503, %v4495
  %v4497 = vrot.slane %v3490, 7
  %v4498 = vrot.slane %v3492, 6
  %v4499 = vsel %vm3506, %v4498, %v4497
  %v4500 = vrot.slane %v3494, 5
  %v4501 = vsel %vm3509, %v4500, %v4499
  %v4502 = vrot.slane %v3496, 4
  %v4503 = vsel %vm3512, %v4502, %v4501
  %v4504 = vrot.slane %v3498, 3
  %v4505 = vsel %vm3515, %v4504, %v4503
  %v4506 = vrot.slane %v3500, 2
  %v4507 = vsel %vm3518, %v4506, %v4505
  %v4508 = vrot.slane %v3502, 1
  %v4509 = vsel %vm3521, %v4508, %v4507
  %v4510 = vsel %vm3524, %v3504, %v4509
  %v4511 = vpack.c.b16 %v4496, %v4496
  %v4512 = vpack.c.b16 %v4510, %v4510
  %v4534 = vunpack.c.l.b16 %v4463
  %v4535 = vunpack.c.l.b16 %v4464
  %v4536 = vunpack.c.l.b16 %v4465
  %v4537 = vunpack.c.l.b16 %v4466
  %v4538 = vunpack.c.l.b16 %v4467
  %v4539 = vunpack.c.l.b16 %v4468
  %v4540 = vunpack.c.l.b16 %v4469
  %v4541 = vunpack.c.l.b16 %v4470
  %v4542 = vunpack.c.l.b16 %v4471
  %v4543 = vunpack.c.l.b16 %v4472
  %v4544 = vunpack.c.l.b16 %v4473
  %v4545 = vunpack.c.l.b16 %v4474
  %v4546 = vunpack.c.l.b16 %v4475
  %v4547 = vunpack.c.l.b16 %v4476
  %v4548 = vunpack.c.l.b16 %v4477
  %v4549 = vunpack.c.l.b16 %v4478
  %v4550 = vunpack.c.l.b16 %v4479
  %v4551 = vunpack.c.l.b16 %v4480
  %v4552 = vunpack.c.l.b16 %v4481
  %v4553 = vunpack.c.l.b16 %v4482
  %v4554 = vpack.c.b16 %v4535, %v4534
  %v4555 = vpack.c.b16 %v4537, %v4536
  %v4556 = vpack.c.b16 %v4539, %v4538
  %v4557 = vpack.c.b16 %v4541, %v4540
  %v4558 = vpack.c.b16 %v4543, %v4542
  %v4559 = vpack.c.b16 %v4545, %v4544
  %v4560 = vpack.c.b16 %v4547, %v4546
  %v4561 = vpack.c.b16 %v4549, %v4548
  %v4562 = vpack.c.b16 %v4551, %v4550
  %v4563 = vpack.c.b16 %v4553, %v4552
  %v4575 = vsel %vm341, %v4512, 0
  %4577 = vmatpush.bf16.msra.mxu0 %v4561
  %4578 = vmatpush.bf16.msra.mxu0 %v4560
  %4579 = vmatpush.bf16.msra.mxu0 %v4559
  %4580 = vmatpush.bf16.msra.mxu0 %v4558
  %4581 = vmatpush.bf16.msra.mxu0 %v4557
  %4582 = vmatpush.bf16.msra.mxu0 %v4556
  %4583 = vmatpush.bf16.msra.mxu0 %v4555
  %4584 = vmatpush.bf16.msra.mxu0 %v4554
  %4585 = vmatmul.bf16.gmra.mxu0 %v4511
  %v4586 = vpop.f32.mrf.mxu0
  %v4587 = vadd.f32 0.0, %v4586
  %v4588 = vpop.f32.mrf.mxu0
  %4589 = vdwg.mxu0
  %4590 = vmatpush.bf16.msra.mxu0 0
  %4591 = vmatpush.bf16.msra.mxu0 0
  %4592 = vmatpush.bf16.msra.mxu0 0
  %4593 = vmatpush.bf16.msra.mxu0 0
  %4594 = vmatpush.bf16.msra.mxu0 0
  %4595 = vmatpush.bf16.msra.mxu0 0
  %4596 = vmatpush.bf16.msra.mxu0 %v4563
  %4597 = vmatpush.bf16.msra.mxu0 %v4562
  %4598 = vmatmul.bf16.gmra.mxu0 %v4575
  %v4599 = vpop.f32.mrf.mxu0
  %v4600 = vadd.f32 %v4587, %v4599
  %v4601 = vpop.f32.mrf.mxu0
  %4602 = vdwg.mxu0
  %v4603 = vadd.f32 %v4461, %v4600
  %v4604 = vpack.c.bf16 %v3386, %v3386
  %v4605 = vpack.c.bf16 %v3387, %v3387
  %v4606 = vpack.c.bf16 %v3390, %v3390
  %v4607 = vpack.c.bf16 %v3391, %v3391
  %v4608 = vpack.c.bf16 %v3394, %v3394
  %v4609 = vpack.c.bf16 %v3395, %v3395
  %v4610 = vpack.c.bf16 %v3398, %v3398
  %v4611 = vpack.c.bf16 %v3399, %v3399
  %v4612 = vpack.c.bf16 %v3402, %v3402
  %v4613 = vpack.c.bf16 %v3403, %v3403
  %v4614 = vpack.c.bf16 %v3406, %v3406
  %v4615 = vpack.c.bf16 %v3407, %v3407
  %v4616 = vpack.c.bf16 %v3410, %v3410
  %v4617 = vpack.c.bf16 %v3411, %v3411
  %v4618 = vpack.c.bf16 %v3414, %v3414
  %v4619 = vpack.c.bf16 %v3415, %v3415
  %s4620 = scalar_lea.vmem %s5, 640
  %v4621 = vld [vmem:[%s4620] sm:$0xf]
  %v4622 = vld [vmem:[%s4620 + $0x4] sm:$0xf]
  %v4623 = vld [vmem:[%s4620 + $0x8] sm:$0xf]
  %v4624 = vld [vmem:[%s4620 + $0xc] sm:$0xf]
  %v4625 = vld [vmem:[%s4620 + $0x10] sm:$0xf]
  %v4626 = vld [vmem:[%s4620 + $0x14] sm:$0xf]
  %v4627 = vld [vmem:[%s4620 + $0x18] sm:$0xf]
  %v4628 = vld [vmem:[%s4620 + $0x1c] sm:$0xf]
  %v4629 = vld [vmem:[%s4620 + $0x20] sm:$0xf]
  %v4630 = vld [vmem:[%s4620 + $0x24] sm:$0xf]
  %v4631 = vld [vmem:[%s4620 + $0x28] sm:$0xf]
  %v4632 = vld [vmem:[%s4620 + $0x2c] sm:$0xf]
  %v4633 = vld [vmem:[%s4620 + $0x30] sm:$0xf]
  %v4634 = vld [vmem:[%s4620 + $0x34] sm:$0xf]
  %v4635 = vld [vmem:[%s4620 + $0x38] sm:$0xf]
  %v4636 = vld [vmem:[%s4620 + $0x3c] sm:$0xf]
  %v4637 = vld [vmem:[%s4620 + $0x40] sm:$0xf]
  %v4638 = vld [vmem:[%s4620 + $0x44] sm:$0xf]
  %v4639 = vld [vmem:[%s4620 + $0x48] sm:$0xf]
  %v4640 = vld [vmem:[%s4620 + $0x4c] sm:$0xf]
  %v4657 = vunpack.c.l.b16 %v4604
  %v4658 = vunpack.c.l.b16 %v4605
  %v4659 = vunpack.c.l.b16 %v4606
  %v4660 = vunpack.c.l.b16 %v4607
  %v4661 = vunpack.c.l.b16 %v4608
  %v4662 = vunpack.c.l.b16 %v4609
  %v4663 = vunpack.c.l.b16 %v4610
  %v4664 = vunpack.c.l.b16 %v4611
  %v4665 = vunpack.c.l.b16 %v4612
  %v4666 = vunpack.c.l.b16 %v4613
  %v4667 = vunpack.c.l.b16 %v4614
  %v4668 = vunpack.c.l.b16 %v4615
  %v4669 = vunpack.c.l.b16 %v4616
  %v4670 = vunpack.c.l.b16 %v4617
  %v4671 = vunpack.c.l.b16 %v4618
  %v4672 = vunpack.c.l.b16 %v4619
  %v4673 = vrot.slane %v4659, 7
  %v4674 = vsel %vm3506, %v4673, %v4657
  %v4675 = vrot.slane %v4661, 6
  %v4676 = vsel %vm3509, %v4675, %v4674
  %v4677 = vrot.slane %v4663, 5
  %v4678 = vsel %vm3512, %v4677, %v4676
  %v4679 = vrot.slane %v4665, 4
  %v4680 = vsel %vm3515, %v4679, %v4678
  %v4681 = vrot.slane %v4667, 3
  %v4682 = vsel %vm3518, %v4681, %v4680
  %v4683 = vrot.slane %v4669, 2
  %v4684 = vsel %vm3521, %v4683, %v4682
  %v4685 = vrot.slane %v4671, 1
  %v4686 = vsel %vm3524, %v4685, %v4684
  %v4687 = vrot.slane %v4660, 7
  %v4688 = vsel %vm3506, %v4687, %v4658
  %v4689 = vrot.slane %v4662, 6
  %v4690 = vsel %vm3509, %v4689, %v4688
  %v4691 = vrot.slane %v4664, 5
  %v4692 = vsel %vm3512, %v4691, %v4690
  %v4693 = vrot.slane %v4666, 4
  %v4694 = vsel %vm3515, %v4693, %v4692
  %v4695 = vrot.slane %v4668, 3
  %v4696 = vsel %vm3518, %v4695, %v4694
  %v4697 = vrot.slane %v4670, 2
  %v4698 = vsel %vm3521, %v4697, %v4696
  %v4699 = vrot.slane %v4672, 1
  %v4700 = vsel %vm3524, %v4699, %v4698
  %v4701 = vpack.c.b16 %v4686, %v4686
  %v4702 = vpack.c.b16 %v4700, %v4700
  %v4724 = vunpack.c.l.b16 %v4621
  %v4725 = vunpack.c.l.b16 %v4622
  %v4726 = vunpack.c.l.b16 %v4623
  %v4727 = vunpack.c.l.b16 %v4624
  %v4728 = vunpack.c.l.b16 %v4625
  %v4729 = vunpack.c.l.b16 %v4626
  %v4730 = vunpack.c.l.b16 %v4627
  %v4731 = vunpack.c.l.b16 %v4628
  %v4732 = vunpack.c.l.b16 %v4629
  %v4733 = vunpack.c.l.b16 %v4630
  %v4734 = vunpack.c.l.b16 %v4631
  %v4735 = vunpack.c.l.b16 %v4632
  %v4736 = vunpack.c.l.b16 %v4633
  %v4737 = vunpack.c.l.b16 %v4634
  %v4738 = vunpack.c.l.b16 %v4635
  %v4739 = vunpack.c.l.b16 %v4636
  %v4740 = vunpack.c.l.b16 %v4637
  %v4741 = vunpack.c.l.b16 %v4638
  %v4742 = vunpack.c.l.b16 %v4639
  %v4743 = vunpack.c.l.b16 %v4640
  %v4744 = vpack.c.b16 %v4725, %v4724
  %v4745 = vpack.c.b16 %v4727, %v4726
  %v4746 = vpack.c.b16 %v4729, %v4728
  %v4747 = vpack.c.b16 %v4731, %v4730
  %v4748 = vpack.c.b16 %v4733, %v4732
  %v4749 = vpack.c.b16 %v4735, %v4734
  %v4750 = vpack.c.b16 %v4737, %v4736
  %v4751 = vpack.c.b16 %v4739, %v4738
  %v4752 = vpack.c.b16 %v4741, %v4740
  %v4753 = vpack.c.b16 %v4743, %v4742
  %v4765 = vsel %vm341, %v4702, 0
  %4767 = vmatpush.bf16.msra.mxu0 %v4751
  %4768 = vmatpush.bf16.msra.mxu0 %v4750
  %4769 = vmatpush.bf16.msra.mxu0 %v4749
  %4770 = vmatpush.bf16.msra.mxu0 %v4748
  %4771 = vmatpush.bf16.msra.mxu0 %v4747
  %4772 = vmatpush.bf16.msra.mxu0 %v4746
  %4773 = vmatpush.bf16.msra.mxu0 %v4745
  %4774 = vmatpush.bf16.msra.mxu0 %v4744
  %4775 = vmatmul.bf16.gmra.mxu0 %v4701
  %v4776 = vpop.f32.mrf.mxu0
  %v4777 = vadd.f32 0.0, %v4776
  %v4778 = vpop.f32.mrf.mxu0
  %4779 = vdwg.mxu0
  %4780 = vmatpush.bf16.msra.mxu0 0
  %4781 = vmatpush.bf16.msra.mxu0 0
  %4782 = vmatpush.bf16.msra.mxu0 0
  %4783 = vmatpush.bf16.msra.mxu0 0
  %4784 = vmatpush.bf16.msra.mxu0 0
  %4785 = vmatpush.bf16.msra.mxu0 0
  %4786 = vmatpush.bf16.msra.mxu0 %v4753
  %4787 = vmatpush.bf16.msra.mxu0 %v4752
  %4788 = vmatmul.bf16.gmra.mxu0 %v4765
  %v4789 = vpop.f32.mrf.mxu0
  %v4790 = vadd.f32 %v4777, %v4789
  %v4791 = vpop.f32.mrf.mxu0
  %4792 = vdwg.mxu0
  %v4793 = vadd.f32 %v4603, %v4790
  %s4794 = scalar_lea.vmem %s5, 720
  %v4795 = vld [vmem:[%s4794] sm:$0xf]
  %v4796 = vld [vmem:[%s4794 + $0x4] sm:$0xf]
  %v4797 = vld [vmem:[%s4794 + $0x8] sm:$0xf]
  %v4798 = vld [vmem:[%s4794 + $0xc] sm:$0xf]
  %v4799 = vld [vmem:[%s4794 + $0x10] sm:$0xf]
  %v4800 = vld [vmem:[%s4794 + $0x14] sm:$0xf]
  %v4801 = vld [vmem:[%s4794 + $0x18] sm:$0xf]
  %v4802 = vld [vmem:[%s4794 + $0x1c] sm:$0xf]
  %v4803 = vld [vmem:[%s4794 + $0x20] sm:$0xf]
  %v4804 = vld [vmem:[%s4794 + $0x24] sm:$0xf]
  %v4805 = vld [vmem:[%s4794 + $0x28] sm:$0xf]
  %v4806 = vld [vmem:[%s4794 + $0x2c] sm:$0xf]
  %v4807 = vld [vmem:[%s4794 + $0x30] sm:$0xf]
  %v4808 = vld [vmem:[%s4794 + $0x34] sm:$0xf]
  %v4809 = vld [vmem:[%s4794 + $0x38] sm:$0xf]
  %v4810 = vld [vmem:[%s4794 + $0x3c] sm:$0xf]
  %v4811 = vld [vmem:[%s4794 + $0x40] sm:$0xf]
  %v4812 = vld [vmem:[%s4794 + $0x44] sm:$0xf]
  %v4813 = vld [vmem:[%s4794 + $0x48] sm:$0xf]
  %v4814 = vld [vmem:[%s4794 + $0x4c] sm:$0xf]
  %v4815 = vrot.slane %v4657, 1
  %v4816 = vsel %vm3506, %v4659, %v4815
  %v4817 = vrot.slane %v4661, 7
  %v4818 = vsel %vm3509, %v4817, %v4816
  %v4819 = vrot.slane %v4663, 6
  %v4820 = vsel %vm3512, %v4819, %v4818
  %v4821 = vrot.slane %v4665, 5
  %v4822 = vsel %vm3515, %v4821, %v4820
  %v4823 = vrot.slane %v4667, 4
  %v4824 = vsel %vm3518, %v4823, %v4822
  %v4825 = vrot.slane %v4669, 3
  %v4826 = vsel %vm3521, %v4825, %v4824
  %v4827 = vrot.slane %v4671, 2
  %v4828 = vsel %vm3524, %v4827, %v4826
  %v4829 = vrot.slane %v4658, 1
  %v4830 = vsel %vm3506, %v4660, %v4829
  %v4831 = vrot.slane %v4662, 7
  %v4832 = vsel %vm3509, %v4831, %v4830
  %v4833 = vrot.slane %v4664, 6
  %v4834 = vsel %vm3512, %v4833, %v4832
  %v4835 = vrot.slane %v4666, 5
  %v4836 = vsel %vm3515, %v4835, %v4834
  %v4837 = vrot.slane %v4668, 4
  %v4838 = vsel %vm3518, %v4837, %v4836
  %v4839 = vrot.slane %v4670, 3
  %v4840 = vsel %vm3521, %v4839, %v4838
  %v4841 = vrot.slane %v4672, 2
  %v4842 = vsel %vm3524, %v4841, %v4840
  %v4843 = vpack.c.b16 %v4828, %v4828
  %v4844 = vpack.c.b16 %v4842, %v4842
  %v4866 = vunpack.c.l.b16 %v4795
  %v4867 = vunpack.c.l.b16 %v4796
  %v4868 = vunpack.c.l.b16 %v4797
  %v4869 = vunpack.c.l.b16 %v4798
  %v4870 = vunpack.c.l.b16 %v4799
  %v4871 = vunpack.c.l.b16 %v4800
  %v4872 = vunpack.c.l.b16 %v4801
  %v4873 = vunpack.c.l.b16 %v4802
  %v4874 = vunpack.c.l.b16 %v4803
  %v4875 = vunpack.c.l.b16 %v4804
  %v4876 = vunpack.c.l.b16 %v4805
  %v4877 = vunpack.c.l.b16 %v4806
  %v4878 = vunpack.c.l.b16 %v4807
  %v4879 = vunpack.c.l.b16 %v4808
  %v4880 = vunpack.c.l.b16 %v4809
  %v4881 = vunpack.c.l.b16 %v4810
  %v4882 = vunpack.c.l.b16 %v4811
  %v4883 = vunpack.c.l.b16 %v4812
  %v4884 = vunpack.c.l.b16 %v4813
  %v4885 = vunpack.c.l.b16 %v4814
  %v4886 = vpack.c.b16 %v4867, %v4866
  %v4887 = vpack.c.b16 %v4869, %v4868
  %v4888 = vpack.c.b16 %v4871, %v4870
  %v4889 = vpack.c.b16 %v4873, %v4872
  %v4890 = vpack.c.b16 %v4875, %v4874
  %v4891 = vpack.c.b16 %v4877, %v4876
  %v4892 = vpack.c.b16 %v4879, %v4878
  %v4893 = vpack.c.b16 %v4881, %v4880
  %v4894 = vpack.c.b16 %v4883, %v4882
  %v4895 = vpack.c.b16 %v4885, %v4884
  %v4907 = vsel %vm341, %v4844, 0
  %4909 = vmatpush.bf16.msra.mxu0 %v4893
  %4910 = vmatpush.bf16.msra.mxu0 %v4892
  %4911 = vmatpush.bf16.msra.mxu0 %v4891
  %4912 = vmatpush.bf16.msra.mxu0 %v4890
  %4913 = vmatpush.bf16.msra.mxu0 %v4889
  %4914 = vmatpush.bf16.msra.mxu0 %v4888
  %4915 = vmatpush.bf16.msra.mxu0 %v4887
  %4916 = vmatpush.bf16.msra.mxu0 %v4886
  %4917 = vmatmul.bf16.gmra.mxu0 %v4843
  %v4918 = vpop.f32.mrf.mxu0
  %v4919 = vadd.f32 0.0, %v4918
  %v4920 = vpop.f32.mrf.mxu0
  %4921 = vdwg.mxu0
  %4922 = vmatpush.bf16.msra.mxu0 0
  %4923 = vmatpush.bf16.msra.mxu0 0
  %4924 = vmatpush.bf16.msra.mxu0 0
  %4925 = vmatpush.bf16.msra.mxu0 0
  %4926 = vmatpush.bf16.msra.mxu0 0
  %4927 = vmatpush.bf16.msra.mxu0 0
  %4928 = vmatpush.bf16.msra.mxu0 %v4895
  %4929 = vmatpush.bf16.msra.mxu0 %v4894
  %4930 = vmatmul.bf16.gmra.mxu0 %v4907
  %v4931 = vpop.f32.mrf.mxu0
  %v4932 = vadd.f32 %v4919, %v4931
  %v4933 = vpop.f32.mrf.mxu0
  %4934 = vdwg.mxu0
  %v4935 = vadd.f32 %v4793, %v4932
  %v4936 = vld [vmem:[%s6] sm:$0x1]
  %v4938 = vperm.slane %v4936, 0
  %v4940 = vadd.f32 %v4935, %v4938
  %v4941 = vmax.f32 %v4940, 0.0
  %v4942 = vpack.c.bf16 %v4941, %v4941
  %v4943 = vld [vmem:[%s7] sm:$0xf]
  %v4944 = vld [vmem:[%s7 + $0x4] sm:$0xf]
  %v4945 = vld [vmem:[%s7 + $0x8] sm:$0xf]
  %v4946 = vld [vmem:[%s7 + $0xc] sm:$0xf]
  %v4947 = vld [vmem:[%s7 + $0x10] sm:$0xf]
  %v4948 = vld [vmem:[%s7 + $0x14] sm:$0xf]
  %v4949 = vld [vmem:[%s7 + $0x18] sm:$0xf]
  %v4950 = vld [vmem:[%s7 + $0x1c] sm:$0xf]
  %v4951 = vld [vmem:[%s7 + $0x20] sm:$0xf]
  %v4952 = vld [vmem:[%s7 + $0x24] sm:$0xf]
  %v4953 = vld [vmem:[%s7 + $0x28] sm:$0xf]
  %v4954 = vld [vmem:[%s7 + $0x2c] sm:$0xf]
  %v4955 = vld [vmem:[%s7 + $0x30] sm:$0xf]
  %v4956 = vld [vmem:[%s7 + $0x34] sm:$0xf]
  %v4957 = vld [vmem:[%s7 + $0x38] sm:$0xf]
  %v4958 = vld [vmem:[%s7 + $0x3c] sm:$0xf]
  %v4959 = vld [vmem:[%s8] sm:$0x1]
  %v4961 = vperm.slane %v4959, 0
  %v4979 = vunpack.c.l.b16 %v4943
  %v4980 = vunpack.c.l.b16 %v4944
  %v4981 = vunpack.c.l.b16 %v4945
  %v4982 = vunpack.c.l.b16 %v4946
  %v4983 = vunpack.c.l.b16 %v4947
  %v4984 = vunpack.c.l.b16 %v4948
  %v4985 = vunpack.c.l.b16 %v4949
  %v4986 = vunpack.c.l.b16 %v4950
  %v4987 = vunpack.c.l.b16 %v4951
  %v4988 = vunpack.c.l.b16 %v4952
  %v4989 = vunpack.c.l.b16 %v4953
  %v4990 = vunpack.c.l.b16 %v4954
  %v4991 = vunpack.c.l.b16 %v4955
  %v4992 = vunpack.c.l.b16 %v4956
  %v4993 = vunpack.c.l.b16 %v4957
  %v4994 = vunpack.c.l.b16 %v4958
  %v4995 = vpack.c.b16 %v4980, %v4979
  %v4996 = vpack.c.b16 %v4982, %v4981
  %v4997 = vpack.c.b16 %v4984, %v4983
  %v4998 = vpack.c.b16 %v4986, %v4985
  %v4999 = vpack.c.b16 %v4988, %v4987
  %v5000 = vpack.c.b16 %v4990, %v4989
  %v5001 = vpack.c.b16 %v4992, %v4991
  %v5002 = vpack.c.b16 %v4994, %v4993
  %5011 = vmatpush.bf16.msra.mxu0 %v5002
  %5012 = vmatpush.bf16.msra.mxu0 %v5001
  %5013 = vmatpush.bf16.msra.mxu0 %v5000
  %5014 = vmatpush.bf16.msra.mxu0 %v4999
  %5015 = vmatpush.bf16.msra.mxu0 %v4998
  %5016 = vmatpush.bf16.msra.mxu0 %v4997
  %5017 = vmatpush.bf16.msra.mxu0 %v4996
  %5018 = vmatpush.bf16.msra.mxu0 %v4995
  %5019 = vmatmul.bf16.gmra.mxu0 %v4942
  %v5020 = vpop.f32.mrf.mxu0
  %v5021 = vadd.f32 %v4961, %v5020
  %v5022 = vpop.f32.mrf.mxu0
  %5023 = vdwg.mxu0
  %v5024 = vmax.f32 %v5021, 0.0
  %v5025 = vpack.c.bf16 %v5024, %v5024
  %v5026 = vld [vmem:[%s9] sm:$0xf]
  %v5027 = vld [vmem:[%s9 + $0x4] sm:$0xf]
  %v5028 = vld [vmem:[%s9 + $0x8] sm:$0xf]
  %v5029 = vld [vmem:[%s9 + $0xc] sm:$0xf]
  %v5030 = vld [vmem:[%s9 + $0x10] sm:$0xf]
  %v5031 = vld [vmem:[%s9 + $0x14] sm:$0xf]
  %v5032 = vld [vmem:[%s9 + $0x18] sm:$0xf]
  %v5033 = vld [vmem:[%s9 + $0x1c] sm:$0xf]
  %v5034 = vld [vmem:[%s9 + $0x20] sm:$0xf]
  %v5035 = vld [vmem:[%s9 + $0x24] sm:$0xf]
  %v5036 = vld [vmem:[%s9 + $0x28] sm:$0xf]
  %v5037 = vld [vmem:[%s9 + $0x2c] sm:$0xf]
  %v5038 = vld [vmem:[%s9 + $0x30] sm:$0xf]
  %v5039 = vld [vmem:[%s9 + $0x34] sm:$0xf]
  %v5040 = vld [vmem:[%s9 + $0x38] sm:$0xf]
  %v5041 = vld [vmem:[%s9 + $0x3c] sm:$0xf]
  %v5042 = vld [vmem:[%s10] sm:$0x1]
  %v5044 = vperm.slane %v5042, 0
  %v5062 = vunpack.c.l.b16 %v5026
  %v5063 = vunpack.c.l.b16 %v5027
  %v5064 = vunpack.c.l.b16 %v5028
  %v5065 = vunpack.c.l.b16 %v5029
  %v5066 = vunpack.c.l.b16 %v5030
  %v5067 = vunpack.c.l.b16 %v5031
  %v5068 = vunpack.c.l.b16 %v5032
  %v5069 = vunpack.c.l.b16 %v5033
  %v5070 = vunpack.c.l.b16 %v5034
  %v5071 = vunpack.c.l.b16 %v5035
  %v5072 = vunpack.c.l.b16 %v5036
  %v5073 = vunpack.c.l.b16 %v5037
  %v5074 = vunpack.c.l.b16 %v5038
  %v5075 = vunpack.c.l.b16 %v5039
  %v5076 = vunpack.c.l.b16 %v5040
  %v5077 = vunpack.c.l.b16 %v5041
  %v5078 = vpack.c.b16 %v5063, %v5062
  %v5079 = vpack.c.b16 %v5065, %v5064
  %v5080 = vpack.c.b16 %v5067, %v5066
  %v5081 = vpack.c.b16 %v5069, %v5068
  %v5082 = vpack.c.b16 %v5071, %v5070
  %v5083 = vpack.c.b16 %v5073, %v5072
  %v5084 = vpack.c.b16 %v5075, %v5074
  %v5085 = vpack.c.b16 %v5077, %v5076
  %5094 = vmatpush.bf16.msra.mxu0 %v5085
  %5095 = vmatpush.bf16.msra.mxu0 %v5084
  %5096 = vmatpush.bf16.msra.mxu0 %v5083
  %5097 = vmatpush.bf16.msra.mxu0 %v5082
  %5098 = vmatpush.bf16.msra.mxu0 %v5081
  %5099 = vmatpush.bf16.msra.mxu0 %v5080
  %5100 = vmatpush.bf16.msra.mxu0 %v5079
  %5101 = vmatpush.bf16.msra.mxu0 %v5078
  %5102 = vmatmul.bf16.gmra.mxu0 %v5025
  %v5103 = vpop.f32.mrf.mxu0
  %v5104 = vadd.f32 %v5044, %v5103
  %v5105 = vpop.f32.mrf.mxu0
  %5106 = vdwg.mxu0
  %5107 = vst [vmem:[%s11] sm:$0xff] %v5104
  // Predicated region
  $region46: #{lenet_forward.1} parent=0 // pred_check
    _
  $region47: #{lenet_forward.1} parent=0 // pred_check_branch
    %5109 = sbr.rel (0) target = $region49
  $region48: #{lenet_forward.1} parent=0 // pred_region
    _
  $region49: #{lenet_forward.1} parent=0 // pred_fallthru
    _
  // Predicated region
  $region50: #{lenet_forward.1} parent=0 // pred_check
    _
  $region51: #{lenet_forward.1} parent=0 // pred_check_branch
    %5111 = sbr.rel (0) target = $region53
  $region52: #{lenet_forward.1} parent=0 // pred_region
    _
  $region53: #{lenet_forward.1} parent=0 // pred_fallthru
    _

</llo_original>
